<compile_context>
chip_gen: v6e
topology: v6e:2x2x1
jax: 0.10.0
libtpu: 0.0.40
codegen_flags: <defaults>
</compile_context>

<pallas_src>
import functools

import jax
import jax.numpy as jnp
from jax import lax
from jax.experimental import pallas as pl
from jax.experimental.pallas import tpu as pltpu

K = 5          # Conv3d kernel_size
PAD = 2        # Conv3d padding
K3 = K * K * K # 125 taps
EPS = 1e-5
TQ = 512       # pitched-output tile width (lanes); multiple of 128, 512-1024 sweet spot


def _round_up(x, m):
    return (x + m - 1) // m * m


def _conv_geometry(D, H, W):
    Hp, Wp = H + 2 * PAD, W + 2 * PAD
    Dp = D + 2 * PAD
    planeP = _round_up(Hp * Wp, 128)            # lane-aligned plane pitch
    QPAD = _round_up(D * planeP, TQ)            # pitched output length, multiple of TQ
    # per-depth-slice window: covers all 25 (kh,kw) lane shifts for one tile
    WROW = _round_up(TQ + (K - 1) * (Wp + 1), 128)
    # flat padded-input length: covers q0_max + (K-1)*planeP + WROW
    XLEN = QPAD + (K - 1) * planeP + (WROW - TQ)
    return dict(D=D, H=H, W=W, Dp=Dp, Hp=Hp, Wp=Wp,
                planeP=planeP, QPAD=QPAD, WROW=WROW, XLEN=XLEN)


def _make_conv_kernel(geom, compute_dtype):
    planeP, Wp, WROW = geom["planeP"], geom["Wp"], geom["WROW"]

    def conv_stats_kernel(x_ref, w_ref, m_ref, out_ref, sums_ref, p_ref):
        # x_ref   : (1, 1, XLEN)    flat pitched padded input for this batch element
        # w_ref   : (C, 128)        conv weights, 125 taps zero-padded to 128
        # m_ref   : (1, TQ)         validity mask for this pitched-output tile
        # out_ref : (1, C, TQ)      pitched conv output tile (f32)
        # sums_ref: (1, 1, 2, C)    per-step partial [sum, sum-of-squares]
        # p_ref   : (128, TQ)       VMEM scratch: im2col patch matrix
        q0 = pl.multiple_of(pl.program_id(1) * TQ, 128)

        # One small, 128-aligned window load per depth tap kd (5 loads per tile).
        wins = []
        for kd in range(K):
            start = pl.multiple_of(q0 + kd * planeP, 128)
            wins.append(x_ref[0, :, pl.ds(start, WROW)])        # (1, WROW)

        # Build the 128-row im2col matrix 8 rows at a time (full-tile unmasked stores).
        # Row t (= kd*25 + kh*5 + kw) is the input shifted by kd*planeP + kh*Wp + kw;
        # rows 125..127 are zeros (matching wmat's zero columns).
        for t0 in range(0, 128, 8):
            rows = []
            for t in range(t0, t0 + 8):
                if t < K3:
                    kd, rem = divmod(t, K * K)
                    kh, kw = divmod(rem, K)
                    s = kh * Wp + kw
                    rows.append(wins[kd][:, s:s + TQ])           # (1, TQ)
                else:
                    rows.append(jnp.zeros((1, TQ), compute_dtype))
            p_ref[t0:t0 + 8, :] = jnp.concatenate(rows, axis=0)  # (8, TQ)

        # 5x5x5 conv for this tile as one MXU matmul: (C,128) @ (128,TQ) -> (C,TQ) f32.
        y = jnp.dot(w_ref[...], p_ref[...], preferred_element_type=jnp.float32)
        out_ref[0] = y

        # Per-channel partial batch statistics over valid voxels only.
        m = m_ref[...]                                           # (1, TQ)
        ym = y * m
        sums_ref[0, 0] = jnp.stack(
            [jnp.sum(ym, axis=1), jnp.sum(ym * y, axis=1)], axis=0)  # (2, C)

    return conv_stats_kernel


def conv3d_with_stats(x, weight, compute_dtype=jnp.float32):
    """Direct 5x5x5 conv (C_in=1) as a Q-tiled im2col MXU matmul + fused BN stats.

    x:      (N, 1, D, H, W) float32
    weight: (C, 1, K, K, K) float32
    Returns (y_pitched (N, C, QPAD) f32, sums (2, C) f32, geometry dict).
    """
    N, _, D, H, W = x.shape
    C = weight.shape[0]
    g = _conv_geometry(D, H, W)
    Dp, Hp, Wp = g["Dp"], g["Hp"], g["Wp"]
    planeP, QPAD, XLEN = g["planeP"], g["QPAD"], g["XLEN"]
    NQ = QPAD // TQ

    # Pitched (lane-aligned), flattened, zero-padded input: (N, 1, XLEN).
    xp = jnp.pad(x[:, 0], ((0, 0), (PAD, PAD), (PAD, PAD), (PAD, PAD)))
    xp = xp.reshape(N, Dp, Hp * Wp)
    xp = jnp.pad(xp, ((0, 0), (0, 0), (0, planeP - Hp * Wp)))
    xflat = xp.reshape(N, 1, Dp * planeP)
    xflat = jnp.pad(xflat, ((0, 0), (0, 0), (0, XLEN - Dp * planeP)))
    xflat = xflat.astype(compute_dtype)

    # Weight as a (C, 128) matmul operand; tap order (kd, kh, kw) matches the kernel.
    wmat = jnp.pad(weight[:, 0].reshape(C, K3), ((0, 0), (0, 128 - K3)))
    wmat = wmat.astype(compute_dtype)

    # Validity mask over the pitched output grid (1.0 where (d, h, w) is a real voxel).
    q = jnp.arange(QPAD)
    r = q % planeP
    valid = ((q // planeP) < D) & ((r // Wp) < H) & ((r % Wp) < W)
    mask = valid.astype(jnp.float32).reshape(1, QPAD)

    kernel = _make_conv_kernel(g, compute_dtype)

    y_pitched, partials = pl.pallas_call(
        kernel,
        out_shape=(jax.ShapeDtypeStruct((N, C, QPAD), jnp.float32),
                   jax.ShapeDtypeStruct((N, NQ, 2, C), jnp.float32)),
        grid_spec=pltpu.PrefetchScalarGridSpec(
            num_scalar_prefetch=0,
            grid=(N, NQ),
            in_specs=[pl.BlockSpec((1, 1, XLEN), lambda n, t: (n, 0, 0)),
                      pl.BlockSpec((C, 128), lambda n, t: (0, 0)),
                      pl.BlockSpec((1, TQ), lambda n, t: (0, t))],
            out_specs=(pl.BlockSpec((1, C, TQ), lambda n, t: (n, 0, t)),
                       pl.BlockSpec((1, 1, 2, C), lambda n, t: (n, t, 0, 0))),
            scratch_shapes=[pltpu.VMEM((128, TQ), compute_dtype)]),
        compiler_params=pltpu.CompilerParams(
            # No resident accumulator: both axes are parallel (v7x megacore-friendly).
            dimension_semantics=("parallel", "parallel"),
            vmem_limit_bytes=32 * 1024 * 1024),
    )(xflat, wmat, mask)

    sums = jnp.sum(partials, axis=(0, 1))     # trivial wrapper-side reduction -> (2, C)
    return y_pitched, sums, g


def bn_relu_kernel(y_ref, sb_ref, o_ref):
    # y_ref: (1, C, TQ); sb_ref: (2, C, 1) = [scale; shift]; o_ref aliases y_ref.
    y = y_ref[0]                    # (C, TQ)
    s = sb_ref[0]                   # (C, 1)
    b = sb_ref[1]                   # (C, 1)
    o_ref[0] = jnp.maximum(y * s + b, 0.0)


def bn_relu_pitched(y_pitched, scale, shift):
    N, C, QPAD = y_pitched.shape
    NQ = QPAD // TQ
    sb = jnp.stack([scale, shift], axis=0).astype(jnp.float32).reshape(2, C, 1)
    return pl.pallas_call(
        bn_relu_kernel,
        out_shape=jax.ShapeDtypeStruct(y_pitched.shape, jnp.float32),
        grid=(N, NQ),
        in_specs=[pl.BlockSpec((1, C, TQ), lambda n, t: (n, 0, t)),
                  pl.BlockSpec((2, C, 1), lambda n, t: (0, 0, 0))],
        out_specs=pl.BlockSpec((1, C, TQ), lambda n, t: (n, 0, t)),
        input_output_aliases={0: 0},   # normalize in place over the conv output buffer
        compiler_params=pltpu.CompilerParams(
            dimension_semantics=("parallel", "parallel")),
    )(y_pitched, sb)


def input_module_forward_pitched(x, conv_weight, gamma, beta, eps=EPS,
                                 compute_dtype=jnp.float32):
    """relu(bn(conv(x))) producing the pitched (N, C, QPAD) lane-dense layout.

    This is the preferred contract for downstream blocks (no extra HBM crop pass).
    """
    y_pitched, sums, g = conv3d_with_stats(x, conv_weight, compute_dtype)
    N = x.shape[0]
    D, H, W = g["D"], g["H"], g["W"]

    count = float(N * D * H * W)
    mean = sums[0] / count
    # TODO(synk): one-pass E[x^2]-E[x]^2 variance; consider Welford at real data scales.
    var = sums[1] / count - mean * mean
    scale = gamma * lax.rsqrt(var + eps)
    shift = beta - mean * scale

    out_p = bn_relu_pitched(y_pitched, scale, shift)
    return out_p, g


def input_module_forward(x, conv_weight, gamma, beta, eps=EPS,
                         compute_dtype=jnp.float32):
    """Equivalent of Input.forward, cropped back to NCDHW (extra HBM pass; test only)."""
    out_p, g = input_module_forward_pitched(x, conv_weight, gamma, beta, eps,
                                            compute_dtype)
    N, C = x.shape[0], conv_weight.shape[0]
    D, H, W = g["D"], g["H"], g["W"]
    Hp, Wp, planeP = g["Hp"], g["Wp"], g["planeP"]
    out = out_p[:, :, :D * planeP].reshape(N, C, D, planeP)
    out = out[:, :, :, :Hp * Wp].reshape(N, C, D, Hp, Wp)
    return out[:, :, :, :H, :W]


if __name__ == "__main__":
    key = jax.random.PRNGKey(0)
    kx, kw = jax.random.split(key)

    N, Cout, D, H, W = 2, 8, 8, 8, 8
    x = jax.random.normal(kx, (N, 1, D, H, W), dtype=jnp.float32)

    # Conv3d weight: kaiming-uniform-like deterministic init, bound = 1/sqrt(fan_in)
    fan_in = 1 * K * K * K
    bound = 1.0 / (fan_in ** 0.5)
    conv_weight = jax.random.uniform(kw, (Cout, 1, K, K, K), jnp.float32, -bound, bound)

    # BatchNorm3d parameters: PyTorch default init (weight=1, bias=0)
    gamma = jnp.ones((Cout,), jnp.float32)
    beta = jnp.zeros((Cout,), jnp.float32)

    # pure-JAX reference
    ref_conv = lax.conv_general_dilated(
        x, conv_weight, window_strides=(1, 1, 1),
        padding=[(PAD, PAD)] * 3,
        dimension_numbers=("NCDHW", "OIDHW", "NCDHW"),
        precision=lax.Precision.HIGHEST)
    rmean = ref_conv.mean(axis=(0, 2, 3, 4))
    rvar = ref_conv.var(axis=(0, 2, 3, 4))
    bshape = (1, Cout, 1, 1, 1)
    ref = jnp.maximum(
        (ref_conv - rmean.reshape(bshape)) / jnp.sqrt(rvar + EPS).reshape(bshape)
        * gamma.reshape(bshape) + beta.reshape(bshape), 0.0)

    # f32 path (bit-faithful to the PyTorch module)
    fwd_f32 = jax.jit(functools.partial(input_module_forward,
                                        compute_dtype=jnp.float32))
    out = jax.block_until_ready(fwd_f32(x, conv_weight, gamma, beta))
    err = float(jnp.max(jnp.abs(out - ref)))
    assert err < 5e-4, f"f32 path: max abs error too large: {err}"

    # bf16 im2col/weights path (recommended on v6e/v7x): f32 accumulation, BN
    # renormalizes, so only the per-voxel conv rounding error remains.
    fwd_bf16 = jax.jit(functools.partial(input_module_forward,
                                         compute_dtype=jnp.bfloat16))
    out_bf16 = jax.block_until_ready(fwd_bf16(x, conv_weight, gamma, beta))
    err_bf16 = float(jnp.max(jnp.abs(out_bf16 - ref)))
    assert err_bf16 < 1e-1, f"bf16 path: max abs error too large: {err_bf16}"

    print("KERNEL_OK")
</pallas_src>

<mosaic_0001>
module attributes {stable_mosaic.version = 11 : i64} {
  func.func @conv_stats_kernel(%arg0: i32, %arg1: i32, %arg2: memref<1x1x3200xf32, #tpu.memory_space<vmem>>, %arg3: memref<8x128xf32, #tpu.memory_space<vmem>>, %arg4: memref<1x512xf32, #tpu.memory_space<vmem>>, %arg5: memref<1x8x512xf32, #tpu.memory_space<vmem>>, %arg6: memref<1x1x2x8xf32, #tpu.memory_space<vmem>>, %arg7: memref<128x512xf32, #tpu.memory_space<vmem>>) attributes {dimension_semantics = [#tpu.dimension_semantics<parallel>, #tpu.dimension_semantics<parallel>], iteration_bounds = array<i64: 2, 4>, scalar_prefetch = 0 : i64, scratch_operands = 1 : i64, tpu.core_type = #tpu.core_type<tc>, window_params = [{transform_indices = @transform_0, window_bounds = array<i64: 1, 1, 3200>}, {pipeline_mode = #tpu.pipeline_mode<synchronous>, transform_indices = @transform_1, window_bounds = array<i64: 8, 128>}, {transform_indices = @transform_2, window_bounds = array<i64: 1, 512>}, {transform_indices = @transform_3, window_bounds = array<i64: 1, 8, 512>}, {transform_indices = @transform_4, window_bounds = array<i64: 1, 1, 2, 8>}]} {
    %c512_i32 = arith.constant 512 : i32
    %0 = arith.muli %arg1, %c512_i32 : i32
    %1 = tpu.assume_multiple %0, 128 : i32
    %c0_i32 = arith.constant 0 : i32
    %2 = arith.addi %1, %c0_i32 : i32
    %3 = tpu.assume_multiple %2, 128 : i32
    %c0 = arith.constant 0 : index
    %c0_0 = arith.constant 0 : index
    %4 = arith.index_cast %3 : i32 to index
    %5 = vector.load %arg2[%c0, %c0_0, %4] : memref<1x1x3200xf32, #tpu.memory_space<vmem>>, vector<1x1x640xf32>
    %6 = vector.shape_cast %5 : vector<1x1x640xf32> to vector<1x640xf32>
    %c256_i32 = arith.constant 256 : i32
    %7 = arith.addi %1, %c256_i32 : i32
    %8 = tpu.assume_multiple %7, 128 : i32
    %c0_1 = arith.constant 0 : index
    %c0_2 = arith.constant 0 : index
    %9 = arith.index_cast %8 : i32 to index
    %10 = vector.load %arg2[%c0_1, %c0_2, %9] : memref<1x1x3200xf32, #tpu.memory_space<vmem>>, vector<1x1x640xf32>
    %11 = vector.shape_cast %10 : vector<1x1x640xf32> to vector<1x640xf32>
    %c512_i32_3 = arith.constant 512 : i32
    %12 = arith.addi %1, %c512_i32_3 : i32
    %13 = tpu.assume_multiple %12, 128 : i32
    %c0_4 = arith.constant 0 : index
    %c0_5 = arith.constant 0 : index
    %14 = arith.index_cast %13 : i32 to index
    %15 = vector.load %arg2[%c0_4, %c0_5, %14] : memref<1x1x3200xf32, #tpu.memory_space<vmem>>, vector<1x1x640xf32>
    %16 = vector.shape_cast %15 : vector<1x1x640xf32> to vector<1x640xf32>
    %c768_i32 = arith.constant 768 : i32
    %17 = arith.addi %1, %c768_i32 : i32
    %18 = tpu.assume_multiple %17, 128 : i32
    %c0_6 = arith.constant 0 : index
    %c0_7 = arith.constant 0 : index
    %19 = arith.index_cast %18 : i32 to index
    %20 = vector.load %arg2[%c0_6, %c0_7, %19] : memref<1x1x3200xf32, #tpu.memory_space<vmem>>, vector<1x1x640xf32>
    %21 = vector.shape_cast %20 : vector<1x1x640xf32> to vector<1x640xf32>
    %c1024_i32 = arith.constant 1024 : i32
    %22 = arith.addi %1, %c1024_i32 : i32
    %23 = tpu.assume_multiple %22, 128 : i32
    %c0_8 = arith.constant 0 : index
    %c0_9 = arith.constant 0 : index
    %24 = arith.index_cast %23 : i32 to index
    %25 = vector.load %arg2[%c0_8, %c0_9, %24] : memref<1x1x3200xf32, #tpu.memory_space<vmem>>, vector<1x1x640xf32>
    %26 = vector.shape_cast %25 : vector<1x1x640xf32> to vector<1x640xf32>
    %27 = vector.extract_strided_slice %6 {offsets = [0, 0], sizes = [1, 512], strides = [1, 1]} : vector<1x640xf32> to vector<1x512xf32>
    %28 = vector.extract_strided_slice %6 {offsets = [0, 1], sizes = [1, 512], strides = [1, 1]} : vector<1x640xf32> to vector<1x512xf32>
    %29 = vector.extract_strided_slice %6 {offsets = [0, 2], sizes = [1, 512], strides = [1, 1]} : vector<1x640xf32> to vector<1x512xf32>
    %30 = vector.extract_strided_slice %6 {offsets = [0, 3], sizes = [1, 512], strides = [1, 1]} : vector<1x640xf32> to vector<1x512xf32>
    %31 = vector.extract_strided_slice %6 {offsets = [0, 4], sizes = [1, 512], strides = [1, 1]} : vector<1x640xf32> to vector<1x512xf32>
    %32 = vector.extract_strided_slice %6 {offsets = [0, 12], sizes = [1, 512], strides = [1, 1]} : vector<1x640xf32> to vector<1x512xf32>
    %33 = vector.extract_strided_slice %6 {offsets = [0, 13], sizes = [1, 512], strides = [1, 1]} : vector<1x640xf32> to vector<1x512xf32>
    %34 = vector.extract_strided_slice %6 {offsets = [0, 14], sizes = [1, 512], strides = [1, 1]} : vector<1x640xf32> to vector<1x512xf32>
    %35 = tpu.concatenate %27, %28, %29, %30, %31, %32, %33, %34 in 0 : vector<1x512xf32>, vector<1x512xf32>, vector<1x512xf32>, vector<1x512xf32>, vector<1x512xf32>, vector<1x512xf32>, vector<1x512xf32>, vector<1x512xf32> -> vector<8x512xf32>
    %c0_10 = arith.constant 0 : index
    %c0_11 = arith.constant 0 : index
    %36 = vector.load %arg7[%c0_10, %c0_11] : memref<128x512xf32, #tpu.memory_space<vmem>>, vector<8x512xf32>
    tpu.vector_store %arg7[%c0_10, %c0_11], %35 {strides = array<i32>} : memref<128x512xf32, #tpu.memory_space<vmem>>, vector<8x512xf32>,
    %37 = vector.extract_strided_slice %6 {offsets = [0, 15], sizes = [1, 512], strides = [1, 1]} : vector<1x640xf32> to vector<1x512xf32>
    %38 = vector.extract_strided_slice %6 {offsets = [0, 16], sizes = [1, 512], strides = [1, 1]} : vector<1x640xf32> to vector<1x512xf32>
    %39 = vector.extract_strided_slice %6 {offsets = [0, 24], sizes = [1, 512], strides = [1, 1]} : vector<1x640xf32> to vector<1x512xf32>
    %40 = vector.extract_strided_slice %6 {offsets = [0, 25], sizes = [1, 512], strides = [1, 1]} : vector<1x640xf32> to vector<1x512xf32>
    %41 = vector.extract_strided_slice %6 {offsets = [0, 26], sizes = [1, 512], strides = [1, 1]} : vector<1x640xf32> to vector<1x512xf32>
    %42 = vector.extract_strided_slice %6 {offsets = [0, 27], sizes = [1, 512], strides = [1, 1]} : vector<1x640xf32> to vector<1x512xf32>
    %43 = vector.extract_strided_slice %6 {offsets = [0, 28], sizes = [1, 512], strides = [1, 1]} : vector<1x640xf32> to vector<1x512xf32>
    %44 = vector.extract_strided_slice %6 {offsets = [0, 36], sizes = [1, 512], strides = [1, 1]} : vector<1x640xf32> to vector<1x512xf32>
    %45 = tpu.concatenate %37, %38, %39, %40, %41, %42, %43, %44 in 0 : vector<1x512xf32>, vector<1x512xf32>, vector<1x512xf32>, vector<1x512xf32>, vector<1x512xf32>, vector<1x512xf32>, vector<1x512xf32>, vector<1x512xf32> -> vector<8x512xf32>
    %c8 = arith.constant 8 : index
    %c0_12 = arith.constant 0 : index
    %46 = vector.load %arg7[%c8, %c0_12] : memref<128x512xf32, #tpu.memory_space<vmem>>, vector<8x512xf32>
    tpu.vector_store %arg7[%c8, %c0_12], %45 {strides = array<i32>} : memref<128x512xf32, #tpu.memory_space<vmem>>, vector<8x512xf32>,
    %47 = vector.extract_strided_slice %6 {offsets = [0, 37], sizes = [1, 512], strides = [1, 1]} : vector<1x640xf32> to vector<1x512xf32>
    %48 = vector.extract_strided_slice %6 {offsets = [0, 38], sizes = [1, 512], strides = [1, 1]} : vector<1x640xf32> to vector<1x512xf32>
    %49 = vector.extract_strided_slice %6 {offsets = [0, 39], sizes = [1, 512], strides = [1, 1]} : vector<1x640xf32> to vector<1x512xf32>
    %50 = vector.extract_strided_slice %6 {offsets = [0, 40], sizes = [1, 512], strides = [1, 1]} : vector<1x640xf32> to vector<1x512xf32>
    %51 = vector.extract_strided_slice %6 {offsets = [0, 48], sizes = [1, 512], strides = [1, 1]} : vector<1x640xf32> to vector<1x512xf32>
    %52 = vector.extract_strided_slice %6 {offsets = [0, 49], sizes = [1, 512], strides = [1, 1]} : vector<1x640xf32> to vector<1x512xf32>
    %53 = vector.extract_strided_slice %6 {offsets = [0, 50], sizes = [1, 512], strides = [1, 1]} : vector<1x640xf32> to vector<1x512xf32>
    %54 = vector.extract_strided_slice %6 {offsets = [0, 51], sizes = [1, 512], strides = [1, 1]} : vector<1x640xf32> to vector<1x512xf32>
    %55 = tpu.concatenate %47, %48, %49, %50, %51, %52, %53, %54 in 0 : vector<1x512xf32>, vector<1x512xf32>, vector<1x512xf32>, vector<1x512xf32>, vector<1x512xf32>, vector<1x512xf32>, vector<1x512xf32>, vector<1x512xf32> -> vector<8x512xf32>
    %c16 = arith.constant 16 : index
    %c0_13 = arith.constant 0 : index
    %56 = vector.load %arg7[%c16, %c0_13] : memref<128x512xf32, #tpu.memory_space<vmem>>, vector<8x512xf32>
    tpu.vector_store %arg7[%c16, %c0_13], %55 {strides = array<i32>} : memref<128x512xf32, #tpu.memory_space<vmem>>, vector<8x512xf32>,
    %57 = vector.extract_strided_slice %6 {offsets = [0, 52], sizes = [1, 512], strides = [1, 1]} : vector<1x640xf32> to vector<1x512xf32>
    %58 = vector.extract_strided_slice %11 {offsets = [0, 0], sizes = [1, 512], strides = [1, 1]} : vector<1x640xf32> to vector<1x512xf32>
    %59 = vector.extract_strided_slice %11 {offsets = [0, 1], sizes = [1, 512], strides = [1, 1]} : vector<1x640xf32> to vector<1x512xf32>
    %60 = vector.extract_strided_slice %11 {offsets = [0, 2], sizes = [1, 512], strides = [1, 1]} : vector<1x640xf32> to vector<1x512xf32>
    %61 = vector.extract_strided_slice %11 {offsets = [0, 3], sizes = [1, 512], strides = [1, 1]} : vector<1x640xf32> to vector<1x512xf32>
    %62 = vector.extract_strided_slice %11 {offsets = [0, 4], sizes = [1, 512], strides = [1, 1]} : vector<1x640xf32> to vector<1x512xf32>
    %63 = vector.extract_strided_slice %11 {offsets = [0, 12], sizes = [1, 512], strides = [1, 1]} : vector<1x640xf32> to vector<1x512xf32>
    %64 = vector.extract_strided_slice %11 {offsets = [0, 13], sizes = [1, 512], strides = [1, 1]} : vector<1x640xf32> to vector<1x512xf32>
    %65 = tpu.concatenate %57, %58, %59, %60, %61, %62, %63, %64 in 0 : vector<1x512xf32>, vector<1x512xf32>, vector<1x512xf32>, vector<1x512xf32>, vector<1x512xf32>, vector<1x512xf32>, vector<1x512xf32>, vector<1x512xf32> -> vector<8x512xf32>
    %c24 = arith.constant 24 : index
    %c0_14 = arith.constant 0 : index
    %66 = vector.load %arg7[%c24, %c0_14] : memref<128x512xf32, #tpu.memory_space<vmem>>, vector<8x512xf32>
    tpu.vector_store %arg7[%c24, %c0_14], %65 {strides = array<i32>} : memref<128x512xf32, #tpu.memory_space<vmem>>, vector<8x512xf32>,
    %67 = vector.extract_strided_slice %11 {offsets = [0, 14], sizes = [1, 512], strides = [1, 1]} : vector<1x640xf32> to vector<1x512xf32>
    %68 = vector.extract_strided_slice %11 {offsets = [0, 15], sizes = [1, 512], strides = [1, 1]} : vector<1x640xf32> to vector<1x512xf32>
    %69 = vector.extract_strided_slice %11 {offsets = [0, 16], sizes = [1, 512], strides = [1, 1]} : vector<1x640xf32> to vector<1x512xf32>
    %70 = vector.extract_strided_slice %11 {offsets = [0, 24], sizes = [1, 512], strides = [1, 1]} : vector<1x640xf32> to vector<1x512xf32>
    %71 = vector.extract_strided_slice %11 {offsets = [0, 25], sizes = [1, 512], strides = [1, 1]} : vector<1x640xf32> to vector<1x512xf32>
    %72 = vector.extract_strided_slice %11 {offsets = [0, 26], sizes = [1, 512], strides = [1, 1]} : vector<1x640xf32> to vector<1x512xf32>
    %73 = vector.extract_strided_slice %11 {offsets = [0, 27], sizes = [1, 512], strides = [1, 1]} : vector<1x640xf32> to vector<1x512xf32>
    %74 = vector.extract_strided_slice %11 {offsets = [0, 28], sizes = [1, 512], strides = [1, 1]} : vector<1x640xf32> to vector<1x512xf32>
    %75 = tpu.concatenate %67, %68, %69, %70, %71, %72, %73, %74 in 0 : vector<1x512xf32>, vector<1x512xf32>, vector<1x512xf32>, vector<1x512xf32>, vector<1x512xf32>, vector<1x512xf32>, vector<1x512xf32>, vector<1x512xf32> -> vector<8x512xf32>
    %c32 = arith.constant 32 : index
    %c0_15 = arith.constant 0 : index
    %76 = vector.load %arg7[%c32, %c0_15] : memref<128x512xf32, #tpu.memory_space<vmem>>, vector<8x512xf32>
    tpu.vector_store %arg7[%c32, %c0_15], %75 {strides = array<i32>} : memref<128x512xf32, #tpu.memory_space<vmem>>, vector<8x512xf32>,
    %77 = vector.extract_strided_slice %11 {offsets = [0, 36], sizes = [1, 512], strides = [1, 1]} : vector<1x640xf32> to vector<1x512xf32>
    %78 = vector.extract_strided_slice %11 {offsets = [0, 37], sizes = [1, 512], strides = [1, 1]} : vector<1x640xf32> to vector<1x512xf32>
    %79 = vector.extract_strided_slice %11 {offsets = [0, 38], sizes = [1, 512], strides = [1, 1]} : vector<1x640xf32> to vector<1x512xf32>
    %80 = vector.extract_strided_slice %11 {offsets = [0, 39], sizes = [1, 512], strides = [1, 1]} : vector<1x640xf32> to vector<1x512xf32>
    %81 = vector.extract_strided_slice %11 {offsets = [0, 40], sizes = [1, 512], strides = [1, 1]} : vector<1x640xf32> to vector<1x512xf32>
    %82 = vector.extract_strided_slice %11 {offsets = [0, 48], sizes = [1, 512], strides = [1, 1]} : vector<1x640xf32> to vector<1x512xf32>
    %83 = vector.extract_strided_slice %11 {offsets = [0, 49], sizes = [1, 512], strides = [1, 1]} : vector<1x640xf32> to vector<1x512xf32>
    %84 = vector.extract_strided_slice %11 {offsets = [0, 50], sizes = [1, 512], strides = [1, 1]} : vector<1x640xf32> to vector<1x512xf32>
    %85 = tpu.concatenate %77, %78, %79, %80, %81, %82, %83, %84 in 0 : vector<1x512xf32>, vector<1x512xf32>, vector<1x512xf32>, vector<1x512xf32>, vector<1x512xf32>, vector<1x512xf32>, vector<1x512xf32>, vector<1x512xf32> -> vector<8x512xf32>
    %c40 = arith.constant 40 : index
    %c0_16 = arith.constant 0 : index
    %86 = vector.load %arg7[%c40, %c0_16] : memref<128x512xf32, #tpu.memory_space<vmem>>, vector<8x512xf32>
    tpu.vector_store %arg7[%c40, %c0_16], %85 {strides = array<i32>} : memref<128x512xf32, #tpu.memory_space<vmem>>, vector<8x512xf32>,
    %87 = vector.extract_strided_slice %11 {offsets = [0, 51], sizes = [1, 512], strides = [1, 1]} : vector<1x640xf32> to vector<1x512xf32>
    %88 = vector.extract_strided_slice %11 {offsets = [0, 52], sizes = [1, 512], strides = [1, 1]} : vector<1x640xf32> to vector<1x512xf32>
    %89 = vector.extract_strided_slice %16 {offsets = [0, 0], sizes = [1, 512], strides = [1, 1]} : vector<1x640xf32> to vector<1x512xf32>
    %90 = vector.extract_strided_slice %16 {offsets = [0, 1], sizes = [1, 512], strides = [1, 1]} : vector<1x640xf32> to vector<1x512xf32>
    %91 = vector.extract_strided_slice %16 {offsets = [0, 2], sizes = [1, 512], strides = [1, 1]} : vector<1x640xf32> to vector<1x512xf32>
    %92 = vector.extract_strided_slice %16 {offsets = [0, 3], sizes = [1, 512], strides = [1, 1]} : vector<1x640xf32> to vector<1x512xf32>
    %93 = vector.extract_strided_slice %16 {offsets = [0, 4], sizes = [1, 512], strides = [1, 1]} : vector<1x640xf32> to vector<1x512xf32>
    %94 = vector.extract_strided_slice %16 {offsets = [0, 12], sizes = [1, 512], strides = [1, 1]} : vector<1x640xf32> to vector<1x512xf32>
    %95 = tpu.concatenate %87, %88, %89, %90, %91, %92, %93, %94 in 0 : vector<1x512xf32>, vector<1x512xf32>, vector<1x512xf32>, vector<1x512xf32>, vector<1x512xf32>, vector<1x512xf32>, vector<1x512xf32>, vector<1x512xf32> -> vector<8x512xf32>
    %c48 = arith.constant 48 : index
    %c0_17 = arith.constant 0 : index
    %96 = vector.load %arg7[%c48, %c0_17] : memref<128x512xf32, #tpu.memory_space<vmem>>, vector<8x512xf32>
    tpu.vector_store %arg7[%c48, %c0_17], %95 {strides = array<i32>} : memref<128x512xf32, #tpu.memory_space<vmem>>, vector<8x512xf32>,
    %97 = vector.extract_strided_slice %16 {offsets = [0, 13], sizes = [1, 512], strides = [1, 1]} : vector<1x640xf32> to vector<1x512xf32>
    %98 = vector.extract_strided_slice %16 {offsets = [0, 14], sizes = [1, 512], strides = [1, 1]} : vector<1x640xf32> to vector<1x512xf32>
    %99 = vector.extract_strided_slice %16 {offsets = [0, 15], sizes = [1, 512], strides = [1, 1]} : vector<1x640xf32> to vector<1x512xf32>
    %100 = vector.extract_strided_slice %16 {offsets = [0, 16], sizes = [1, 512], strides = [1, 1]} : vector<1x640xf32> to vector<1x512xf32>
    %101 = vector.extract_strided_slice %16 {offsets = [0, 24], sizes = [1, 512], strides = [1, 1]} : vector<1x640xf32> to vector<1x512xf32>
    %102 = vector.extract_strided_slice %16 {offsets = [0, 25], sizes = [1, 512], strides = [1, 1]} : vector<1x640xf32> to vector<1x512xf32>
    %103 = vector.extract_strided_slice %16 {offsets = [0, 26], sizes = [1, 512], strides = [1, 1]} : vector<1x640xf32> to vector<1x512xf32>
    %104 = vector.extract_strided_slice %16 {offsets = [0, 27], sizes = [1, 512], strides = [1, 1]} : vector<1x640xf32> to vector<1x512xf32>
    %105 = tpu.concatenate %97, %98, %99, %100, %101, %102, %103, %104 in 0 : vector<1x512xf32>, vector<1x512xf32>, vector<1x512xf32>, vector<1x512xf32>, vector<1x512xf32>, vector<1x512xf32>, vector<1x512xf32>, vector<1x512xf32> -> vector<8x512xf32>
    %c56 = arith.constant 56 : index
    %c0_18 = arith.constant 0 : index
    %106 = vector.load %arg7[%c56, %c0_18] : memref<128x512xf32, #tpu.memory_space<vmem>>, vector<8x512xf32>
    tpu.vector_store %arg7[%c56, %c0_18], %105 {strides = array<i32>} : memref<128x512xf32, #tpu.memory_space<vmem>>, vector<8x512xf32>,
    %107 = vector.extract_strided_slice %16 {offsets = [0, 28], sizes = [1, 512], strides = [1, 1]} : vector<1x640xf32> to vector<1x512xf32>
    %108 = vector.extract_strided_slice %16 {offsets = [0, 36], sizes = [1, 512], strides = [1, 1]} : vector<1x640xf32> to vector<1x512xf32>
    %109 = vector.extract_strided_slice %16 {offsets = [0, 37], sizes = [1, 512], strides = [1, 1]} : vector<1x640xf32> to vector<1x512xf32>
    %110 = vector.extract_strided_slice %16 {offsets = [0, 38], sizes = [1, 512], strides = [1, 1]} : vector<1x640xf32> to vector<1x512xf32>
    %111 = vector.extract_strided_slice %16 {offsets = [0, 39], sizes = [1, 512], strides = [1, 1]} : vector<1x640xf32> to vector<1x512xf32>
    %112 = vector.extract_strided_slice %16 {offsets = [0, 40], sizes = [1, 512], strides = [1, 1]} : vector<1x640xf32> to vector<1x512xf32>
    %113 = vector.extract_strided_slice %16 {offsets = [0, 48], sizes = [1, 512], strides = [1, 1]} : vector<1x640xf32> to vector<1x512xf32>
    %114 = vector.extract_strided_slice %16 {offsets = [0, 49], sizes = [1, 512], strides = [1, 1]} : vector<1x640xf32> to vector<1x512xf32>
    %115 = tpu.concatenate %107, %108, %109, %110, %111, %112, %113, %114 in 0 : vector<1x512xf32>, vector<1x512xf32>, vector<1x512xf32>, vector<1x512xf32>, vector<1x512xf32>, vector<1x512xf32>, vector<1x512xf32>, vector<1x512xf32> -> vector<8x512xf32>
    %c64 = arith.constant 64 : index
    %c0_19 = arith.constant 0 : index
    %116 = vector.load %arg7[%c64, %c0_19] : memref<128x512xf32, #tpu.memory_space<vmem>>, vector<8x512xf32>
    tpu.vector_store %arg7[%c64, %c0_19], %115 {strides = array<i32>} : memref<128x512xf32, #tpu.memory_space<vmem>>, vector<8x512xf32>,
    %117 = vector.extract_strided_slice %16 {offsets = [0, 50], sizes = [1, 512], strides = [1, 1]} : vector<1x640xf32> to vector<1x512xf32>
    %118 = vector.extract_strided_slice %16 {offsets = [0, 51], sizes = [1, 512], strides = [1, 1]} : vector<1x640xf32> to vector<1x512xf32>
    %119 = vector.extract_strided_slice %16 {offsets = [0, 52], sizes = [1, 512], strides = [1, 1]} : vector<1x640xf32> to vector<1x512xf32>
    %120 = vector.extract_strided_slice %21 {offsets = [0, 0], sizes = [1, 512], strides = [1, 1]} : vector<1x640xf32> to vector<1x512xf32>
    %121 = vector.extract_strided_slice %21 {offsets = [0, 1], sizes = [1, 512], strides = [1, 1]} : vector<1x640xf32> to vector<1x512xf32>
    %122 = vector.extract_strided_slice %21 {offsets = [0, 2], sizes = [1, 512], strides = [1, 1]} : vector<1x640xf32> to vector<1x512xf32>
    %123 = vector.extract_strided_slice %21 {offsets = [0, 3], sizes = [1, 512], strides = [1, 1]} : vector<1x640xf32> to vector<1x512xf32>
    %124 = vector.extract_strided_slice %21 {offsets = [0, 4], sizes = [1, 512], strides = [1, 1]} : vector<1x640xf32> to vector<1x512xf32>
    %125 = tpu.concatenate %117, %118, %119, %120, %121, %122, %123, %124 in 0 : vector<1x512xf32>, vector<1x512xf32>, vector<1x512xf32>, vector<1x512xf32>, vector<1x512xf32>, vector<1x512xf32>, vector<1x512xf32>, vector<1x512xf32> -> vector<8x512xf32>
    %c72 = arith.constant 72 : index
    %c0_20 = arith.constant 0 : index
    %126 = vector.load %arg7[%c72, %c0_20] : memref<128x512xf32, #tpu.memory_space<vmem>>, vector<8x512xf32>
    tpu.vector_store %arg7[%c72, %c0_20], %125 {strides = array<i32>} : memref<128x512xf32, #tpu.memory_space<vmem>>, vector<8x512xf32>,
    %127 = vector.extract_strided_slice %21 {offsets = [0, 12], sizes = [1, 512], strides = [1, 1]} : vector<1x640xf32> to vector<1x512xf32>
    %128 = vector.extract_strided_slice %21 {offsets = [0, 13], sizes = [1, 512], strides = [1, 1]} : vector<1x640xf32> to vector<1x512xf32>
    %129 = vector.extract_strided_slice %21 {offsets = [0, 14], sizes = [1, 512], strides = [1, 1]} : vector<1x640xf32> to vector<1x512xf32>
    %130 = vector.extract_strided_slice %21 {offsets = [0, 15], sizes = [1, 512], strides = [1, 1]} : vector<1x640xf32> to vector<1x512xf32>
    %131 = vector.extract_strided_slice %21 {offsets = [0, 16], sizes = [1, 512], strides = [1, 1]} : vector<1x640xf32> to vector<1x512xf32>
    %132 = vector.extract_strided_slice %21 {offsets = [0, 24], sizes = [1, 512], strides = [1, 1]} : vector<1x640xf32> to vector<1x512xf32>
    %133 = vector.extract_strided_slice %21 {offsets = [0, 25], sizes = [1, 512], strides = [1, 1]} : vector<1x640xf32> to vector<1x512xf32>
    %134 = vector.extract_strided_slice %21 {offsets = [0, 26], sizes = [1, 512], strides = [1, 1]} : vector<1x640xf32> to vector<1x512xf32>
    %135 = tpu.concatenate %127, %128, %129, %130, %131, %132, %133, %134 in 0 : vector<1x512xf32>, vector<1x512xf32>, vector<1x512xf32>, vector<1x512xf32>, vector<1x512xf32>, vector<1x512xf32>, vector<1x512xf32>, vector<1x512xf32> -> vector<8x512xf32>
    %c80 = arith.constant 80 : index
    %c0_21 = arith.constant 0 : index
    %136 = vector.load %arg7[%c80, %c0_21] : memref<128x512xf32, #tpu.memory_space<vmem>>, vector<8x512xf32>
    tpu.vector_store %arg7[%c80, %c0_21], %135 {strides = array<i32>} : memref<128x512xf32, #tpu.memory_space<vmem>>, vector<8x512xf32>,
    %137 = vector.extract_strided_slice %21 {offsets = [0, 27], sizes = [1, 512], strides = [1, 1]} : vector<1x640xf32> to vector<1x512xf32>
    %138 = vector.extract_strided_slice %21 {offsets = [0, 28], sizes = [1, 512], strides = [1, 1]} : vector<1x640xf32> to vector<1x512xf32>
    %139 = vector.extract_strided_slice %21 {offsets = [0, 36], sizes = [1, 512], strides = [1, 1]} : vector<1x640xf32> to vector<1x512xf32>
    %140 = vector.extract_strided_slice %21 {offsets = [0, 37], sizes = [1, 512], strides = [1, 1]} : vector<1x640xf32> to vector<1x512xf32>
    %141 = vector.extract_strided_slice %21 {offsets = [0, 38], sizes = [1, 512], strides = [1, 1]} : vector<1x640xf32> to vector<1x512xf32>
    %142 = vector.extract_strided_slice %21 {offsets = [0, 39], sizes = [1, 512], strides = [1, 1]} : vector<1x640xf32> to vector<1x512xf32>
    %143 = vector.extract_strided_slice %21 {offsets = [0, 40], sizes = [1, 512], strides = [1, 1]} : vector<1x640xf32> to vector<1x512xf32>
    %144 = vector.extract_strided_slice %21 {offsets = [0, 48], sizes = [1, 512], strides = [1, 1]} : vector<1x640xf32> to vector<1x512xf32>
    %145 = tpu.concatenate %137, %138, %139, %140, %141, %142, %143, %144 in 0 : vector<1x512xf32>, vector<1x512xf32>, vector<1x512xf32>, vector<1x512xf32>, vector<1x512xf32>, vector<1x512xf32>, vector<1x512xf32>, vector<1x512xf32> -> vector<8x512xf32>
    %c88 = arith.constant 88 : index
    %c0_22 = arith.constant 0 : index
    %146 = vector.load %arg7[%c88, %c0_22] : memref<128x512xf32, #tpu.memory_space<vmem>>, vector<8x512xf32>
    tpu.vector_store %arg7[%c88, %c0_22], %145 {strides = array<i32>} : memref<128x512xf32, #tpu.memory_space<vmem>>, vector<8x512xf32>,
    %147 = vector.extract_strided_slice %21 {offsets = [0, 49], sizes = [1, 512], strides = [1, 1]} : vector<1x640xf32> to vector<1x512xf32>
    %148 = vector.extract_strided_slice %21 {offsets = [0, 50], sizes = [1, 512], strides = [1, 1]} : vector<1x640xf32> to vector<1x512xf32>
    %149 = vector.extract_strided_slice %21 {offsets = [0, 51], sizes = [1, 512], strides = [1, 1]} : vector<1x640xf32> to vector<1x512xf32>
    %150 = vector.extract_strided_slice %21 {offsets = [0, 52], sizes = [1, 512], strides = [1, 1]} : vector<1x640xf32> to vector<1x512xf32>
    %151 = vector.extract_strided_slice %26 {offsets = [0, 0], sizes = [1, 512], strides = [1, 1]} : vector<1x640xf32> to vector<1x512xf32>
    %152 = vector.extract_strided_slice %26 {offsets = [0, 1], sizes = [1, 512], strides = [1, 1]} : vector<1x640xf32> to vector<1x512xf32>
    %153 = vector.extract_strided_slice %26 {offsets = [0, 2], sizes = [1, 512], strides = [1, 1]} : vector<1x640xf32> to vector<1x512xf32>
    %154 = vector.extract_strided_slice %26 {offsets = [0, 3], sizes = [1, 512], strides = [1, 1]} : vector<1x640xf32> to vector<1x512xf32>
    %155 = tpu.concatenate %147, %148, %149, %150, %151, %152, %153, %154 in 0 : vector<1x512xf32>, vector<1x512xf32>, vector<1x512xf32>, vector<1x512xf32>, vector<1x512xf32>, vector<1x512xf32>, vector<1x512xf32>, vector<1x512xf32> -> vector<8x512xf32>
    %c96 = arith.constant 96 : index
    %c0_23 = arith.constant 0 : index
    %156 = vector.load %arg7[%c96, %c0_23] : memref<128x512xf32, #tpu.memory_space<vmem>>, vector<8x512xf32>
    tpu.vector_store %arg7[%c96, %c0_23], %155 {strides = array<i32>} : memref<128x512xf32, #tpu.memory_space<vmem>>, vector<8x512xf32>,
    %157 = vector.extract_strided_slice %26 {offsets = [0, 4], sizes = [1, 512], strides = [1, 1]} : vector<1x640xf32> to vector<1x512xf32>
    %158 = vector.extract_strided_slice %26 {offsets = [0, 12], sizes = [1, 512], strides = [1, 1]} : vector<1x640xf32> to vector<1x512xf32>
    %159 = vector.extract_strided_slice %26 {offsets = [0, 13], sizes = [1, 512], strides = [1, 1]} : vector<1x640xf32> to vector<1x512xf32>
    %160 = vector.extract_strided_slice %26 {offsets = [0, 14], sizes = [1, 512], strides = [1, 1]} : vector<1x640xf32> to vector<1x512xf32>
    %161 = vector.extract_strided_slice %26 {offsets = [0, 15], sizes = [1, 512], strides = [1, 1]} : vector<1x640xf32> to vector<1x512xf32>
    %162 = vector.extract_strided_slice %26 {offsets = [0, 16], sizes = [1, 512], strides = [1, 1]} : vector<1x640xf32> to vector<1x512xf32>
    %163 = vector.extract_strided_slice %26 {offsets = [0, 24], sizes = [1, 512], strides = [1, 1]} : vector<1x640xf32> to vector<1x512xf32>
    %164 = vector.extract_strided_slice %26 {offsets = [0, 25], sizes = [1, 512], strides = [1, 1]} : vector<1x640xf32> to vector<1x512xf32>
    %165 = tpu.concatenate %157, %158, %159, %160, %161, %162, %163, %164 in 0 : vector<1x512xf32>, vector<1x512xf32>, vector<1x512xf32>, vector<1x512xf32>, vector<1x512xf32>, vector<1x512xf32>, vector<1x512xf32>, vector<1x512xf32> -> vector<8x512xf32>
    %c104 = arith.constant 104 : index
    %c0_24 = arith.constant 0 : index
    %166 = vector.load %arg7[%c104, %c0_24] : memref<128x512xf32, #tpu.memory_space<vmem>>, vector<8x512xf32>
    tpu.vector_store %arg7[%c104, %c0_24], %165 {strides = array<i32>} : memref<128x512xf32, #tpu.memory_space<vmem>>, vector<8x512xf32>,
    %167 = vector.extract_strided_slice %26 {offsets = [0, 26], sizes = [1, 512], strides = [1, 1]} : vector<1x640xf32> to vector<1x512xf32>
    %168 = vector.extract_strided_slice %26 {offsets = [0, 27], sizes = [1, 512], strides = [1, 1]} : vector<1x640xf32> to vector<1x512xf32>
    %169 = vector.extract_strided_slice %26 {offsets = [0, 28], sizes = [1, 512], strides = [1, 1]} : vector<1x640xf32> to vector<1x512xf32>
    %170 = vector.extract_strided_slice %26 {offsets = [0, 36], sizes = [1, 512], strides = [1, 1]} : vector<1x640xf32> to vector<1x512xf32>
    %171 = vector.extract_strided_slice %26 {offsets = [0, 37], sizes = [1, 512], strides = [1, 1]} : vector<1x640xf32> to vector<1x512xf32>
    %172 = vector.extract_strided_slice %26 {offsets = [0, 38], sizes = [1, 512], strides = [1, 1]} : vector<1x640xf32> to vector<1x512xf32>
    %173 = vector.extract_strided_slice %26 {offsets = [0, 39], sizes = [1, 512], strides = [1, 1]} : vector<1x640xf32> to vector<1x512xf32>
    %174 = vector.extract_strided_slice %26 {offsets = [0, 40], sizes = [1, 512], strides = [1, 1]} : vector<1x640xf32> to vector<1x512xf32>
    %175 = tpu.concatenate %167, %168, %169, %170, %171, %172, %173, %174 in 0 : vector<1x512xf32>, vector<1x512xf32>, vector<1x512xf32>, vector<1x512xf32>, vector<1x512xf32>, vector<1x512xf32>, vector<1x512xf32>, vector<1x512xf32> -> vector<8x512xf32>
    %c112 = arith.constant 112 : index
    %c0_25 = arith.constant 0 : index
    %176 = vector.load %arg7[%c112, %c0_25] : memref<128x512xf32, #tpu.memory_space<vmem>>, vector<8x512xf32>
    tpu.vector_store %arg7[%c112, %c0_25], %175 {strides = array<i32>} : memref<128x512xf32, #tpu.memory_space<vmem>>, vector<8x512xf32>,
    %177 = vector.extract_strided_slice %26 {offsets = [0, 48], sizes = [1, 512], strides = [1, 1]} : vector<1x640xf32> to vector<1x512xf32>
    %178 = vector.extract_strided_slice %26 {offsets = [0, 49], sizes = [1, 512], strides = [1, 1]} : vector<1x640xf32> to vector<1x512xf32>
    %179 = vector.extract_strided_slice %26 {offsets = [0, 50], sizes = [1, 512], strides = [1, 1]} : vector<1x640xf32> to vector<1x512xf32>
    %180 = vector.extract_strided_slice %26 {offsets = [0, 51], sizes = [1, 512], strides = [1, 1]} : vector<1x640xf32> to vector<1x512xf32>
    %181 = vector.extract_strided_slice %26 {offsets = [0, 52], sizes = [1, 512], strides = [1, 1]} : vector<1x640xf32> to vector<1x512xf32>
    %cst = arith.constant 0.000000e+00 : f32
    %182 = vector.broadcast %cst : f32 to vector<1x512xf32>
    %cst_26 = arith.constant 0.000000e+00 : f32
    %183 = vector.broadcast %cst_26 : f32 to vector<1x512xf32>
    %cst_27 = arith.constant 0.000000e+00 : f32
    %184 = vector.broadcast %cst_27 : f32 to vector<1x512xf32>
    %185 = tpu.concatenate %177, %178, %179, %180, %181, %182, %183, %184 in 0 : vector<1x512xf32>, vector<1x512xf32>, vector<1x512xf32>, vector<1x512xf32>, vector<1x512xf32>, vector<1x512xf32>, vector<1x512xf32>, vector<1x512xf32> -> vector<8x512xf32>
    %c120 = arith.constant 120 : index
    %c0_28 = arith.constant 0 : index
    %186 = vector.load %arg7[%c120, %c0_28] : memref<128x512xf32, #tpu.memory_space<vmem>>, vector<8x512xf32>
    tpu.vector_store %arg7[%c120, %c0_28], %185 {strides = array<i32>} : memref<128x512xf32, #tpu.memory_space<vmem>>, vector<8x512xf32>,
    %c0_29 = arith.constant 0 : index
    %c0_30 = arith.constant 0 : index
    %187 = vector.load %arg3[%c0_29, %c0_30] : memref<8x128xf32, #tpu.memory_space<vmem>>, vector<8x128xf32>
    %c0_31 = arith.constant 0 : index
    %c0_32 = arith.constant 0 : index
    %188 = vector.load %arg7[%c0_31, %c0_32] : memref<128x512xf32, #tpu.memory_space<vmem>>, vector<128x512xf32>
    %cst_33 = arith.constant dense<0.000000e+00> : vector<8x512xf32>
    %189 = tpu.matmul %187, %188, %cst_33 {dimension_numbers = #tpu.dot_dimension_numbers<[1], [0], [0], [1], [0, 0, 1, 1], [], []>} : vector<8x128xf32>, vector<128x512xf32>, vector<8x512xf32> -> vector<8x512xf32>
    %c0_34 = arith.constant 0 : index
    %c0_35 = arith.constant 0 : index
    %c0_36 = arith.constant 0 : index
    %190 = vector.load %arg5[%c0_34, %c0_35, %c0_36] : memref<1x8x512xf32, #tpu.memory_space<vmem>>, vector<1x8x512xf32>
    %191 = vector.shape_cast %190 : vector<1x8x512xf32> to vector<8x512xf32>
    %192 = vector.shape_cast %189 : vector<8x512xf32> to vector<1x8x512xf32>
    tpu.vector_store %arg5[%c0_34, %c0_35, %c0_36], %192 {strides = array<i32>} : memref<1x8x512xf32, #tpu.memory_space<vmem>>, vector<1x8x512xf32>,
    %c0_37 = arith.constant 0 : index
    %c0_38 = arith.constant 0 : index
    %193 = vector.load %arg4[%c0_37, %c0_38] : memref<1x512xf32, #tpu.memory_space<vmem>>, vector<1x512xf32>
    %194 = vector.broadcast %193 : vector<1x512xf32> to vector<8x512xf32>
    %195 = arith.mulf %189, %194 : vector<8x512xf32>
    %cst_39 = arith.constant dense<0.000000e+00> : vector<8xf32>
    %196 = vector.multi_reduction <add>, %195, %cst_39 [1] : vector<8x512xf32> to vector<8xf32>
    %197 = arith.mulf %195, %189 : vector<8x512xf32>
    %cst_40 = arith.constant dense<0.000000e+00> : vector<8xf32>
    %198 = vector.multi_reduction <add>, %197, %cst_40 [1] : vector<8x512xf32> to vector<8xf32>
    %199 = vector.shape_cast %196 : vector<8xf32> to vector<1x8xf32>
    %200 = vector.shape_cast %198 : vector<8xf32> to vector<1x8xf32>
    %201 = tpu.concatenate %199, %200 in 0 : vector<1x8xf32>, vector<1x8xf32> -> vector<2x8xf32>
    %c0_41 = arith.constant 0 : index
    %c0_42 = arith.constant 0 : index
    %c0_43 = arith.constant 0 : index
    %c0_44 = arith.constant 0 : index
    %202 = vector.load %arg6[%c0_41, %c0_42, %c0_43, %c0_44] : memref<1x1x2x8xf32, #tpu.memory_space<vmem>>, vector<1x1x2x8xf32>
    %203 = vector.shape_cast %202 : vector<1x1x2x8xf32> to vector<2x8xf32>
    %204 = vector.shape_cast %201 : vector<2x8xf32> to vector<1x1x2x8xf32>
    tpu.vector_store %arg6[%c0_41, %c0_42, %c0_43, %c0_44], %204 {strides = array<i32>} : memref<1x1x2x8xf32, #tpu.memory_space<vmem>>, vector<1x1x2x8xf32>,
    return
  }
  func.func @transform_0(%arg0: i32, %arg1: i32) -> (i32, i32, i32) {
    %c0_i32 = arith.constant 0 : i32
    %c0_i32_0 = arith.constant 0 : i32
    %c0_i32_1 = arith.constant 0 : i32
    return %arg0, %c0_i32, %c0_i32_0 : i32, i32, i32
  }
  func.func @transform_1(%arg0: i32, %arg1: i32) -> (i32, i32) {
    %c0_i32 = arith.constant 0 : i32
    %c0_i32_0 = arith.constant 0 : i32
    %c0_i32_1 = arith.constant 0 : i32
    return %c0_i32, %c0_i32_0 : i32, i32
  }
  func.func @transform_2(%arg0: i32, %arg1: i32) -> (i32, i32) {
    %c0_i32 = arith.constant 0 : i32
    %c0_i32_0 = arith.constant 0 : i32
    return %c0_i32, %arg1 : i32, i32
  }
  func.func @transform_3(%arg0: i32, %arg1: i32) -> (i32, i32, i32) {
    %c0_i32 = arith.constant 0 : i32
    %c0_i32_0 = arith.constant 0 : i32
    return %arg0, %c0_i32, %arg1 : i32, i32, i32
  }
  func.func @transform_4(%arg0: i32, %arg1: i32) -> (i32, i32, i32, i32) {
    %c0_i32 = arith.constant 0 : i32
    %c0_i32_0 = arith.constant 0 : i32
    %c0_i32_1 = arith.constant 0 : i32
    return %arg0, %arg1, %c0_i32, %c0_i32_0 : i32, i32, i32, i32
  }
}

module attributes {stable_mosaic.version = 11 : i64} {
  func.func @bn_relu_kernel(%arg0: i32, %arg1: i32, %arg2: memref<1x8x512xf32, #tpu.memory_space<vmem>>, %arg3: memref<2x8x1xf32, #tpu.memory_space<vmem>>, %arg4: memref<1x8x512xf32, #tpu.memory_space<vmem>>) attributes {dimension_semantics = [#tpu.dimension_semantics<parallel>, #tpu.dimension_semantics<parallel>], iteration_bounds = array<i64: 2, 4>, scalar_prefetch = 0 : i64, scratch_operands = 0 : i64, tpu.core_type = #tpu.core_type<tc>, window_params = [{transform_indices = @transform_0, window_bounds = array<i64: 1, 8, 512>}, {pipeline_mode = #tpu.pipeline_mode<synchronous>, transform_indices = @transform_1, window_bounds = array<i64: 2, 8, 1>}, {transform_indices = @transform_2, window_bounds = array<i64: 1, 8, 512>}]} {
    %c0 = arith.constant 0 : index
    %c0_0 = arith.constant 0 : index
    %c0_1 = arith.constant 0 : index
    %0 = vector.load %arg2[%c0, %c0_0, %c0_1] : memref<1x8x512xf32, #tpu.memory_space<vmem>>, vector<1x8x512xf32>
    %1 = vector.shape_cast %0 : vector<1x8x512xf32> to vector<8x512xf32>
    %c0_2 = arith.constant 0 : index
    %c0_3 = arith.constant 0 : index
    %c0_4 = arith.constant 0 : index
    %2 = vector.load %arg3[%c0_2, %c0_3, %c0_4] : memref<2x8x1xf32, #tpu.memory_space<vmem>>, vector<1x8x1xf32>
    %3 = vector.shape_cast %2 : vector<1x8x1xf32> to vector<8x1xf32>
    %c1 = arith.constant 1 : index
    %c0_5 = arith.constant 0 : index
    %c0_6 = arith.constant 0 : index
    %4 = vector.load %arg3[%c1, %c0_5, %c0_6] : memref<2x8x1xf32, #tpu.memory_space<vmem>>, vector<1x8x1xf32>
    %5 = vector.shape_cast %4 : vector<1x8x1xf32> to vector<8x1xf32>
    %6 = vector.broadcast %3 : vector<8x1xf32> to vector<8x512xf32>
    %7 = arith.mulf %1, %6 : vector<8x512xf32>
    %8 = vector.broadcast %5 : vector<8x1xf32> to vector<8x512xf32>
    %9 = arith.addf %7, %8 : vector<8x512xf32>
    %cst = arith.constant 0.000000e+00 : f32
    %10 = vector.broadcast %cst : f32 to vector<8x512xf32>
    %11 = arith.maximumf %9, %10 : vector<8x512xf32>
    %c0_7 = arith.constant 0 : index
    %c0_8 = arith.constant 0 : index
    %c0_9 = arith.constant 0 : index
    %12 = vector.load %arg4[%c0_7, %c0_8, %c0_9] : memref<1x8x512xf32, #tpu.memory_space<vmem>>, vector<1x8x512xf32>
    %13 = vector.shape_cast %12 : vector<1x8x512xf32> to vector<8x512xf32>
    %14 = vector.shape_cast %11 : vector<8x512xf32> to vector<1x8x512xf32>
    tpu.vector_store %arg4[%c0_7, %c0_8, %c0_9], %14 {strides = array<i32>} : memref<1x8x512xf32, #tpu.memory_space<vmem>>, vector<1x8x512xf32>,
    return
  }
  func.func @transform_0(%arg0: i32, %arg1: i32) -> (i32, i32, i32) {
    %c0_i32 = arith.constant 0 : i32
    %c0_i32_0 = arith.constant 0 : i32
    return %arg0, %c0_i32, %arg1 : i32, i32, i32
  }
  func.func @transform_1(%arg0: i32, %arg1: i32) -> (i32, i32, i32) {
    %c0_i32 = arith.constant 0 : i32
    %c0_i32_0 = arith.constant 0 : i32
    %c0_i32_1 = arith.constant 0 : i32
    %c0_i32_2 = arith.constant 0 : i32
    return %c0_i32, %c0_i32_0, %c0_i32_1 : i32, i32, i32
  }
  func.func @transform_2(%arg0: i32, %arg1: i32) -> (i32, i32, i32) {
    %c0_i32 = arith.constant 0 : i32
    %c0_i32_0 = arith.constant 0 : i32
    return %arg0, %c0_i32, %arg1 : i32, i32, i32
  }
}

</mosaic_0001>

<llo_original>
// kernel: input_module_forward.3
$region0: #{input_module_forward.3}
  #allocation0 [shape = 'u32[]', space=smem, size = 0x4, offset = 0x4, fixed_abs, tag = 'smem constant byte address 0x4 - core index']
  #allocation1 [shape = 'u32[144,128]{1,0:T(1,128)}', space=vmem, size = 0x12000, scoped, tag = 'internal scratch']
  %s0 = inlined_call_operand.vmem [shape: f32[2,8,2048], index: 0, kind: input, shape index: {}, may-alias: {0,2}]
  %s1 = inlined_call_operand.vmem [shape: f32[2,8,1], index: 1, kind: input, shape index: {}]
  %s2 = inlined_call_operand.vmem [shape: f32[2,8,2048], index: 2, kind: output, shape index: {}, may-alias: {0,2}]
  %s3 = sld [smem:[#allocation0]]
  $region41: #{input_module_forward.3} parent=0
    _
  %s5 = ssub.s32 1, %s3
  %s6 = scalar_select 0, %s5, %s3
  loop: start=0, step=1, limit=10
  $region2: #{input_module_forward.3} parent=0 // loop_pre_header
    _
  $region3: #{input_module_forward.3} parent=0 // loop_header
    %s8 = sphi 0, %s12
    %p9 = scmp.ge.s32.totalorder %s8, 10
    %s15 = sphi 0, %s27
    %s16 = sphi 0, %s23
    %s17 = sphi 0, %s15
    %s18 = sphi 0, %s16
    %s19 = sphi 0, %s17
    %s20 = sphi 0, %s18
    %s32 = sphi 0, %s34
    %s35 = sphi 0, %s32
    %s36 = sphi 0, %s35
    %s52 = sphi 0, %s36
    %s56 = sphi 0, %s56
    %s58 = sphi 0, %s56
    %s59 = sphi 0, %s58
    %s73 = sphi 0, %s59
    %s81 = sphi 0, %s83
    %s84 = sphi 0, %s81
    %s85 = sphi 0, %s84
    %s101 = sphi 0, %s85
  $region4: #{input_module_forward.3} parent=0 // loop_header_branch
    %11 = sbr.rel (%p9) target = $region8
  $region5: #{input_module_forward.3} parent=0 // loop_body
    %s13 = ssub.s32 %s8, 1
    %s14 = ssub.s32 %s8, 2
    %s21 = sadd.s32 1, %s16
    %p22 = scmp.ge.s32.totalorder %s21, 4
    %s23 = scalar_select %p22, 0, %s21
    %s24 = sadd.s32 1, %s15
    %s25 = scalar_select %p22, %s24, %s15
    %p26 = scmp.ge.s32.totalorder %s25, 2
    %s27 = scalar_select %p26, 0, %s25
    %s28 = ssub.s32 %s15, %s27
    %s29 = ssub.s32 %s16, %s23
    %s30 = sor.u32 %s28, %s29
    %p31 = scmp.eq.s32.totalorder %s30, 0
    %s33 = sadd.s32 %s32, 1
    %s34 = scalar_select %p31, %s32, %s33
    %p37 = pneg %p31
    %p38 = scmp.eq.s32.totalorder %s8, 7
    %p39 = por %p37, %p38
    %p40 = scmp.ne.s32.totalorder %s32, %s35
    %p41 = scmp.eq.s32.totalorder %s8, 0
    %p42 = por %p40, %p41
    %p43 = scmp.ne.s32.totalorder %s32, %s35
    %p44 = scmp.eq.s32.totalorder %s13, 7
    %p45 = por %p43, %p44
    %p46 = scmp.ne.s32.totalorder %s35, %s36
    %p47 = scmp.eq.s32.totalorder %s13, 0
    %p48 = por %p46, %p47
    %p49 = scmp.ne.s32.totalorder %s35, %s36
    %p50 = scmp.eq.s32.totalorder %s14, 7
    %p51 = por %p49, %p50
    %p53 = scmp.ne.s32.totalorder %s36, %s52
    %p54 = scmp.eq.s32.totalorder %s14, 0
    %p55 = por %p53, %p54
    %s57 = sadd.s32 %s56, 1
    %p60 = scmp.eq.s32.totalorder %s8, 7
    %p61 = scmp.ne.s32.totalorder %s56, %s58
    %p62 = scmp.eq.s32.totalorder %s8, 0
    %p63 = por %p61, %p62
    %p64 = scmp.ne.s32.totalorder %s56, %s58
    %p65 = scmp.eq.s32.totalorder %s13, 7
    %p66 = por %p64, %p65
    %p67 = scmp.ne.s32.totalorder %s58, %s59
    %p68 = scmp.eq.s32.totalorder %s13, 0
    %p69 = por %p67, %p68
    %p70 = scmp.ne.s32.totalorder %s58, %s59
    %p71 = scmp.eq.s32.totalorder %s14, 7
    %p72 = por %p70, %p71
    %p74 = scmp.ne.s32.totalorder %s59, %s73
    %p75 = scmp.eq.s32.totalorder %s14, 0
    %p76 = por %p74, %p75
    %s77 = ssub.s32 %s15, %s27
    %s78 = ssub.s32 %s16, %s23
    %s79 = sor.u32 %s77, %s78
    %p80 = scmp.eq.s32.totalorder %s79, 0
    %s82 = sadd.s32 %s81, 1
    %s83 = scalar_select %p80, %s81, %s82
    %p86 = pneg %p80
    %p87 = scmp.eq.s32.totalorder %s8, 7
    %p88 = por %p86, %p87
    %p89 = scmp.ne.s32.totalorder %s81, %s84
    %p90 = scmp.eq.s32.totalorder %s8, 0
    %p91 = por %p89, %p90
    %p92 = scmp.ne.s32.totalorder %s81, %s84
    %p93 = scmp.eq.s32.totalorder %s13, 7
    %p94 = por %p92, %p93
    %p95 = scmp.ne.s32.totalorder %s84, %s85
    %p96 = scmp.eq.s32.totalorder %s13, 0
    %p97 = por %p95, %p96
    %p98 = scmp.ne.s32.totalorder %s84, %s85
    %p99 = scmp.eq.s32.totalorder %s14, 7
    %p100 = por %p98, %p99
    %p102 = scmp.ne.s32.totalorder %s85, %s101
    %p103 = scmp.eq.s32.totalorder %s14, 0
    %p104 = por %p102, %p103
    %p105 = scmp.le.s32.totalorder 1, %s8
    %p106 = scmp.lt.s32.totalorder %s8, 9
    %p107 = pnand %p105, %p106
    %p108 = pneg %p107
    // Predicated region
    $region9: #{input_module_forward.3} parent=5 // pred_check
      _
    $region10: #{input_module_forward.3} parent=5 // pred_check_branch
      %110 = sbr.rel (%p107) target = $region12
    $region11: #{input_module_forward.3} parent=5 // pred_region
      %s111 = ssub.s32 %s8, 1
      // Predicated region
      $region13: #{input_module_forward.3} parent=11 // pred_check
        %p112 = pneg %p69
      $region14: #{input_module_forward.3} parent=11 // pred_check_branch
        %114 = sbr.rel (%p112) target = $region16
      $region15: #{input_module_forward.3} parent=11 // pred_region
        _
      $region16: #{input_module_forward.3} parent=11 // pred_fallthru
        _
    $region12: #{input_module_forward.3} parent=5 // pred_fallthru
      _
    %p115 = scmp.lt.s32.totalorder %s8, 8
    // Predicated region
    $region17: #{input_module_forward.3} parent=5 // pred_check
      %p116 = pneg %p115
    $region18: #{input_module_forward.3} parent=5 // pred_check_branch
      %118 = sbr.rel (%p116) target = $region20
    $region19: #{input_module_forward.3} parent=5 // pred_region
      // Predicated region
      $region21: #{input_module_forward.3} parent=19 // pred_check
        %p119 = pneg %p42
      $region22: #{input_module_forward.3} parent=19 // pred_check_branch
        %121 = sbr.rel (%p119) target = $region24
      $region23: #{input_module_forward.3} parent=19 // pred_region
        %s122 = smul.u32 4, %s16
        %p123 = scmp.lt.s32.totalorder %s15, 1
        %s124 = scalar_select %p123, %s15, 1
        %p125 = scmp.lt.s32.totalorder %s122, 15
        %s126 = scalar_select %p125, %s122, 15
        %s127 = smul.addr %s124, 16
        %s128 = sadd.s32 %s126, %s127
        %s129 = smul.addr %s128, 8
        %s130 = scalar_lea.vmem %s0, %s129
        %s131 = smul.u32 4, %s16
      $region24: #{input_module_forward.3} parent=19 // pred_fallthru
        _
    $region20: #{input_module_forward.3} parent=5 // pred_fallthru
      _
    %p132 = scmp.le.s32.totalorder 1, %s8
    %p133 = scmp.lt.s32.totalorder %s8, 9
    %p134 = pnand %p132, %p133
    %p135 = pneg %p134
    // Predicated region
    $region25: #{input_module_forward.3} parent=5 // pred_check
      _
    $region26: #{input_module_forward.3} parent=5 // pred_check_branch
      %137 = sbr.rel (%p134) target = $region28
    $region27: #{input_module_forward.3} parent=5 // pred_region
      %s138 = ssub.s32 %s8, 1
      %s139 = smul.u32 4, %s18
      %p140 = scmp.lt.s32.totalorder %s17, 1
      %s141 = scalar_select %p140, %s17, 1
      %p142 = scmp.lt.s32.totalorder %s139, 15
      %s143 = scalar_select %p142, %s139, 15
      %s144 = smul.addr %s141, 16
      %s145 = sadd.s32 %s143, %s144
      %s146 = smul.addr %s145, 8
      %s147 = scalar_lea.vmem %s0, %s146
      %p148 = pneg %p48
      %p149 = pneg %p45
      %p150 = pneg %p69
      %p151 = pneg %p66
      %p152 = pneg %p97
      %p153 = pneg %p94
      %s154 = smul.u32 4, %s18
      %p155 = scmp.lt.s32.totalorder %s17, 1
      %s156 = scalar_select %p155, %s17, 1
      %p157 = scmp.lt.s32.totalorder %s154, 15
      %s158 = scalar_select %p157, %s154, 15
      %s159 = smul.addr %s156, 16
      %s160 = sadd.s32 %s158, %s159
      %s161 = smul.addr %s160, 8
      %s162 = scalar_lea.vmem %s2, %s161
      %s163 = smul.u32 4, %s18
      %p164 = scmp.lt.s32.totalorder %s17, 1
      %s165 = scalar_select %p164, %s17, 1
      %p166 = scmp.lt.s32.totalorder %s163, 15
      %s167 = scalar_select %p166, %s163, 15
      %s168 = smul.addr %s165, 16
      %s169 = sadd.s32 %s167, %s168
      %s170 = smul.addr %s169, 8
      %s171 = scalar_lea.vmem %s0, %s170
      %s172 = smul.u32 4, %s18
      %s173 = smul.u32 4, %s18
      %p174 = scmp.lt.s32.totalorder %s17, 1
      %s175 = scalar_select %p174, %s17, 1
      %p176 = scmp.lt.s32.totalorder %s173, 15
      %s177 = scalar_select %p176, %s173, 15
      %s178 = smul.addr %s175, 16
      %s179 = sadd.s32 %s177, %s178
      %s180 = smul.addr %s179, 8
      %s181 = scalar_lea.vmem %s2, %s180
      %s182 = smul.u32 4, %s18
      %v183 = vld [vmem:[%s171] sm:$0xff]
      %v184 = vld [vmem:[%s171 + $0x8] sm:$0xff]
      %v185 = vld [vmem:[%s171 + $0x10] sm:$0xff]
      %v186 = vld [vmem:[%s171 + $0x18] sm:$0xff]
      %v187 = vld [vmem:[%s1] sm:$0xff]
      %s188 = scalar_lea.vmem %s1, 8
      %v189 = vld [vmem:[%s188] sm:$0xff]
      %191 = vset.pattern.permute.xlu0 0
      %192 = vperm.xlu0 %191, %v187
      %v193 = vpop.permute.xlu0 %192
      %v195 = vmul.f32 %v183, %v193
      %v196 = vmul.f32 %v184, %v193
      %v197 = vmul.f32 %v185, %v193
      %v198 = vmul.f32 %v186, %v193
      %200 = vset.pattern.permute.xlu0 0
      %201 = vperm.xlu0 %200, %v189
      %v202 = vpop.permute.xlu0 %201
      %v204 = vadd.f32 %v195, %v202
      %v205 = vadd.f32 %v196, %v202
      %v206 = vadd.f32 %v197, %v202
      %v207 = vadd.f32 %v198, %v202
      %v208 = vmax.f32 %v204, 0.0
      %v209 = vmax.f32 %v205, 0.0
      %v210 = vmax.f32 %v206, 0.0
      %v211 = vmax.f32 %v207, 0.0
      %212 = vst [vmem:[%s181] sm:$0xff] %v208
      %213 = vst [vmem:[%s181 + $0x8] sm:$0xff] %v209
      %214 = vst [vmem:[%s181 + $0x10] sm:$0xff] %v210
      %215 = vst [vmem:[%s181 + $0x18] sm:$0xff] %v211
      %s216 = smul.u32 4, %s18
      %p217 = scmp.lt.s32.totalorder %s17, 1
      %s218 = scalar_select %p217, %s17, 1
      %p219 = scmp.lt.s32.totalorder %s216, 15
      %s220 = scalar_select %p219, %s216, 15
      %s221 = smul.addr %s218, 16
      %s222 = sadd.s32 %s220, %s221
      %s223 = smul.addr %s222, 8
      %s224 = scalar_lea.vmem %s2, %s223
      // Predicated region
      $region29: #{input_module_forward.3} parent=27 // pred_check
        %p225 = pneg %p94
      $region30: #{input_module_forward.3} parent=27 // pred_check_branch
        %227 = sbr.rel (%p225) target = $region32
      $region31: #{input_module_forward.3} parent=27 // pred_region
        %s228 = smul.u32 4, %s18
      $region32: #{input_module_forward.3} parent=27 // pred_fallthru
        _
    $region28: #{input_module_forward.3} parent=5 // pred_fallthru
      _
    %p229 = scmp.le.s32.totalorder 2, %s8
    // Predicated region
    $region33: #{input_module_forward.3} parent=5 // pred_check
      %p230 = pneg %p229
    $region34: #{input_module_forward.3} parent=5 // pred_check_branch
      %232 = sbr.rel (%p230) target = $region36
    $region35: #{input_module_forward.3} parent=5 // pred_region
      %s233 = ssub.s32 %s8, 2
      // Predicated region
      $region37: #{input_module_forward.3} parent=35 // pred_check
        %p234 = pneg %p100
      $region38: #{input_module_forward.3} parent=35 // pred_check_branch
        %236 = sbr.rel (%p234) target = $region40
      $region39: #{input_module_forward.3} parent=35 // pred_region
        %s237 = smul.u32 4, %s20
        %p238 = scmp.lt.s32.totalorder %s19, 1
        %s239 = scalar_select %p238, %s19, 1
        %p240 = scmp.lt.s32.totalorder %s237, 15
        %s241 = scalar_select %p240, %s237, 15
        %s242 = smul.addr %s239, 16
        %s243 = sadd.s32 %s241, %s242
        %s244 = smul.addr %s243, 8
        %s245 = scalar_lea.vmem %s2, %s244
      $region40: #{input_module_forward.3} parent=35 // pred_fallthru
        _
    $region36: #{input_module_forward.3} parent=5 // pred_fallthru
      _
  $region6: #{input_module_forward.3} parent=0 // loop_footer
    %s12 = sadd.s32 1, %s8
  $region7: #{input_module_forward.3} parent=0 // loop_footer_branch
    %7 = sbr.rel target = $region3
  $region8: #{input_module_forward.3} parent=0 // loop_exit
    _

// kernel: input_module_forward.2
$region0: #{input_module_forward.2}
  #allocation0 [shape = 'u32[]', space=smem, size = 0x4, offset = 0x4, fixed_abs, tag = 'smem constant byte address 0x4 - core index']
  #allocation1 [shape = 'u32[144,128]{1,0:T(1,128)}', space=vmem, size = 0x12000, scoped, tag = 'internal scratch']
  #allocation2 [shape = 'f32[128,512]{1,0:T(8,128)}', space=vmem, size = 0x40000, scoped, tag = 'scratch operand']
  %s0 = inlined_call_operand.vmem [shape: f32[2,1,3200], index: 0, kind: input, shape index: {}]
  %s1 = inlined_call_operand.vmem [shape: f32[8,128], index: 1, kind: input, shape index: {}]
  %s2 = inlined_call_operand.vmem [shape: f32[1,2048], index: 2, kind: input, shape index: {}]
  %s3 = inlined_call_operand.vmem [shape: f32[2,8,2048], index: 3, kind: output, shape index: {0}]
  %s4 = inlined_call_operand.vmem [shape: f32[2,4,2,8], index: 4, kind: output, shape index: {1}]
  %5 = xla_tuple %s3, %s4
  %s6 = sld [smem:[#allocation0]]
  $region53: #{input_module_forward.2} parent=0
    _
  %s8 = ssub.s32 1, %s6
  %s9 = scalar_select 0, %s8, %s6
  loop: start=0, step=1, limit=10
  $region2: #{input_module_forward.2} parent=0 // loop_pre_header
    _
  $region3: #{input_module_forward.2} parent=0 // loop_header
    %s11 = sphi 0, %s15
    %p12 = scmp.ge.s32.totalorder %s11, 10
    %s18 = sphi 0, %s30
    %s19 = sphi 0, %s26
    %s20 = sphi 0, %s18
    %s21 = sphi 0, %s19
    %s22 = sphi 0, %s20
    %s23 = sphi 0, %s21
    %s33 = sphi 0, %s35
    %s36 = sphi 0, %s33
    %s37 = sphi 0, %s36
    %s53 = sphi 0, %s37
    %s57 = sphi 0, %s57
    %s59 = sphi 0, %s57
    %s60 = sphi 0, %s59
    %s74 = sphi 0, %s60
    %s80 = sphi 0, %s82
    %s83 = sphi 0, %s80
    %s84 = sphi 0, %s83
    %s100 = sphi 0, %s84
    %s108 = sphi 0, %s110
    %s111 = sphi 0, %s108
    %s112 = sphi 0, %s111
    %s128 = sphi 0, %s112
    %s136 = sphi 0, %s138
    %s139 = sphi 0, %s136
    %s140 = sphi 0, %s139
    %s156 = sphi 0, %s140
  $region4: #{input_module_forward.2} parent=0 // loop_header_branch
    %14 = sbr.rel (%p12) target = $region8
  $region5: #{input_module_forward.2} parent=0 // loop_body
    %s16 = ssub.s32 %s11, 1
    %s17 = ssub.s32 %s11, 2
    %s24 = sadd.s32 1, %s19
    %p25 = scmp.ge.s32.totalorder %s24, 4
    %s26 = scalar_select %p25, 0, %s24
    %s27 = sadd.s32 1, %s18
    %s28 = scalar_select %p25, %s27, %s18
    %p29 = scmp.ge.s32.totalorder %s28, 2
    %s30 = scalar_select %p29, 0, %s28
    %s31 = ssub.s32 %s18, %s30
    %p32 = scmp.eq.s32.totalorder %s31, 0
    %s34 = sadd.s32 %s33, 1
    %s35 = scalar_select %p32, %s33, %s34
    %p38 = pneg %p32
    %p39 = scmp.eq.s32.totalorder %s11, 7
    %p40 = por %p38, %p39
    %p41 = scmp.ne.s32.totalorder %s33, %s36
    %p42 = scmp.eq.s32.totalorder %s11, 0
    %p43 = por %p41, %p42
    %p44 = scmp.ne.s32.totalorder %s33, %s36
    %p45 = scmp.eq.s32.totalorder %s16, 7
    %p46 = por %p44, %p45
    %p47 = scmp.ne.s32.totalorder %s36, %s37
    %p48 = scmp.eq.s32.totalorder %s16, 0
    %p49 = por %p47, %p48
    %p50 = scmp.ne.s32.totalorder %s36, %s37
    %p51 = scmp.eq.s32.totalorder %s17, 7
    %p52 = por %p50, %p51
    %p54 = scmp.ne.s32.totalorder %s37, %s53
    %p55 = scmp.eq.s32.totalorder %s17, 0
    %p56 = por %p54, %p55
    %s58 = sadd.s32 %s57, 1
    %p61 = scmp.eq.s32.totalorder %s11, 7
    %p62 = scmp.ne.s32.totalorder %s57, %s59
    %p63 = scmp.eq.s32.totalorder %s11, 0
    %p64 = por %p62, %p63
    %p65 = scmp.ne.s32.totalorder %s57, %s59
    %p66 = scmp.eq.s32.totalorder %s16, 7
    %p67 = por %p65, %p66
    %p68 = scmp.ne.s32.totalorder %s59, %s60
    %p69 = scmp.eq.s32.totalorder %s16, 0
    %p70 = por %p68, %p69
    %p71 = scmp.ne.s32.totalorder %s59, %s60
    %p72 = scmp.eq.s32.totalorder %s17, 7
    %p73 = por %p71, %p72
    %p75 = scmp.ne.s32.totalorder %s60, %s74
    %p76 = scmp.eq.s32.totalorder %s17, 0
    %p77 = por %p75, %p76
    %s78 = ssub.s32 %s19, %s26
    %p79 = scmp.eq.s32.totalorder %s78, 0
    %s81 = sadd.s32 %s80, 1
    %s82 = scalar_select %p79, %s80, %s81
    %p85 = pneg %p79
    %p86 = scmp.eq.s32.totalorder %s11, 7
    %p87 = por %p85, %p86
    %p88 = scmp.ne.s32.totalorder %s80, %s83
    %p89 = scmp.eq.s32.totalorder %s11, 0
    %p90 = por %p88, %p89
    %p91 = scmp.ne.s32.totalorder %s80, %s83
    %p92 = scmp.eq.s32.totalorder %s16, 7
    %p93 = por %p91, %p92
    %p94 = scmp.ne.s32.totalorder %s83, %s84
    %p95 = scmp.eq.s32.totalorder %s16, 0
    %p96 = por %p94, %p95
    %p97 = scmp.ne.s32.totalorder %s83, %s84
    %p98 = scmp.eq.s32.totalorder %s17, 7
    %p99 = por %p97, %p98
    %p101 = scmp.ne.s32.totalorder %s84, %s100
    %p102 = scmp.eq.s32.totalorder %s17, 0
    %p103 = por %p101, %p102
    %s104 = ssub.s32 %s18, %s30
    %s105 = ssub.s32 %s19, %s26
    %s106 = sor.u32 %s104, %s105
    %p107 = scmp.eq.s32.totalorder %s106, 0
    %s109 = sadd.s32 %s108, 1
    %s110 = scalar_select %p107, %s108, %s109
    %p113 = pneg %p107
    %p114 = scmp.eq.s32.totalorder %s11, 7
    %p115 = por %p113, %p114
    %p116 = scmp.ne.s32.totalorder %s108, %s111
    %p117 = scmp.eq.s32.totalorder %s11, 0
    %p118 = por %p116, %p117
    %p119 = scmp.ne.s32.totalorder %s108, %s111
    %p120 = scmp.eq.s32.totalorder %s16, 7
    %p121 = por %p119, %p120
    %p122 = scmp.ne.s32.totalorder %s111, %s112
    %p123 = scmp.eq.s32.totalorder %s16, 0
    %p124 = por %p122, %p123
    %p125 = scmp.ne.s32.totalorder %s111, %s112
    %p126 = scmp.eq.s32.totalorder %s17, 7
    %p127 = por %p125, %p126
    %p129 = scmp.ne.s32.totalorder %s112, %s128
    %p130 = scmp.eq.s32.totalorder %s17, 0
    %p131 = por %p129, %p130
    %s132 = ssub.s32 %s18, %s30
    %s133 = ssub.s32 %s19, %s26
    %s134 = sor.u32 %s132, %s133
    %p135 = scmp.eq.s32.totalorder %s134, 0
    %s137 = sadd.s32 %s136, 1
    %s138 = scalar_select %p135, %s136, %s137
    %p141 = pneg %p135
    %p142 = scmp.eq.s32.totalorder %s11, 7
    %p143 = por %p141, %p142
    %p144 = scmp.ne.s32.totalorder %s136, %s139
    %p145 = scmp.eq.s32.totalorder %s11, 0
    %p146 = por %p144, %p145
    %p147 = scmp.ne.s32.totalorder %s136, %s139
    %p148 = scmp.eq.s32.totalorder %s16, 7
    %p149 = por %p147, %p148
    %p150 = scmp.ne.s32.totalorder %s139, %s140
    %p151 = scmp.eq.s32.totalorder %s16, 0
    %p152 = por %p150, %p151
    %p153 = scmp.ne.s32.totalorder %s139, %s140
    %p154 = scmp.eq.s32.totalorder %s17, 7
    %p155 = por %p153, %p154
    %p157 = scmp.ne.s32.totalorder %s140, %s156
    %p158 = scmp.eq.s32.totalorder %s17, 0
    %p159 = por %p157, %p158
    %p160 = scmp.le.s32.totalorder 1, %s11
    %p161 = scmp.lt.s32.totalorder %s11, 9
    %p162 = pnand %p160, %p161
    %p163 = pneg %p162
    // Predicated region
    $region9: #{input_module_forward.2} parent=5 // pred_check
      _
    $region10: #{input_module_forward.2} parent=5 // pred_check_branch
      %165 = sbr.rel (%p162) target = $region12
    $region11: #{input_module_forward.2} parent=5 // pred_region
      %s166 = ssub.s32 %s11, 1
      // Predicated region
      $region13: #{input_module_forward.2} parent=11 // pred_check
        %p167 = pneg %p70
      $region14: #{input_module_forward.2} parent=11 // pred_check_branch
        %169 = sbr.rel (%p167) target = $region16
      $region15: #{input_module_forward.2} parent=11 // pred_region
        _
      $region16: #{input_module_forward.2} parent=11 // pred_fallthru
        _
    $region12: #{input_module_forward.2} parent=5 // pred_fallthru
      _
    %p170 = scmp.lt.s32.totalorder %s11, 8
    // Predicated region
    $region17: #{input_module_forward.2} parent=5 // pred_check
      %p171 = pneg %p170
    $region18: #{input_module_forward.2} parent=5 // pred_check_branch
      %173 = sbr.rel (%p171) target = $region20
    $region19: #{input_module_forward.2} parent=5 // pred_region
      // Predicated region
      $region21: #{input_module_forward.2} parent=19 // pred_check
        %p174 = pneg %p43
      $region22: #{input_module_forward.2} parent=19 // pred_check_branch
        %176 = sbr.rel (%p174) target = $region24
      $region23: #{input_module_forward.2} parent=19 // pred_region
        %p177 = scmp.lt.s32.totalorder %s18, 1
        %s178 = scalar_select %p177, %s18, 1
        %s179 = smul.addr %s178, 25
        %s180 = scalar_lea.vmem %s0, %s179
      $region24: #{input_module_forward.2} parent=19 // pred_fallthru
        _
      // Predicated region
      $region25: #{input_module_forward.2} parent=19 // pred_check
        %p181 = pneg %p90
      $region26: #{input_module_forward.2} parent=19 // pred_check_branch
        %183 = sbr.rel (%p181) target = $region28
      $region27: #{input_module_forward.2} parent=19 // pred_region
        %s184 = smul.u32 4, %s19
        %p185 = scmp.lt.s32.totalorder %s184, 15
        %s186 = scalar_select %p185, %s184, 15
        %s187 = scalar_lea.vmem %s2, %s186
        %s188 = smul.u32 4, %s19
      $region28: #{input_module_forward.2} parent=19 // pred_fallthru
        _
    $region20: #{input_module_forward.2} parent=5 // pred_fallthru
      _
    %p189 = scmp.le.s32.totalorder 1, %s11
    %p190 = scmp.lt.s32.totalorder %s11, 9
    %p191 = pnand %p189, %p190
    %p192 = pneg %p191
    // Predicated region
    $region29: #{input_module_forward.2} parent=5 // pred_check
      _
    $region30: #{input_module_forward.2} parent=5 // pred_check_branch
      %194 = sbr.rel (%p191) target = $region32
    $region31: #{input_module_forward.2} parent=5 // pred_region
      %s195 = ssub.s32 %s11, 1
      %p196 = scmp.lt.s32.totalorder %s20, 1
      %s197 = scalar_select %p196, %s20, 1
      %s198 = smul.addr %s197, 25
      %s199 = scalar_lea.vmem %s0, %s198
      %p200 = pneg %p49
      %p201 = pneg %p46
      %p202 = pneg %p70
      %p203 = pneg %p67
      %s204 = smul.u32 4, %s21
      %p205 = scmp.lt.s32.totalorder %s204, 15
      %s206 = scalar_select %p205, %s204, 15
      %s207 = scalar_lea.vmem %s2, %s206
      %p208 = pneg %p96
      %p209 = pneg %p93
      %p210 = pneg %p124
      %p211 = pneg %p121
      %s212 = smul.u32 4, %s21
      %p213 = scmp.lt.s32.totalorder %s20, 1
      %s214 = scalar_select %p213, %s20, 1
      %p215 = scmp.lt.s32.totalorder %s212, 15
      %s216 = scalar_select %p215, %s212, 15
      %s217 = smul.addr %s214, 16
      %s218 = sadd.s32 %s216, %s217
      %s219 = smul.addr %s218, 8
      %s220 = scalar_lea.vmem %s3, %s219
      %p221 = pneg %p152
      %p222 = pneg %p149
      %p223 = scmp.lt.s32.totalorder %s20, 1
      %s224 = scalar_select %p223, %s20, 1
      %p225 = scmp.lt.s32.totalorder %s21, 3
      %s226 = scalar_select %p225, %s21, 3
      %s227 = smul.addr %s224, 4
      %s228 = sadd.s32 %s226, %s227
      %s229 = smul.addr %s228, 2
      %s230 = scalar_lea.vmem %s4, %s229
      %p231 = scmp.lt.s32.totalorder %s20, 1
      %s232 = scalar_select %p231, %s20, 1
      %s233 = smul.addr %s232, 25
      %s234 = scalar_lea.vmem %s0, %s233
      %s235 = smul.u32 4, %s21
      %p236 = scmp.lt.s32.totalorder %s235, 15
      %s237 = scalar_select %p236, %s235, 15
      %s238 = scalar_lea.vmem %s2, %s237
      %s239 = smul.u32 4, %s21
      %s240 = smul.u32 4, %s21
      %p241 = scmp.lt.s32.totalorder %s20, 1
      %s242 = scalar_select %p241, %s20, 1
      %p243 = scmp.lt.s32.totalorder %s240, 15
      %s244 = scalar_select %p243, %s240, 15
      %s245 = smul.addr %s242, 16
      %s246 = sadd.s32 %s244, %s245
      %s247 = smul.addr %s246, 8
      %s248 = scalar_lea.vmem %s3, %s247
      %s249 = smul.u32 4, %s21
      %p250 = scmp.lt.s32.totalorder %s20, 1
      %s251 = scalar_select %p250, %s20, 1
      %p252 = scmp.lt.s32.totalorder %s21, 3
      %s253 = scalar_select %p252, %s21, 3
      %s254 = smul.addr %s251, 4
      %s255 = sadd.s32 %s253, %s254
      %s256 = smul.addr %s255, 2
      %s257 = scalar_lea.vmem %s4, %s256
      %s258 = smul.u32 %s21, 512
      %s259 = sshra.s32 %s258, 7
      %s260 = sand.u32 %s258, 127
      %s261 = scalar_lea.vmem %s234, %s259
      %v262 = vld [vmem:[%s261] sm:$0x1f]
      %s263 = sadd.s32 %s258, 256
      %s264 = sshra.s32 %s263, 7
      %s265 = sand.u32 %s263, 127
      %s266 = scalar_lea.vmem %s234, %s264
      %v267 = vld [vmem:[%s266] sm:$0x1f]
      %s268 = sadd.s32 %s258, 512
      %s269 = sshra.s32 %s268, 7
      %s270 = sand.u32 %s268, 127
      %s271 = scalar_lea.vmem %s234, %s269
      %v272 = vld [vmem:[%s271] sm:$0x1f]
      %s273 = sadd.s32 %s258, 768
      %s274 = sshra.s32 %s273, 7
      %s275 = sand.u32 %s273, 127
      %s276 = scalar_lea.vmem %s234, %s274
      %v277 = vld [vmem:[%s276] sm:$0x1f]
      %s278 = sadd.s32 %s258, 1024
      %s279 = sshra.s32 %s278, 7
      %s280 = sand.u32 %s278, 127
      %s281 = scalar_lea.vmem %s234, %s279
      %v282 = vld [vmem:[%s281] sm:$0x1f]
      %v284 = vlaneseq
      %v285 = vshrl.u32 %v284, 7
      %v286 = vsub.s32 0, %v285
      %v287 = vrot.slane %v262, %v286
      %v288 = vlaneseq
      %v289 = vshrl.u32 %v288, 7
      %v290 = vsub.s32 1, %v289
      %v291 = vrot.slane %v262, %v290
      %v292 = vlaneseq
      %v293 = vshrl.u32 %v292, 7
      %v294 = vsub.s32 2, %v293
      %v295 = vrot.slane %v262, %v294
      %v296 = vlaneseq
      %v297 = vshrl.u32 %v296, 7
      %v298 = vsub.s32 3, %v297
      %v299 = vrot.slane %v262, %v298
      %v304 = vlaneseq
      %v305 = vshrl.u32 %v304, 7
      %v306 = vsub.s32 4, %v305
      %v307 = vrot.slane %v262, %v306
      %308 = vrot.lane.b32.xlu0 %v287, 127
      %v309 = vpop.permute.xlu0 %308
      %310 = vrot.lane.b32.xlu0 %v291, 127
      %v311 = vpop.permute.xlu0 %310
      %312 = vrot.lane.b32.xlu0 %v295, 127
      %v313 = vpop.permute.xlu0 %312
      %314 = vrot.lane.b32.xlu0 %v299, 127
      %v315 = vpop.permute.xlu0 %314
      %316 = vrot.lane.b32.xlu0 %v307, 127
      %v317 = vpop.permute.xlu0 %316
      %vm318 = vcmask 1039360
      %v319 = vsel %vm318, %v309, %v311
      %v320 = vsel %vm318, %v311, %v313
      %v321 = vsel %vm318, %v313, %v315
      %v322 = vsel %vm318, %v315, %v317
      %327 = vrot.lane.b32.xlu0 %v287, 126
      %v328 = vpop.permute.xlu0 %327
      %329 = vrot.lane.b32.xlu0 %v291, 126
      %v330 = vpop.permute.xlu0 %329
      %331 = vrot.lane.b32.xlu0 %v295, 126
      %v332 = vpop.permute.xlu0 %331
      %333 = vrot.lane.b32.xlu0 %v299, 126
      %v334 = vpop.permute.xlu0 %333
      %335 = vrot.lane.b32.xlu0 %v307, 126
      %v336 = vpop.permute.xlu0 %335
      %vm337 = vcmask 1031168
      %v338 = vsel %vm337, %v328, %v330
      %v339 = vsel %vm337, %v330, %v332
      %v340 = vsel %vm337, %v332, %v334
      %v341 = vsel %vm337, %v334, %v336
      %346 = vrot.lane.b32.xlu0 %v287, 125
      %v347 = vpop.permute.xlu0 %346
      %348 = vrot.lane.b32.xlu0 %v291, 125
      %v349 = vpop.permute.xlu0 %348
      %350 = vrot.lane.b32.xlu0 %v295, 125
      %v351 = vpop.permute.xlu0 %350
      %352 = vrot.lane.b32.xlu0 %v299, 125
      %v353 = vpop.permute.xlu0 %352
      %354 = vrot.lane.b32.xlu0 %v307, 125
      %v355 = vpop.permute.xlu0 %354
      %vm356 = vcmask 1022976
      %v357 = vsel %vm356, %v347, %v349
      %v358 = vsel %vm356, %v349, %v351
      %v359 = vsel %vm356, %v351, %v353
      %v360 = vsel %vm356, %v353, %v355
      %365 = vrot.lane.b32.xlu0 %v287, 124
      %v366 = vpop.permute.xlu0 %365
      %367 = vrot.lane.b32.xlu0 %v291, 124
      %v368 = vpop.permute.xlu0 %367
      %369 = vrot.lane.b32.xlu0 %v295, 124
      %v370 = vpop.permute.xlu0 %369
      %371 = vrot.lane.b32.xlu0 %v299, 124
      %v372 = vpop.permute.xlu0 %371
      %373 = vrot.lane.b32.xlu0 %v307, 124
      %v374 = vpop.permute.xlu0 %373
      %vm375 = vcmask 1014784
      %v376 = vsel %vm375, %v366, %v368
      %v377 = vsel %vm375, %v368, %v370
      %v378 = vsel %vm375, %v370, %v372
      %v379 = vsel %vm375, %v372, %v374
      %384 = vrot.lane.b32.xlu0 %v287, 116
      %v385 = vpop.permute.xlu0 %384
      %386 = vrot.lane.b32.xlu0 %v291, 116
      %v387 = vpop.permute.xlu0 %386
      %388 = vrot.lane.b32.xlu0 %v295, 116
      %v389 = vpop.permute.xlu0 %388
      %390 = vrot.lane.b32.xlu0 %v299, 116
      %v391 = vpop.permute.xlu0 %390
      %392 = vrot.lane.b32.xlu0 %v307, 116
      %v393 = vpop.permute.xlu0 %392
      %vm394 = vcmask 949248
      %v395 = vsel %vm394, %v385, %v387
      %v396 = vsel %vm394, %v387, %v389
      %v397 = vsel %vm394, %v389, %v391
      %v398 = vsel %vm394, %v391, %v393
      %403 = vrot.lane.b32.xlu0 %v287, 115
      %v404 = vpop.permute.xlu0 %403
      %405 = vrot.lane.b32.xlu0 %v291, 115
      %v406 = vpop.permute.xlu0 %405
      %407 = vrot.lane.b32.xlu0 %v295, 115
      %v408 = vpop.permute.xlu0 %407
      %409 = vrot.lane.b32.xlu0 %v299, 115
      %v410 = vpop.permute.xlu0 %409
      %411 = vrot.lane.b32.xlu0 %v307, 115
      %v412 = vpop.permute.xlu0 %411
      %vm413 = vcmask 941056
      %v414 = vsel %vm413, %v404, %v406
      %v415 = vsel %vm413, %v406, %v408
      %v416 = vsel %vm413, %v408, %v410
      %v417 = vsel %vm413, %v410, %v412
      %422 = vrot.lane.b32.xlu0 %v287, 114
      %v423 = vpop.permute.xlu0 %422
      %424 = vrot.lane.b32.xlu0 %v291, 114
      %v425 = vpop.permute.xlu0 %424
      %426 = vrot.lane.b32.xlu0 %v295, 114
      %v427 = vpop.permute.xlu0 %426
      %428 = vrot.lane.b32.xlu0 %v299, 114
      %v429 = vpop.permute.xlu0 %428
      %430 = vrot.lane.b32.xlu0 %v307, 114
      %v431 = vpop.permute.xlu0 %430
      %vm432 = vcmask 932864
      %v433 = vsel %vm432, %v423, %v425
      %v434 = vsel %vm432, %v425, %v427
      %v435 = vsel %vm432, %v427, %v429
      %v436 = vsel %vm432, %v429, %v431
      %vm441 = vcmask 1040384
      %v442 = vsel %vm441, %v287, %v319
      %v443 = vsel %vm441, %v291, %v320
      %v444 = vsel %vm441, %v295, %v321
      %v445 = vsel %vm441, %v299, %v322
      %vm446 = vcmask 1041408
      %v447 = vsel %vm446, %v442, %v338
      %v448 = vsel %vm446, %v443, %v339
      %v449 = vsel %vm446, %v444, %v340
      %v450 = vsel %vm446, %v445, %v341
      %vm451 = vcmask 1042432
      %v452 = vsel %vm451, %v447, %v357
      %v453 = vsel %vm451, %v448, %v358
      %v454 = vsel %vm451, %v449, %v359
      %v455 = vsel %vm451, %v450, %v360
      %vm456 = vcmask 1043456
      %v457 = vsel %vm456, %v452, %v376
      %v458 = vsel %vm456, %v453, %v377
      %v459 = vsel %vm456, %v454, %v378
      %v460 = vsel %vm456, %v455, %v379
      %vm461 = vcmask 1044480
      %v462 = vsel %vm461, %v457, %v395
      %v463 = vsel %vm461, %v458, %v396
      %v464 = vsel %vm461, %v459, %v397
      %v465 = vsel %vm461, %v460, %v398
      %vm466 = vcmask 1045504
      %v467 = vsel %vm466, %v462, %v414
      %v468 = vsel %vm466, %v463, %v415
      %v469 = vsel %vm466, %v464, %v416
      %v470 = vsel %vm466, %v465, %v417
      %vm471 = vcmask 1046528
      %v472 = vsel %vm471, %v467, %v433
      %v473 = vsel %vm471, %v468, %v434
      %v474 = vsel %vm471, %v469, %v435
      %v475 = vsel %vm471, %v470, %v436
      %476 = vst [vmem:[#allocation2] sm:$0xff] %v472
      %477 = vst [vmem:[#allocation2 + $0x8] sm:$0xff] %v473
      %478 = vst [vmem:[#allocation2 + $0x10] sm:$0xff] %v474
      %479 = vst [vmem:[#allocation2 + $0x18] sm:$0xff] %v475
      %482 = vrot.lane.b32.xlu0 %v287, 119
      %v483 = vpop.permute.xlu0 %482
      %484 = vrot.lane.b32.xlu0 %v291, 119
      %v485 = vpop.permute.xlu0 %484
      %486 = vrot.lane.b32.xlu0 %v295, 119
      %v487 = vpop.permute.xlu0 %486
      %488 = vrot.lane.b32.xlu0 %v299, 119
      %v489 = vpop.permute.xlu0 %488
      %490 = vrot.lane.b32.xlu0 %v307, 119
      %v491 = vpop.permute.xlu0 %490
      %vm492 = vcmask 973824
      %v493 = vsel %vm492, %v483, %v485
      %v494 = vsel %vm492, %v485, %v487
      %v495 = vsel %vm492, %v487, %v489
      %v496 = vsel %vm492, %v489, %v491
      %502 = vrot.lane.b32.xlu0 %v287, 118
      %v503 = vpop.permute.xlu0 %502
      %504 = vrot.lane.b32.xlu0 %v291, 118
      %v505 = vpop.permute.xlu0 %504
      %506 = vrot.lane.b32.xlu0 %v295, 118
      %v507 = vpop.permute.xlu0 %506
      %508 = vrot.lane.b32.xlu0 %v299, 118
      %v509 = vpop.permute.xlu0 %508
      %510 = vrot.lane.b32.xlu0 %v307, 118
      %v511 = vpop.permute.xlu0 %510
      %vm512 = vcmask 965632
      %v513 = vsel %vm512, %v503, %v505
      %v514 = vsel %vm512, %v505, %v507
      %v515 = vsel %vm512, %v507, %v509
      %v516 = vsel %vm512, %v509, %v511
      %522 = vrot.lane.b32.xlu0 %v287, 117
      %v523 = vpop.permute.xlu0 %522
      %524 = vrot.lane.b32.xlu0 %v291, 117
      %v525 = vpop.permute.xlu0 %524
      %526 = vrot.lane.b32.xlu0 %v295, 117
      %v527 = vpop.permute.xlu0 %526
      %528 = vrot.lane.b32.xlu0 %v299, 117
      %v529 = vpop.permute.xlu0 %528
      %530 = vrot.lane.b32.xlu0 %v307, 117
      %v531 = vpop.permute.xlu0 %530
      %vm532 = vcmask 957440
      %v533 = vsel %vm532, %v523, %v525
      %v534 = vsel %vm532, %v525, %v527
      %v535 = vsel %vm532, %v527, %v529
      %v536 = vsel %vm532, %v529, %v531
      %544 = vrot.lane.b32.xlu0 %v287, 107
      %v545 = vpop.permute.xlu0 %544
      %546 = vrot.lane.b32.xlu0 %v291, 107
      %v547 = vpop.permute.xlu0 %546
      %548 = vrot.lane.b32.xlu0 %v295, 107
      %v549 = vpop.permute.xlu0 %548
      %550 = vrot.lane.b32.xlu0 %v299, 107
      %v551 = vpop.permute.xlu0 %550
      %552 = vrot.lane.b32.xlu0 %v307, 107
      %v553 = vpop.permute.xlu0 %552
      %vm554 = vcmask 875520
      %v555 = vsel %vm554, %v545, %v547
      %v556 = vsel %vm554, %v547, %v549
      %v557 = vsel %vm554, %v549, %v551
      %v558 = vsel %vm554, %v551, %v553
      %v564 = vsel %vm441, %v307, %v317
      %v565 = vsel %vm446, %v442, %v493
      %v566 = vsel %vm446, %v443, %v494
      %v567 = vsel %vm446, %v444, %v495
      %v568 = vsel %vm446, %v445, %v496
      %v569 = vsel %vm446, %v564, %v491
      %v570 = vsel %vm451, %v565, %v513
      %v571 = vsel %vm451, %v566, %v514
      %v572 = vsel %vm451, %v567, %v515
      %v573 = vsel %vm451, %v568, %v516
      %v574 = vsel %vm451, %v569, %v511
      %v575 = vsel %vm456, %v570, %v533
      %v576 = vsel %vm456, %v571, %v534
      %v577 = vsel %vm456, %v572, %v535
      %v578 = vsel %vm456, %v573, %v536
      %v579 = vsel %vm456, %v574, %v531
      %v580 = vsel %vm461, %v575, %v395
      %v581 = vsel %vm461, %v576, %v396
      %v582 = vsel %vm461, %v577, %v397
      %v583 = vsel %vm461, %v578, %v398
      %v584 = vsel %vm461, %v579, %v393
      %v585 = vsel %vm466, %v580, %v414
      %v586 = vsel %vm466, %v581, %v415
      %v587 = vsel %vm466, %v582, %v416
      %v588 = vsel %vm466, %v583, %v417
      %v589 = vsel %vm466, %v584, %v412
      %v590 = vsel %vm471, %v585, %v555
      %v591 = vsel %vm471, %v586, %v556
      %v592 = vsel %vm471, %v587, %v557
      %v593 = vsel %vm471, %v588, %v558
      %v594 = vsel %vm471, %v589, %v553
      %600 = vrot.lane.b32.xlu0 %v590, 113
      %v601 = vpop.permute.xlu0 %600
      %602 = vrot.lane.b32.xlu0 %v591, 113
      %v603 = vpop.permute.xlu0 %602
      %604 = vrot.lane.b32.xlu0 %v592, 113
      %v605 = vpop.permute.xlu0 %604
      %606 = vrot.lane.b32.xlu0 %v593, 113
      %v607 = vpop.permute.xlu0 %606
      %608 = vrot.lane.b32.xlu0 %v594, 113
      %v609 = vpop.permute.xlu0 %608
      %vm610 = vcmask 924672
      %v611 = vsel %vm610, %v601, %v603
      %v612 = vsel %vm610, %v603, %v605
      %v613 = vsel %vm610, %v605, %v607
      %v614 = vsel %vm610, %v607, %v609
      %619 = vst [vmem:[#allocation2 + $0x20] sm:$0xff] %v611
      %620 = vst [vmem:[#allocation2 + $0x28] sm:$0xff] %v612
      %621 = vst [vmem:[#allocation2 + $0x30] sm:$0xff] %v613
      %622 = vst [vmem:[#allocation2 + $0x38] sm:$0xff] %v614
      %v626 = vsel %vm446, %v564, %v336
      %v627 = vsel %vm451, %v626, %v355
      %v628 = vsel %vm456, %v452, %v533
      %v629 = vsel %vm456, %v453, %v534
      %v630 = vsel %vm456, %v454, %v535
      %v631 = vsel %vm456, %v455, %v536
      %v632 = vsel %vm456, %v627, %v531
      %v633 = vsel %vm461, %v628, %v395
      %v634 = vsel %vm461, %v629, %v396
      %v635 = vsel %vm461, %v630, %v397
      %v636 = vsel %vm461, %v631, %v398
      %v637 = vsel %vm461, %v632, %v393
      %v638 = vsel %vm466, %v633, %v414
      %v639 = vsel %vm466, %v634, %v415
      %v640 = vsel %vm466, %v635, %v416
      %v641 = vsel %vm466, %v636, %v417
      %v642 = vsel %vm466, %v637, %v412
      %v643 = vsel %vm471, %v638, %v433
      %v644 = vsel %vm471, %v639, %v434
      %v645 = vsel %vm471, %v640, %v435
      %v646 = vsel %vm471, %v641, %v436
      %v647 = vsel %vm471, %v642, %v431
      %653 = vrot.lane.b32.xlu0 %v643, 91
      %v654 = vpop.permute.xlu0 %653
      %655 = vrot.lane.b32.xlu0 %v644, 91
      %v656 = vpop.permute.xlu0 %655
      %657 = vrot.lane.b32.xlu0 %v645, 91
      %v658 = vpop.permute.xlu0 %657
      %659 = vrot.lane.b32.xlu0 %v646, 91
      %v660 = vpop.permute.xlu0 %659
      %661 = vrot.lane.b32.xlu0 %v647, 91
      %v662 = vpop.permute.xlu0 %661
      %vm663 = vcmask 744448
      %v664 = vsel %vm663, %v654, %v656
      %v665 = vsel %vm663, %v656, %v658
      %v666 = vsel %vm663, %v658, %v660
      %v667 = vsel %vm663, %v660, %v662
      %672 = vst [vmem:[#allocation2 + $0x40] sm:$0xff] %v664
      %673 = vst [vmem:[#allocation2 + $0x48] sm:$0xff] %v665
      %674 = vst [vmem:[#allocation2 + $0x50] sm:$0xff] %v666
      %675 = vst [vmem:[#allocation2 + $0x58] sm:$0xff] %v667
      %v677 = vlaneseq
      %v678 = vshrl.u32 %v677, 7
      %v679 = vsub.s32 0, %v678
      %v680 = vrot.slane %v267, %v679
      %v681 = vlaneseq
      %v682 = vshrl.u32 %v681, 7
      %v683 = vsub.s32 1, %v682
      %v684 = vrot.slane %v267, %v683
      %v685 = vlaneseq
      %v686 = vshrl.u32 %v685, 7
      %v687 = vsub.s32 2, %v686
      %v688 = vrot.slane %v267, %v687
      %v689 = vlaneseq
      %v690 = vshrl.u32 %v689, 7
      %v691 = vsub.s32 3, %v690
      %v692 = vrot.slane %v267, %v691
      %693 = vrot.lane.b32.xlu0 %v680, 52
      %v694 = vpop.permute.xlu0 %693
      %695 = vrot.lane.b32.xlu0 %v684, 52
      %v696 = vpop.permute.xlu0 %695
      %697 = vrot.lane.b32.xlu0 %v688, 52
      %v698 = vpop.permute.xlu0 %697
      %699 = vrot.lane.b32.xlu0 %v692, 52
      %v700 = vpop.permute.xlu0 %699
      %vm701 = vcmask 424960
      %v702 = vsel %vm701, %v694, %v696
      %v703 = vsel %vm701, %v696, %v698
      %v704 = vsel %vm701, %v698, %v700
      %v710 = vlaneseq
      %v711 = vshrl.u32 %v710, 7
      %v712 = vsub.s32 4, %v711
      %v713 = vrot.slane %v267, %v712
      %714 = vrot.lane.b32.xlu0 %v680, 51
      %v715 = vpop.permute.xlu0 %714
      %716 = vrot.lane.b32.xlu0 %v684, 51
      %v717 = vpop.permute.xlu0 %716
      %718 = vrot.lane.b32.xlu0 %v688, 51
      %v719 = vpop.permute.xlu0 %718
      %720 = vrot.lane.b32.xlu0 %v692, 51
      %v721 = vpop.permute.xlu0 %720
      %722 = vrot.lane.b32.xlu0 %v713, 51
      %v723 = vpop.permute.xlu0 %722
      %vm724 = vcmask 416768
      %v725 = vsel %vm724, %v715, %v717
      %v726 = vsel %vm724, %v717, %v719
      %v727 = vsel %vm724, %v719, %v721
      %v728 = vsel %vm724, %v721, %v723
      %734 = vrot.lane.b32.xlu0 %v680, 50
      %v735 = vpop.permute.xlu0 %734
      %736 = vrot.lane.b32.xlu0 %v684, 50
      %v737 = vpop.permute.xlu0 %736
      %738 = vrot.lane.b32.xlu0 %v688, 50
      %v739 = vpop.permute.xlu0 %738
      %740 = vrot.lane.b32.xlu0 %v692, 50
      %v741 = vpop.permute.xlu0 %740
      %742 = vrot.lane.b32.xlu0 %v713, 50
      %v743 = vpop.permute.xlu0 %742
      %vm744 = vcmask 408576
      %v745 = vsel %vm744, %v735, %v737
      %v746 = vsel %vm744, %v737, %v739
      %v747 = vsel %vm744, %v739, %v741
      %v748 = vsel %vm744, %v741, %v743
      %754 = vrot.lane.b32.xlu0 %v680, 49
      %v755 = vpop.permute.xlu0 %754
      %756 = vrot.lane.b32.xlu0 %v684, 49
      %v757 = vpop.permute.xlu0 %756
      %758 = vrot.lane.b32.xlu0 %v688, 49
      %v759 = vpop.permute.xlu0 %758
      %760 = vrot.lane.b32.xlu0 %v692, 49
      %v761 = vpop.permute.xlu0 %760
      %762 = vrot.lane.b32.xlu0 %v713, 49
      %v763 = vpop.permute.xlu0 %762
      %vm764 = vcmask 400384
      %v765 = vsel %vm764, %v755, %v757
      %v766 = vsel %vm764, %v757, %v759
      %v767 = vsel %vm764, %v759, %v761
      %v768 = vsel %vm764, %v761, %v763
      %774 = vrot.lane.b32.xlu0 %v680, 48
      %v775 = vpop.permute.xlu0 %774
      %776 = vrot.lane.b32.xlu0 %v684, 48
      %v777 = vpop.permute.xlu0 %776
      %778 = vrot.lane.b32.xlu0 %v688, 48
      %v779 = vpop.permute.xlu0 %778
      %780 = vrot.lane.b32.xlu0 %v692, 48
      %v781 = vpop.permute.xlu0 %780
      %782 = vrot.lane.b32.xlu0 %v713, 48
      %v783 = vpop.permute.xlu0 %782
      %vm784 = vcmask 392192
      %v785 = vsel %vm784, %v775, %v777
      %v786 = vsel %vm784, %v777, %v779
      %v787 = vsel %vm784, %v779, %v781
      %v788 = vsel %vm784, %v781, %v783
      %794 = vrot.lane.b32.xlu0 %v680, 40
      %v795 = vpop.permute.xlu0 %794
      %796 = vrot.lane.b32.xlu0 %v684, 40
      %v797 = vpop.permute.xlu0 %796
      %798 = vrot.lane.b32.xlu0 %v688, 40
      %v799 = vpop.permute.xlu0 %798
      %800 = vrot.lane.b32.xlu0 %v692, 40
      %v801 = vpop.permute.xlu0 %800
      %802 = vrot.lane.b32.xlu0 %v713, 40
      %v803 = vpop.permute.xlu0 %802
      %vm804 = vcmask 326656
      %v805 = vsel %vm804, %v795, %v797
      %v806 = vsel %vm804, %v797, %v799
      %v807 = vsel %vm804, %v799, %v801
      %v808 = vsel %vm804, %v801, %v803
      %814 = vrot.lane.b32.xlu0 %v680, 39
      %v815 = vpop.permute.xlu0 %814
      %816 = vrot.lane.b32.xlu0 %v684, 39
      %v817 = vpop.permute.xlu0 %816
      %818 = vrot.lane.b32.xlu0 %v688, 39
      %v819 = vpop.permute.xlu0 %818
      %820 = vrot.lane.b32.xlu0 %v692, 39
      %v821 = vpop.permute.xlu0 %820
      %822 = vrot.lane.b32.xlu0 %v713, 39
      %v823 = vpop.permute.xlu0 %822
      %vm824 = vcmask 318464
      %v825 = vsel %vm824, %v815, %v817
      %v826 = vsel %vm824, %v817, %v819
      %v827 = vsel %vm824, %v819, %v821
      %v828 = vsel %vm824, %v821, %v823
      %v834 = vsel %vm441, %v287, %v694
      %v835 = vsel %vm441, %v291, %v702
      %v836 = vsel %vm441, %v295, %v703
      %v837 = vsel %vm441, %v299, %v704
      %v838 = vsel %vm441, %v307, %v700
      %v839 = vsel %vm446, %v834, %v715
      %v840 = vsel %vm446, %v835, %v725
      %v841 = vsel %vm446, %v836, %v726
      %v842 = vsel %vm446, %v837, %v727
      %v843 = vsel %vm446, %v838, %v728
      %v844 = vsel %vm451, %v839, %v735
      %v845 = vsel %vm451, %v840, %v745
      %v846 = vsel %vm451, %v841, %v746
      %v847 = vsel %vm451, %v842, %v747
      %v848 = vsel %vm451, %v843, %v748
      %v849 = vsel %vm456, %v844, %v755
      %v850 = vsel %vm456, %v845, %v765
      %v851 = vsel %vm456, %v846, %v766
      %v852 = vsel %vm456, %v847, %v767
      %v853 = vsel %vm456, %v848, %v768
      %v854 = vsel %vm461, %v849, %v775
      %v855 = vsel %vm461, %v850, %v785
      %v856 = vsel %vm461, %v851, %v786
      %v857 = vsel %vm461, %v852, %v787
      %v858 = vsel %vm461, %v853, %v788
      %v859 = vsel %vm466, %v854, %v795
      %v860 = vsel %vm466, %v855, %v805
      %v861 = vsel %vm466, %v856, %v806
      %v862 = vsel %vm466, %v857, %v807
      %v863 = vsel %vm466, %v858, %v808
      %v864 = vsel %vm471, %v859, %v815
      %v865 = vsel %vm471, %v860, %v825
      %v866 = vsel %vm471, %v861, %v826
      %v867 = vsel %vm471, %v862, %v827
      %v868 = vsel %vm471, %v863, %v828
      %874 = vrot.lane.b32.xlu0 %v864, 76
      %v875 = vpop.permute.xlu0 %874
      %876 = vrot.lane.b32.xlu0 %v865, 76
      %v877 = vpop.permute.xlu0 %876
      %878 = vrot.lane.b32.xlu0 %v866, 76
      %v879 = vpop.permute.xlu0 %878
      %880 = vrot.lane.b32.xlu0 %v867, 76
      %v881 = vpop.permute.xlu0 %880
      %882 = vrot.lane.b32.xlu0 %v868, 76
      %v883 = vpop.permute.xlu0 %882
      %vm884 = vcmask 621568
      %v885 = vsel %vm884, %v875, %v877
      %v886 = vsel %vm884, %v877, %v879
      %v887 = vsel %vm884, %v879, %v881
      %v888 = vsel %vm884, %v881, %v883
      %893 = vst [vmem:[#allocation2 + $0x60] sm:$0xff] %v885
      %894 = vst [vmem:[#allocation2 + $0x68] sm:$0xff] %v886
      %895 = vst [vmem:[#allocation2 + $0x70] sm:$0xff] %v887
      %896 = vst [vmem:[#allocation2 + $0x78] sm:$0xff] %v888
      %902 = vrot.lane.b32.xlu0 %v680, 127
      %v903 = vpop.permute.xlu0 %902
      %904 = vrot.lane.b32.xlu0 %v684, 127
      %v905 = vpop.permute.xlu0 %904
      %906 = vrot.lane.b32.xlu0 %v688, 127
      %v907 = vpop.permute.xlu0 %906
      %908 = vrot.lane.b32.xlu0 %v692, 127
      %v909 = vpop.permute.xlu0 %908
      %910 = vrot.lane.b32.xlu0 %v713, 127
      %v911 = vpop.permute.xlu0 %910
      %v912 = vsel %vm318, %v903, %v905
      %v913 = vsel %vm318, %v905, %v907
      %v914 = vsel %vm318, %v907, %v909
      %v915 = vsel %vm318, %v909, %v911
      %921 = vrot.lane.b32.xlu0 %v680, 126
      %v922 = vpop.permute.xlu0 %921
      %923 = vrot.lane.b32.xlu0 %v684, 126
      %v924 = vpop.permute.xlu0 %923
      %925 = vrot.lane.b32.xlu0 %v688, 126
      %v926 = vpop.permute.xlu0 %925
      %927 = vrot.lane.b32.xlu0 %v692, 126
      %v928 = vpop.permute.xlu0 %927
      %929 = vrot.lane.b32.xlu0 %v713, 126
      %v930 = vpop.permute.xlu0 %929
      %v931 = vsel %vm337, %v922, %v924
      %v932 = vsel %vm337, %v924, %v926
      %v933 = vsel %vm337, %v926, %v928
      %v934 = vsel %vm337, %v928, %v930
      %940 = vrot.lane.b32.xlu0 %v680, 118
      %v941 = vpop.permute.xlu0 %940
      %942 = vrot.lane.b32.xlu0 %v684, 118
      %v943 = vpop.permute.xlu0 %942
      %944 = vrot.lane.b32.xlu0 %v688, 118
      %v945 = vpop.permute.xlu0 %944
      %946 = vrot.lane.b32.xlu0 %v692, 118
      %v947 = vpop.permute.xlu0 %946
      %948 = vrot.lane.b32.xlu0 %v713, 118
      %v949 = vpop.permute.xlu0 %948
      %v950 = vsel %vm512, %v941, %v943
      %v951 = vsel %vm512, %v943, %v945
      %v952 = vsel %vm512, %v945, %v947
      %v953 = vsel %vm512, %v947, %v949
      %959 = vrot.lane.b32.xlu0 %v680, 117
      %v960 = vpop.permute.xlu0 %959
      %961 = vrot.lane.b32.xlu0 %v684, 117
      %v962 = vpop.permute.xlu0 %961
      %963 = vrot.lane.b32.xlu0 %v688, 117
      %v964 = vpop.permute.xlu0 %963
      %965 = vrot.lane.b32.xlu0 %v692, 117
      %v966 = vpop.permute.xlu0 %965
      %967 = vrot.lane.b32.xlu0 %v713, 117
      %v968 = vpop.permute.xlu0 %967
      %v969 = vsel %vm532, %v960, %v962
      %v970 = vsel %vm532, %v962, %v964
      %v971 = vsel %vm532, %v964, %v966
      %v972 = vsel %vm532, %v966, %v968
      %978 = vrot.lane.b32.xlu0 %v680, 116
      %v979 = vpop.permute.xlu0 %978
      %980 = vrot.lane.b32.xlu0 %v684, 116
      %v981 = vpop.permute.xlu0 %980
      %982 = vrot.lane.b32.xlu0 %v688, 116
      %v983 = vpop.permute.xlu0 %982
      %984 = vrot.lane.b32.xlu0 %v692, 116
      %v985 = vpop.permute.xlu0 %984
      %986 = vrot.lane.b32.xlu0 %v713, 116
      %v987 = vpop.permute.xlu0 %986
      %v988 = vsel %vm394, %v979, %v981
      %v989 = vsel %vm394, %v981, %v983
      %v990 = vsel %vm394, %v983, %v985
      %v991 = vsel %vm394, %v985, %v987
      %997 = vrot.lane.b32.xlu0 %v680, 115
      %v998 = vpop.permute.xlu0 %997
      %999 = vrot.lane.b32.xlu0 %v684, 115
      %v1000 = vpop.permute.xlu0 %999
      %1001 = vrot.lane.b32.xlu0 %v688, 115
      %v1002 = vpop.permute.xlu0 %1001
      %1003 = vrot.lane.b32.xlu0 %v692, 115
      %v1004 = vpop.permute.xlu0 %1003
      %1005 = vrot.lane.b32.xlu0 %v713, 115
      %v1006 = vpop.permute.xlu0 %1005
      %v1007 = vsel %vm413, %v998, %v1000
      %v1008 = vsel %vm413, %v1000, %v1002
      %v1009 = vsel %vm413, %v1002, %v1004
      %v1010 = vsel %vm413, %v1004, %v1006
      %1016 = vrot.lane.b32.xlu0 %v680, 114
      %v1017 = vpop.permute.xlu0 %1016
      %1018 = vrot.lane.b32.xlu0 %v684, 114
      %v1019 = vpop.permute.xlu0 %1018
      %1020 = vrot.lane.b32.xlu0 %v688, 114
      %v1021 = vpop.permute.xlu0 %1020
      %1022 = vrot.lane.b32.xlu0 %v692, 114
      %v1023 = vpop.permute.xlu0 %1022
      %1024 = vrot.lane.b32.xlu0 %v713, 114
      %v1025 = vpop.permute.xlu0 %1024
      %v1026 = vsel %vm432, %v1017, %v1019
      %v1027 = vsel %vm432, %v1019, %v1021
      %v1028 = vsel %vm432, %v1021, %v1023
      %v1029 = vsel %vm432, %v1023, %v1025
      %v1035 = vsel %vm441, %v680, %v912
      %v1036 = vsel %vm441, %v684, %v913
      %v1037 = vsel %vm441, %v688, %v914
      %v1038 = vsel %vm441, %v692, %v915
      %v1039 = vsel %vm441, %v713, %v911
      %v1040 = vsel %vm446, %v1035, %v931
      %v1041 = vsel %vm446, %v1036, %v932
      %v1042 = vsel %vm446, %v1037, %v933
      %v1043 = vsel %vm446, %v1038, %v934
      %v1044 = vsel %vm446, %v1039, %v930
      %v1045 = vsel %vm451, %v1040, %v950
      %v1046 = vsel %vm451, %v1041, %v951
      %v1047 = vsel %vm451, %v1042, %v952
      %v1048 = vsel %vm451, %v1043, %v953
      %v1049 = vsel %vm451, %v1044, %v949
      %v1050 = vsel %vm456, %v1045, %v969
      %v1051 = vsel %vm456, %v1046, %v970
      %v1052 = vsel %vm456, %v1047, %v971
      %v1053 = vsel %vm456, %v1048, %v972
      %v1054 = vsel %vm456, %v1049, %v968
      %v1055 = vsel %vm461, %v1050, %v988
      %v1056 = vsel %vm461, %v1051, %v989
      %v1057 = vsel %vm461, %v1052, %v990
      %v1058 = vsel %vm461, %v1053, %v991
      %v1059 = vsel %vm461, %v1054, %v987
      %v1060 = vsel %vm466, %v1055, %v1007
      %v1061 = vsel %vm466, %v1056, %v1008
      %v1062 = vsel %vm466, %v1057, %v1009
      %v1063 = vsel %vm466, %v1058, %v1010
      %v1064 = vsel %vm466, %v1059, %v1006
      %v1065 = vsel %vm471, %v1060, %v1026
      %v1066 = vsel %vm471, %v1061, %v1027
      %v1067 = vsel %vm471, %v1062, %v1028
      %v1068 = vsel %vm471, %v1063, %v1029
      %v1069 = vsel %vm471, %v1064, %v1025
      %1075 = vrot.lane.b32.xlu0 %v1065, 114
      %v1076 = vpop.permute.xlu0 %1075
      %1077 = vrot.lane.b32.xlu0 %v1066, 114
      %v1078 = vpop.permute.xlu0 %1077
      %1079 = vrot.lane.b32.xlu0 %v1067, 114
      %v1080 = vpop.permute.xlu0 %1079
      %1081 = vrot.lane.b32.xlu0 %v1068, 114
      %v1082 = vpop.permute.xlu0 %1081
      %1083 = vrot.lane.b32.xlu0 %v1069, 114
      %v1084 = vpop.permute.xlu0 %1083
      %v1085 = vsel %vm432, %v1076, %v1078
      %v1086 = vsel %vm432, %v1078, %v1080
      %v1087 = vsel %vm432, %v1080, %v1082
      %v1088 = vsel %vm432, %v1082, %v1084
      %1093 = vst [vmem:[#allocation2 + $0x80] sm:$0xff] %v1085
      %1094 = vst [vmem:[#allocation2 + $0x88] sm:$0xff] %v1086
      %1095 = vst [vmem:[#allocation2 + $0x90] sm:$0xff] %v1087
      %1096 = vst [vmem:[#allocation2 + $0x98] sm:$0xff] %v1088
      %1097 = vrot.lane.b32.xlu0 %v680, 125
      %v1098 = vpop.permute.xlu0 %1097
      %1099 = vrot.lane.b32.xlu0 %v684, 125
      %v1100 = vpop.permute.xlu0 %1099
      %1101 = vrot.lane.b32.xlu0 %v688, 125
      %v1102 = vpop.permute.xlu0 %1101
      %1103 = vrot.lane.b32.xlu0 %v692, 125
      %v1104 = vpop.permute.xlu0 %1103
      %1105 = vrot.lane.b32.xlu0 %v713, 125
      %v1106 = vpop.permute.xlu0 %1105
      %v1107 = vsel %vm356, %v1098, %v1100
      %v1108 = vsel %vm356, %v1100, %v1102
      %v1109 = vsel %vm356, %v1102, %v1104
      %v1110 = vsel %vm356, %v1104, %v1106
      %1116 = vrot.lane.b32.xlu0 %v680, 124
      %v1117 = vpop.permute.xlu0 %1116
      %1118 = vrot.lane.b32.xlu0 %v684, 124
      %v1119 = vpop.permute.xlu0 %1118
      %1120 = vrot.lane.b32.xlu0 %v688, 124
      %v1121 = vpop.permute.xlu0 %1120
      %1122 = vrot.lane.b32.xlu0 %v692, 124
      %v1123 = vpop.permute.xlu0 %1122
      %1124 = vrot.lane.b32.xlu0 %v713, 124
      %v1125 = vpop.permute.xlu0 %1124
      %v1126 = vsel %vm375, %v1117, %v1119
      %v1127 = vsel %vm375, %v1119, %v1121
      %v1128 = vsel %vm375, %v1121, %v1123
      %v1129 = vsel %vm375, %v1123, %v1125
      %v1135 = vsel %vm451, %v1040, %v1107
      %v1136 = vsel %vm451, %v1041, %v1108
      %v1137 = vsel %vm451, %v1042, %v1109
      %v1138 = vsel %vm451, %v1043, %v1110
      %v1139 = vsel %vm451, %v1044, %v1106
      %v1140 = vsel %vm456, %v1135, %v1126
      %v1141 = vsel %vm456, %v1136, %v1127
      %v1142 = vsel %vm456, %v1137, %v1128
      %v1143 = vsel %vm456, %v1138, %v1129
      %v1144 = vsel %vm456, %v1139, %v1125
      %v1145 = vsel %vm461, %v1140, %v988
      %v1146 = vsel %vm461, %v1141, %v989
      %v1147 = vsel %vm461, %v1142, %v990
      %v1148 = vsel %vm461, %v1143, %v991
      %v1149 = vsel %vm461, %v1144, %v987
      %v1150 = vsel %vm466, %v1145, %v1007
      %v1151 = vsel %vm466, %v1146, %v1008
      %v1152 = vsel %vm466, %v1147, %v1009
      %v1153 = vsel %vm466, %v1148, %v1010
      %v1154 = vsel %vm466, %v1149, %v1006
      %v1155 = vsel %vm471, %v1150, %v1026
      %v1156 = vsel %vm471, %v1151, %v1027
      %v1157 = vsel %vm471, %v1152, %v1028
      %v1158 = vsel %vm471, %v1153, %v1029
      %v1159 = vsel %vm471, %v1154, %v1025
      %1165 = vrot.lane.b32.xlu0 %v1155, 92
      %v1166 = vpop.permute.xlu0 %1165
      %1167 = vrot.lane.b32.xlu0 %v1156, 92
      %v1168 = vpop.permute.xlu0 %1167
      %1169 = vrot.lane.b32.xlu0 %v1157, 92
      %v1170 = vpop.permute.xlu0 %1169
      %1171 = vrot.lane.b32.xlu0 %v1158, 92
      %v1172 = vpop.permute.xlu0 %1171
      %1173 = vrot.lane.b32.xlu0 %v1159, 92
      %v1174 = vpop.permute.xlu0 %1173
      %vm1175 = vcmask 752640
      %v1176 = vsel %vm1175, %v1166, %v1168
      %v1177 = vsel %vm1175, %v1168, %v1170
      %v1178 = vsel %vm1175, %v1170, %v1172
      %v1179 = vsel %vm1175, %v1172, %v1174
      %1184 = vst [vmem:[#allocation2 + $0xa0] sm:$0xff] %v1176
      %1185 = vst [vmem:[#allocation2 + $0xa8] sm:$0xff] %v1177
      %1186 = vst [vmem:[#allocation2 + $0xb0] sm:$0xff] %v1178
      %1187 = vst [vmem:[#allocation2 + $0xb8] sm:$0xff] %v1179
      %v1189 = vlaneseq
      %v1190 = vshrl.u32 %v1189, 7
      %v1191 = vsub.s32 0, %v1190
      %v1192 = vrot.slane %v272, %v1191
      %v1193 = vlaneseq
      %v1194 = vshrl.u32 %v1193, 7
      %v1195 = vsub.s32 1, %v1194
      %v1196 = vrot.slane %v272, %v1195
      %v1197 = vlaneseq
      %v1198 = vshrl.u32 %v1197, 7
      %v1199 = vsub.s32 2, %v1198
      %v1200 = vrot.slane %v272, %v1199
      %v1201 = vlaneseq
      %v1202 = vshrl.u32 %v1201, 7
      %v1203 = vsub.s32 3, %v1202
      %v1204 = vrot.slane %v272, %v1203
      %1205 = vrot.lane.b32.xlu0 %v1192, 51
      %v1206 = vpop.permute.xlu0 %1205
      %1207 = vrot.lane.b32.xlu0 %v1196, 51
      %v1208 = vpop.permute.xlu0 %1207
      %1209 = vrot.lane.b32.xlu0 %v1200, 51
      %v1210 = vpop.permute.xlu0 %1209
      %1211 = vrot.lane.b32.xlu0 %v1204, 51
      %v1212 = vpop.permute.xlu0 %1211
      %v1213 = vsel %vm724, %v1206, %v1208
      %v1214 = vsel %vm724, %v1208, %v1210
      %v1215 = vsel %vm724, %v1210, %v1212
      %v1221 = vlaneseq
      %v1222 = vshrl.u32 %v1221, 7
      %v1223 = vsub.s32 4, %v1222
      %v1224 = vrot.slane %v272, %v1223
      %1225 = vrot.lane.b32.xlu0 %v1192, 50
      %v1226 = vpop.permute.xlu0 %1225
      %1227 = vrot.lane.b32.xlu0 %v1196, 50
      %v1228 = vpop.permute.xlu0 %1227
      %1229 = vrot.lane.b32.xlu0 %v1200, 50
      %v1230 = vpop.permute.xlu0 %1229
      %1231 = vrot.lane.b32.xlu0 %v1204, 50
      %v1232 = vpop.permute.xlu0 %1231
      %1233 = vrot.lane.b32.xlu0 %v1224, 50
      %v1234 = vpop.permute.xlu0 %1233
      %v1235 = vsel %vm744, %v1226, %v1228
      %v1236 = vsel %vm744, %v1228, %v1230
      %v1237 = vsel %vm744, %v1230, %v1232
      %v1238 = vsel %vm744, %v1232, %v1234
      %1244 = vrot.lane.b32.xlu0 %v1192, 49
      %v1245 = vpop.permute.xlu0 %1244
      %1246 = vrot.lane.b32.xlu0 %v1196, 49
      %v1247 = vpop.permute.xlu0 %1246
      %1248 = vrot.lane.b32.xlu0 %v1200, 49
      %v1249 = vpop.permute.xlu0 %1248
      %1250 = vrot.lane.b32.xlu0 %v1204, 49
      %v1251 = vpop.permute.xlu0 %1250
      %1252 = vrot.lane.b32.xlu0 %v1224, 49
      %v1253 = vpop.permute.xlu0 %1252
      %v1254 = vsel %vm764, %v1245, %v1247
      %v1255 = vsel %vm764, %v1247, %v1249
      %v1256 = vsel %vm764, %v1249, %v1251
      %v1257 = vsel %vm764, %v1251, %v1253
      %1263 = vrot.lane.b32.xlu0 %v1192, 48
      %v1264 = vpop.permute.xlu0 %1263
      %1265 = vrot.lane.b32.xlu0 %v1196, 48
      %v1266 = vpop.permute.xlu0 %1265
      %1267 = vrot.lane.b32.xlu0 %v1200, 48
      %v1268 = vpop.permute.xlu0 %1267
      %1269 = vrot.lane.b32.xlu0 %v1204, 48
      %v1270 = vpop.permute.xlu0 %1269
      %1271 = vrot.lane.b32.xlu0 %v1224, 48
      %v1272 = vpop.permute.xlu0 %1271
      %v1273 = vsel %vm784, %v1264, %v1266
      %v1274 = vsel %vm784, %v1266, %v1268
      %v1275 = vsel %vm784, %v1268, %v1270
      %v1276 = vsel %vm784, %v1270, %v1272
      %1282 = vrot.lane.b32.xlu0 %v1192, 47
      %v1283 = vpop.permute.xlu0 %1282
      %1284 = vrot.lane.b32.xlu0 %v1196, 47
      %v1285 = vpop.permute.xlu0 %1284
      %1286 = vrot.lane.b32.xlu0 %v1200, 47
      %v1287 = vpop.permute.xlu0 %1286
      %1288 = vrot.lane.b32.xlu0 %v1204, 47
      %v1289 = vpop.permute.xlu0 %1288
      %1290 = vrot.lane.b32.xlu0 %v1224, 47
      %v1291 = vpop.permute.xlu0 %1290
      %vm1292 = vcmask 384000
      %v1293 = vsel %vm1292, %v1283, %v1285
      %v1294 = vsel %vm1292, %v1285, %v1287
      %v1295 = vsel %vm1292, %v1287, %v1289
      %v1296 = vsel %vm1292, %v1289, %v1291
      %1302 = vrot.lane.b32.xlu0 %v1192, 39
      %v1303 = vpop.permute.xlu0 %1302
      %1304 = vrot.lane.b32.xlu0 %v1196, 39
      %v1305 = vpop.permute.xlu0 %1304
      %1306 = vrot.lane.b32.xlu0 %v1200, 39
      %v1307 = vpop.permute.xlu0 %1306
      %1308 = vrot.lane.b32.xlu0 %v1204, 39
      %v1309 = vpop.permute.xlu0 %1308
      %1310 = vrot.lane.b32.xlu0 %v1224, 39
      %v1311 = vpop.permute.xlu0 %1310
      %v1312 = vsel %vm824, %v1303, %v1305
      %v1313 = vsel %vm824, %v1305, %v1307
      %v1314 = vsel %vm824, %v1307, %v1309
      %v1315 = vsel %vm824, %v1309, %v1311
      %v1321 = vsel %vm446, %v1035, %v1206
      %v1322 = vsel %vm446, %v1036, %v1213
      %v1323 = vsel %vm446, %v1037, %v1214
      %v1324 = vsel %vm446, %v1038, %v1215
      %v1325 = vsel %vm446, %v1039, %v1212
      %v1326 = vsel %vm451, %v1321, %v1226
      %v1327 = vsel %vm451, %v1322, %v1235
      %v1328 = vsel %vm451, %v1323, %v1236
      %v1329 = vsel %vm451, %v1324, %v1237
      %v1330 = vsel %vm451, %v1325, %v1238
      %v1331 = vsel %vm456, %v1326, %v1245
      %v1332 = vsel %vm456, %v1327, %v1254
      %v1333 = vsel %vm456, %v1328, %v1255
      %v1334 = vsel %vm456, %v1329, %v1256
      %v1335 = vsel %vm456, %v1330, %v1257
      %v1336 = vsel %vm461, %v1331, %v1264
      %v1337 = vsel %vm461, %v1332, %v1273
      %v1338 = vsel %vm461, %v1333, %v1274
      %v1339 = vsel %vm461, %v1334, %v1275
      %v1340 = vsel %vm461, %v1335, %v1276
      %v1341 = vsel %vm466, %v1336, %v1283
      %v1342 = vsel %vm466, %v1337, %v1293
      %v1343 = vsel %vm466, %v1338, %v1294
      %v1344 = vsel %vm466, %v1339, %v1295
      %v1345 = vsel %vm466, %v1340, %v1296
      %v1346 = vsel %vm471, %v1341, %v1303
      %v1347 = vsel %vm471, %v1342, %v1312
      %v1348 = vsel %vm471, %v1343, %v1313
      %v1349 = vsel %vm471, %v1344, %v1314
      %v1350 = vsel %vm471, %v1345, %v1315
      %1356 = vrot.lane.b32.xlu0 %v1346, 77
      %v1357 = vpop.permute.xlu0 %1356
      %1358 = vrot.lane.b32.xlu0 %v1347, 77
      %v1359 = vpop.permute.xlu0 %1358
      %1360 = vrot.lane.b32.xlu0 %v1348, 77
      %v1361 = vpop.permute.xlu0 %1360
      %1362 = vrot.lane.b32.xlu0 %v1349, 77
      %v1363 = vpop.permute.xlu0 %1362
      %1364 = vrot.lane.b32.xlu0 %v1350, 77
      %v1365 = vpop.permute.xlu0 %1364
      %vm1366 = vcmask 629760
      %v1367 = vsel %vm1366, %v1357, %v1359
      %v1368 = vsel %vm1366, %v1359, %v1361
      %v1369 = vsel %vm1366, %v1361, %v1363
      %v1370 = vsel %vm1366, %v1363, %v1365
      %1375 = vst [vmem:[#allocation2 + $0xc0] sm:$0xff] %v1367
      %1376 = vst [vmem:[#allocation2 + $0xc8] sm:$0xff] %v1368
      %1377 = vst [vmem:[#allocation2 + $0xd0] sm:$0xff] %v1369
      %1378 = vst [vmem:[#allocation2 + $0xd8] sm:$0xff] %v1370
      %1384 = vrot.lane.b32.xlu0 %v1192, 127
      %v1385 = vpop.permute.xlu0 %1384
      %1386 = vrot.lane.b32.xlu0 %v1196, 127
      %v1387 = vpop.permute.xlu0 %1386
      %1388 = vrot.lane.b32.xlu0 %v1200, 127
      %v1389 = vpop.permute.xlu0 %1388
      %1390 = vrot.lane.b32.xlu0 %v1204, 127
      %v1391 = vpop.permute.xlu0 %1390
      %1392 = vrot.lane.b32.xlu0 %v1224, 127
      %v1393 = vpop.permute.xlu0 %1392
      %v1394 = vsel %vm318, %v1385, %v1387
      %v1395 = vsel %vm318, %v1387, %v1389
      %v1396 = vsel %vm318, %v1389, %v1391
      %v1397 = vsel %vm318, %v1391, %v1393
      %1403 = vrot.lane.b32.xlu0 %v1192, 126
      %v1404 = vpop.permute.xlu0 %1403
      %1405 = vrot.lane.b32.xlu0 %v1196, 126
      %v1406 = vpop.permute.xlu0 %1405
      %1407 = vrot.lane.b32.xlu0 %v1200, 126
      %v1408 = vpop.permute.xlu0 %1407
      %1409 = vrot.lane.b32.xlu0 %v1204, 126
      %v1410 = vpop.permute.xlu0 %1409
      %1411 = vrot.lane.b32.xlu0 %v1224, 126
      %v1412 = vpop.permute.xlu0 %1411
      %v1413 = vsel %vm337, %v1404, %v1406
      %v1414 = vsel %vm337, %v1406, %v1408
      %v1415 = vsel %vm337, %v1408, %v1410
      %v1416 = vsel %vm337, %v1410, %v1412
      %1422 = vrot.lane.b32.xlu0 %v1192, 125
      %v1423 = vpop.permute.xlu0 %1422
      %1424 = vrot.lane.b32.xlu0 %v1196, 125
      %v1425 = vpop.permute.xlu0 %1424
      %1426 = vrot.lane.b32.xlu0 %v1200, 125
      %v1427 = vpop.permute.xlu0 %1426
      %1428 = vrot.lane.b32.xlu0 %v1204, 125
      %v1429 = vpop.permute.xlu0 %1428
      %1430 = vrot.lane.b32.xlu0 %v1224, 125
      %v1431 = vpop.permute.xlu0 %1430
      %v1432 = vsel %vm356, %v1423, %v1425
      %v1433 = vsel %vm356, %v1425, %v1427
      %v1434 = vsel %vm356, %v1427, %v1429
      %v1435 = vsel %vm356, %v1429, %v1431
      %1441 = vrot.lane.b32.xlu0 %v1192, 117
      %v1442 = vpop.permute.xlu0 %1441
      %1443 = vrot.lane.b32.xlu0 %v1196, 117
      %v1444 = vpop.permute.xlu0 %1443
      %1445 = vrot.lane.b32.xlu0 %v1200, 117
      %v1446 = vpop.permute.xlu0 %1445
      %1447 = vrot.lane.b32.xlu0 %v1204, 117
      %v1448 = vpop.permute.xlu0 %1447
      %1449 = vrot.lane.b32.xlu0 %v1224, 117
      %v1450 = vpop.permute.xlu0 %1449
      %v1451 = vsel %vm532, %v1442, %v1444
      %v1452 = vsel %vm532, %v1444, %v1446
      %v1453 = vsel %vm532, %v1446, %v1448
      %v1454 = vsel %vm532, %v1448, %v1450
      %1460 = vrot.lane.b32.xlu0 %v1192, 116
      %v1461 = vpop.permute.xlu0 %1460
      %1462 = vrot.lane.b32.xlu0 %v1196, 116
      %v1463 = vpop.permute.xlu0 %1462
      %1464 = vrot.lane.b32.xlu0 %v1200, 116
      %v1465 = vpop.permute.xlu0 %1464
      %1466 = vrot.lane.b32.xlu0 %v1204, 116
      %v1467 = vpop.permute.xlu0 %1466
      %1468 = vrot.lane.b32.xlu0 %v1224, 116
      %v1469 = vpop.permute.xlu0 %1468
      %v1470 = vsel %vm394, %v1461, %v1463
      %v1471 = vsel %vm394, %v1463, %v1465
      %v1472 = vsel %vm394, %v1465, %v1467
      %v1473 = vsel %vm394, %v1467, %v1469
      %1479 = vrot.lane.b32.xlu0 %v1192, 115
      %v1480 = vpop.permute.xlu0 %1479
      %1481 = vrot.lane.b32.xlu0 %v1196, 115
      %v1482 = vpop.permute.xlu0 %1481
      %1483 = vrot.lane.b32.xlu0 %v1200, 115
      %v1484 = vpop.permute.xlu0 %1483
      %1485 = vrot.lane.b32.xlu0 %v1204, 115
      %v1486 = vpop.permute.xlu0 %1485
      %1487 = vrot.lane.b32.xlu0 %v1224, 115
      %v1488 = vpop.permute.xlu0 %1487
      %v1489 = vsel %vm413, %v1480, %v1482
      %v1490 = vsel %vm413, %v1482, %v1484
      %v1491 = vsel %vm413, %v1484, %v1486
      %v1492 = vsel %vm413, %v1486, %v1488
      %1498 = vrot.lane.b32.xlu0 %v1192, 114
      %v1499 = vpop.permute.xlu0 %1498
      %1500 = vrot.lane.b32.xlu0 %v1196, 114
      %v1501 = vpop.permute.xlu0 %1500
      %1502 = vrot.lane.b32.xlu0 %v1200, 114
      %v1503 = vpop.permute.xlu0 %1502
      %1504 = vrot.lane.b32.xlu0 %v1204, 114
      %v1505 = vpop.permute.xlu0 %1504
      %1506 = vrot.lane.b32.xlu0 %v1224, 114
      %v1507 = vpop.permute.xlu0 %1506
      %v1508 = vsel %vm432, %v1499, %v1501
      %v1509 = vsel %vm432, %v1501, %v1503
      %v1510 = vsel %vm432, %v1503, %v1505
      %v1511 = vsel %vm432, %v1505, %v1507
      %v1517 = vsel %vm441, %v1192, %v1394
      %v1518 = vsel %vm441, %v1196, %v1395
      %v1519 = vsel %vm441, %v1200, %v1396
      %v1520 = vsel %vm441, %v1204, %v1397
      %v1521 = vsel %vm441, %v1224, %v1393
      %v1522 = vsel %vm446, %v1517, %v1413
      %v1523 = vsel %vm446, %v1518, %v1414
      %v1524 = vsel %vm446, %v1519, %v1415
      %v1525 = vsel %vm446, %v1520, %v1416
      %v1526 = vsel %vm446, %v1521, %v1412
      %v1527 = vsel %vm451, %v1522, %v1432
      %v1528 = vsel %vm451, %v1523, %v1433
      %v1529 = vsel %vm451, %v1524, %v1434
      %v1530 = vsel %vm451, %v1525, %v1435
      %v1531 = vsel %vm451, %v1526, %v1431
      %v1532 = vsel %vm456, %v1527, %v1451
      %v1533 = vsel %vm456, %v1528, %v1452
      %v1534 = vsel %vm456, %v1529, %v1453
      %v1535 = vsel %vm456, %v1530, %v1454
      %v1536 = vsel %vm456, %v1531, %v1450
      %v1537 = vsel %vm461, %v1532, %v1470
      %v1538 = vsel %vm461, %v1533, %v1471
      %v1539 = vsel %vm461, %v1534, %v1472
      %v1540 = vsel %vm461, %v1535, %v1473
      %v1541 = vsel %vm461, %v1536, %v1469
      %v1542 = vsel %vm466, %v1537, %v1489
      %v1543 = vsel %vm466, %v1538, %v1490
      %v1544 = vsel %vm466, %v1539, %v1491
      %v1545 = vsel %vm466, %v1540, %v1492
      %v1546 = vsel %vm466, %v1541, %v1488
      %v1547 = vsel %vm471, %v1542, %v1508
      %v1548 = vsel %vm471, %v1543, %v1509
      %v1549 = vsel %vm471, %v1544, %v1510
      %v1550 = vsel %vm471, %v1545, %v1511
      %v1551 = vsel %vm471, %v1546, %v1507
      %1557 = vrot.lane.b32.xlu0 %v1547, 115
      %v1558 = vpop.permute.xlu0 %1557
      %1559 = vrot.lane.b32.xlu0 %v1548, 115
      %v1560 = vpop.permute.xlu0 %1559
      %1561 = vrot.lane.b32.xlu0 %v1549, 115
      %v1562 = vpop.permute.xlu0 %1561
      %1563 = vrot.lane.b32.xlu0 %v1550, 115
      %v1564 = vpop.permute.xlu0 %1563
      %1565 = vrot.lane.b32.xlu0 %v1551, 115
      %v1566 = vpop.permute.xlu0 %1565
      %v1567 = vsel %vm413, %v1558, %v1560
      %v1568 = vsel %vm413, %v1560, %v1562
      %v1569 = vsel %vm413, %v1562, %v1564
      %v1570 = vsel %vm413, %v1564, %v1566
      %1575 = vst [vmem:[#allocation2 + $0xe0] sm:$0xff] %v1567
      %1576 = vst [vmem:[#allocation2 + $0xe8] sm:$0xff] %v1568
      %1577 = vst [vmem:[#allocation2 + $0xf0] sm:$0xff] %v1569
      %1578 = vst [vmem:[#allocation2 + $0xf8] sm:$0xff] %v1570
      %1579 = vrot.lane.b32.xlu0 %v1192, 120
      %v1580 = vpop.permute.xlu0 %1579
      %1581 = vrot.lane.b32.xlu0 %v1196, 120
      %v1582 = vpop.permute.xlu0 %1581
      %1583 = vrot.lane.b32.xlu0 %v1200, 120
      %v1584 = vpop.permute.xlu0 %1583
      %1585 = vrot.lane.b32.xlu0 %v1204, 120
      %v1586 = vpop.permute.xlu0 %1585
      %1587 = vrot.lane.b32.xlu0 %v1224, 120
      %v1588 = vpop.permute.xlu0 %1587
      %vm1589 = vcmask 982016
      %v1590 = vsel %vm1589, %v1580, %v1582
      %v1591 = vsel %vm1589, %v1582, %v1584
      %v1592 = vsel %vm1589, %v1584, %v1586
      %v1593 = vsel %vm1589, %v1586, %v1588
      %1599 = vrot.lane.b32.xlu0 %v1192, 119
      %v1600 = vpop.permute.xlu0 %1599
      %1601 = vrot.lane.b32.xlu0 %v1196, 119
      %v1602 = vpop.permute.xlu0 %1601
      %1603 = vrot.lane.b32.xlu0 %v1200, 119
      %v1604 = vpop.permute.xlu0 %1603
      %1605 = vrot.lane.b32.xlu0 %v1204, 119
      %v1606 = vpop.permute.xlu0 %1605
      %1607 = vrot.lane.b32.xlu0 %v1224, 119
      %v1608 = vpop.permute.xlu0 %1607
      %v1609 = vsel %vm492, %v1600, %v1602
      %v1610 = vsel %vm492, %v1602, %v1604
      %v1611 = vsel %vm492, %v1604, %v1606
      %v1612 = vsel %vm492, %v1606, %v1608
      %1618 = vrot.lane.b32.xlu0 %v1192, 118
      %v1619 = vpop.permute.xlu0 %1618
      %1620 = vrot.lane.b32.xlu0 %v1196, 118
      %v1621 = vpop.permute.xlu0 %1620
      %1622 = vrot.lane.b32.xlu0 %v1200, 118
      %v1623 = vpop.permute.xlu0 %1622
      %1624 = vrot.lane.b32.xlu0 %v1204, 118
      %v1625 = vpop.permute.xlu0 %1624
      %1626 = vrot.lane.b32.xlu0 %v1224, 118
      %v1627 = vpop.permute.xlu0 %1626
      %v1628 = vsel %vm512, %v1619, %v1621
      %v1629 = vsel %vm512, %v1621, %v1623
      %v1630 = vsel %vm512, %v1623, %v1625
      %v1631 = vsel %vm512, %v1625, %v1627
      %1637 = vrot.lane.b32.xlu0 %v1192, 108
      %v1638 = vpop.permute.xlu0 %1637
      %1639 = vrot.lane.b32.xlu0 %v1196, 108
      %v1640 = vpop.permute.xlu0 %1639
      %1641 = vrot.lane.b32.xlu0 %v1200, 108
      %v1642 = vpop.permute.xlu0 %1641
      %1643 = vrot.lane.b32.xlu0 %v1204, 108
      %v1644 = vpop.permute.xlu0 %1643
      %1645 = vrot.lane.b32.xlu0 %v1224, 108
      %v1646 = vpop.permute.xlu0 %1645
      %vm1647 = vcmask 883712
      %v1648 = vsel %vm1647, %v1638, %v1640
      %v1649 = vsel %vm1647, %v1640, %v1642
      %v1650 = vsel %vm1647, %v1642, %v1644
      %v1651 = vsel %vm1647, %v1644, %v1646
      %1657 = vrot.lane.b32.xlu0 %v1192, 107
      %v1658 = vpop.permute.xlu0 %1657
      %1659 = vrot.lane.b32.xlu0 %v1196, 107
      %v1660 = vpop.permute.xlu0 %1659
      %1661 = vrot.lane.b32.xlu0 %v1200, 107
      %v1662 = vpop.permute.xlu0 %1661
      %1663 = vrot.lane.b32.xlu0 %v1204, 107
      %v1664 = vpop.permute.xlu0 %1663
      %1665 = vrot.lane.b32.xlu0 %v1224, 107
      %v1666 = vpop.permute.xlu0 %1665
      %v1667 = vsel %vm554, %v1658, %v1660
      %v1668 = vsel %vm554, %v1660, %v1662
      %v1669 = vsel %vm554, %v1662, %v1664
      %v1670 = vsel %vm554, %v1664, %v1666
      %v1676 = vsel %vm441, %v1192, %v1590
      %v1677 = vsel %vm441, %v1196, %v1591
      %v1678 = vsel %vm441, %v1200, %v1592
      %v1679 = vsel %vm441, %v1204, %v1593
      %v1680 = vsel %vm441, %v1224, %v1588
      %v1681 = vsel %vm446, %v1676, %v1609
      %v1682 = vsel %vm446, %v1677, %v1610
      %v1683 = vsel %vm446, %v1678, %v1611
      %v1684 = vsel %vm446, %v1679, %v1612
      %v1685 = vsel %vm446, %v1680, %v1608
      %v1686 = vsel %vm451, %v1681, %v1628
      %v1687 = vsel %vm451, %v1682, %v1629
      %v1688 = vsel %vm451, %v1683, %v1630
      %v1689 = vsel %vm451, %v1684, %v1631
      %v1690 = vsel %vm451, %v1685, %v1627
      %v1691 = vsel %vm456, %v1686, %v1451
      %v1692 = vsel %vm456, %v1687, %v1452
      %v1693 = vsel %vm456, %v1688, %v1453
      %v1694 = vsel %vm456, %v1689, %v1454
      %v1695 = vsel %vm456, %v1690, %v1450
      %v1696 = vsel %vm461, %v1691, %v1470
      %v1697 = vsel %vm461, %v1692, %v1471
      %v1698 = vsel %vm461, %v1693, %v1472
      %v1699 = vsel %vm461, %v1694, %v1473
      %v1700 = vsel %vm461, %v1695, %v1469
      %v1701 = vsel %vm466, %v1696, %v1648
      %v1702 = vsel %vm466, %v1697, %v1649
      %v1703 = vsel %vm466, %v1698, %v1650
      %v1704 = vsel %vm466, %v1699, %v1651
      %v1705 = vsel %vm466, %v1700, %v1646
      %v1706 = vsel %vm471, %v1701, %v1667
      %v1707 = vsel %vm471, %v1702, %v1668
      %v1708 = vsel %vm471, %v1703, %v1669
      %v1709 = vsel %vm471, %v1704, %v1670
      %v1710 = vsel %vm471, %v1705, %v1666
      %1716 = vrot.lane.b32.xlu0 %v1706, 100
      %v1717 = vpop.permute.xlu0 %1716
      %1718 = vrot.lane.b32.xlu0 %v1707, 100
      %v1719 = vpop.permute.xlu0 %1718
      %1720 = vrot.lane.b32.xlu0 %v1708, 100
      %v1721 = vpop.permute.xlu0 %1720
      %1722 = vrot.lane.b32.xlu0 %v1709, 100
      %v1723 = vpop.permute.xlu0 %1722
      %1724 = vrot.lane.b32.xlu0 %v1710, 100
      %v1725 = vpop.permute.xlu0 %1724
      %vm1726 = vcmask 818176
      %v1727 = vsel %vm1726, %v1717, %v1719
      %v1728 = vsel %vm1726, %v1719, %v1721
      %v1729 = vsel %vm1726, %v1721, %v1723
      %v1730 = vsel %vm1726, %v1723, %v1725
      %1735 = vst [vmem:[#allocation2 + $0x100] sm:$0xff] %v1727
      %1736 = vst [vmem:[#allocation2 + $0x108] sm:$0xff] %v1728
      %1737 = vst [vmem:[#allocation2 + $0x110] sm:$0xff] %v1729
      %1738 = vst [vmem:[#allocation2 + $0x118] sm:$0xff] %v1730
      %v1740 = vlaneseq
      %v1741 = vshrl.u32 %v1740, 7
      %v1742 = vsub.s32 0, %v1741
      %v1743 = vrot.slane %v277, %v1742
      %v1744 = vlaneseq
      %v1745 = vshrl.u32 %v1744, 7
      %v1746 = vsub.s32 1, %v1745
      %v1747 = vrot.slane %v277, %v1746
      %v1748 = vlaneseq
      %v1749 = vshrl.u32 %v1748, 7
      %v1750 = vsub.s32 2, %v1749
      %v1751 = vrot.slane %v277, %v1750
      %v1752 = vlaneseq
      %v1753 = vshrl.u32 %v1752, 7
      %v1754 = vsub.s32 3, %v1753
      %v1755 = vrot.slane %v277, %v1754
      %1756 = vrot.lane.b32.xlu0 %v1743, 50
      %v1757 = vpop.permute.xlu0 %1756
      %1758 = vrot.lane.b32.xlu0 %v1747, 50
      %v1759 = vpop.permute.xlu0 %1758
      %1760 = vrot.lane.b32.xlu0 %v1751, 50
      %v1761 = vpop.permute.xlu0 %1760
      %1762 = vrot.lane.b32.xlu0 %v1755, 50
      %v1763 = vpop.permute.xlu0 %1762
      %v1764 = vsel %vm744, %v1757, %v1759
      %v1765 = vsel %vm744, %v1759, %v1761
      %v1766 = vsel %vm744, %v1761, %v1763
      %v1772 = vlaneseq
      %v1773 = vshrl.u32 %v1772, 7
      %v1774 = vsub.s32 4, %v1773
      %v1775 = vrot.slane %v277, %v1774
      %1776 = vrot.lane.b32.xlu0 %v1743, 49
      %v1777 = vpop.permute.xlu0 %1776
      %1778 = vrot.lane.b32.xlu0 %v1747, 49
      %v1779 = vpop.permute.xlu0 %1778
      %1780 = vrot.lane.b32.xlu0 %v1751, 49
      %v1781 = vpop.permute.xlu0 %1780
      %1782 = vrot.lane.b32.xlu0 %v1755, 49
      %v1783 = vpop.permute.xlu0 %1782
      %1784 = vrot.lane.b32.xlu0 %v1775, 49
      %v1785 = vpop.permute.xlu0 %1784
      %v1786 = vsel %vm764, %v1777, %v1779
      %v1787 = vsel %vm764, %v1779, %v1781
      %v1788 = vsel %vm764, %v1781, %v1783
      %v1789 = vsel %vm764, %v1783, %v1785
      %1795 = vrot.lane.b32.xlu0 %v1743, 48
      %v1796 = vpop.permute.xlu0 %1795
      %1797 = vrot.lane.b32.xlu0 %v1747, 48
      %v1798 = vpop.permute.xlu0 %1797
      %1799 = vrot.lane.b32.xlu0 %v1751, 48
      %v1800 = vpop.permute.xlu0 %1799
      %1801 = vrot.lane.b32.xlu0 %v1755, 48
      %v1802 = vpop.permute.xlu0 %1801
      %1803 = vrot.lane.b32.xlu0 %v1775, 48
      %v1804 = vpop.permute.xlu0 %1803
      %v1805 = vsel %vm784, %v1796, %v1798
      %v1806 = vsel %vm784, %v1798, %v1800
      %v1807 = vsel %vm784, %v1800, %v1802
      %v1808 = vsel %vm784, %v1802, %v1804
      %1814 = vrot.lane.b32.xlu0 %v1743, 47
      %v1815 = vpop.permute.xlu0 %1814
      %1816 = vrot.lane.b32.xlu0 %v1747, 47
      %v1817 = vpop.permute.xlu0 %1816
      %1818 = vrot.lane.b32.xlu0 %v1751, 47
      %v1819 = vpop.permute.xlu0 %1818
      %1820 = vrot.lane.b32.xlu0 %v1755, 47
      %v1821 = vpop.permute.xlu0 %1820
      %1822 = vrot.lane.b32.xlu0 %v1775, 47
      %v1823 = vpop.permute.xlu0 %1822
      %v1824 = vsel %vm1292, %v1815, %v1817
      %v1825 = vsel %vm1292, %v1817, %v1819
      %v1826 = vsel %vm1292, %v1819, %v1821
      %v1827 = vsel %vm1292, %v1821, %v1823
      %1833 = vrot.lane.b32.xlu0 %v1743, 46
      %v1834 = vpop.permute.xlu0 %1833
      %1835 = vrot.lane.b32.xlu0 %v1747, 46
      %v1836 = vpop.permute.xlu0 %1835
      %1837 = vrot.lane.b32.xlu0 %v1751, 46
      %v1838 = vpop.permute.xlu0 %1837
      %1839 = vrot.lane.b32.xlu0 %v1755, 46
      %v1840 = vpop.permute.xlu0 %1839
      %1841 = vrot.lane.b32.xlu0 %v1775, 46
      %v1842 = vpop.permute.xlu0 %1841
      %vm1843 = vcmask 375808
      %v1844 = vsel %vm1843, %v1834, %v1836
      %v1845 = vsel %vm1843, %v1836, %v1838
      %v1846 = vsel %vm1843, %v1838, %v1840
      %v1847 = vsel %vm1843, %v1840, %v1842
      %v1853 = vsel %vm451, %v1522, %v1757
      %v1854 = vsel %vm451, %v1523, %v1764
      %v1855 = vsel %vm451, %v1524, %v1765
      %v1856 = vsel %vm451, %v1525, %v1766
      %v1857 = vsel %vm451, %v1526, %v1763
      %v1858 = vsel %vm456, %v1853, %v1777
      %v1859 = vsel %vm456, %v1854, %v1786
      %v1860 = vsel %vm456, %v1855, %v1787
      %v1861 = vsel %vm456, %v1856, %v1788
      %v1862 = vsel %vm456, %v1857, %v1789
      %v1863 = vsel %vm461, %v1858, %v1796
      %v1864 = vsel %vm461, %v1859, %v1805
      %v1865 = vsel %vm461, %v1860, %v1806
      %v1866 = vsel %vm461, %v1861, %v1807
      %v1867 = vsel %vm461, %v1862, %v1808
      %v1868 = vsel %vm466, %v1863, %v1815
      %v1869 = vsel %vm466, %v1864, %v1824
      %v1870 = vsel %vm466, %v1865, %v1825
      %v1871 = vsel %vm466, %v1866, %v1826
      %v1872 = vsel %vm466, %v1867, %v1827
      %v1873 = vsel %vm471, %v1868, %v1834
      %v1874 = vsel %vm471, %v1869, %v1844
      %v1875 = vsel %vm471, %v1870, %v1845
      %v1876 = vsel %vm471, %v1871, %v1846
      %v1877 = vsel %vm471, %v1872, %v1847
      %1883 = vrot.lane.b32.xlu0 %v1873, 78
      %v1884 = vpop.permute.xlu0 %1883
      %1885 = vrot.lane.b32.xlu0 %v1874, 78
      %v1886 = vpop.permute.xlu0 %1885
      %1887 = vrot.lane.b32.xlu0 %v1875, 78
      %v1888 = vpop.permute.xlu0 %1887
      %1889 = vrot.lane.b32.xlu0 %v1876, 78
      %v1890 = vpop.permute.xlu0 %1889
      %1891 = vrot.lane.b32.xlu0 %v1877, 78
      %v1892 = vpop.permute.xlu0 %1891
      %vm1893 = vcmask 637952
      %v1894 = vsel %vm1893, %v1884, %v1886
      %v1895 = vsel %vm1893, %v1886, %v1888
      %v1896 = vsel %vm1893, %v1888, %v1890
      %v1897 = vsel %vm1893, %v1890, %v1892
      %1902 = vst [vmem:[#allocation2 + $0x120] sm:$0xff] %v1894
      %1903 = vst [vmem:[#allocation2 + $0x128] sm:$0xff] %v1895
      %1904 = vst [vmem:[#allocation2 + $0x130] sm:$0xff] %v1896
      %1905 = vst [vmem:[#allocation2 + $0x138] sm:$0xff] %v1897
      %1911 = vrot.lane.b32.xlu0 %v1743, 127
      %v1912 = vpop.permute.xlu0 %1911
      %1913 = vrot.lane.b32.xlu0 %v1747, 127
      %v1914 = vpop.permute.xlu0 %1913
      %1915 = vrot.lane.b32.xlu0 %v1751, 127
      %v1916 = vpop.permute.xlu0 %1915
      %1917 = vrot.lane.b32.xlu0 %v1755, 127
      %v1918 = vpop.permute.xlu0 %1917
      %1919 = vrot.lane.b32.xlu0 %v1775, 127
      %v1920 = vpop.permute.xlu0 %1919
      %v1921 = vsel %vm318, %v1912, %v1914
      %v1922 = vsel %vm318, %v1914, %v1916
      %v1923 = vsel %vm318, %v1916, %v1918
      %v1924 = vsel %vm318, %v1918, %v1920
      %1930 = vrot.lane.b32.xlu0 %v1743, 126
      %v1931 = vpop.permute.xlu0 %1930
      %1932 = vrot.lane.b32.xlu0 %v1747, 126
      %v1933 = vpop.permute.xlu0 %1932
      %1934 = vrot.lane.b32.xlu0 %v1751, 126
      %v1935 = vpop.permute.xlu0 %1934
      %1936 = vrot.lane.b32.xlu0 %v1755, 126
      %v1937 = vpop.permute.xlu0 %1936
      %1938 = vrot.lane.b32.xlu0 %v1775, 126
      %v1939 = vpop.permute.xlu0 %1938
      %v1940 = vsel %vm337, %v1931, %v1933
      %v1941 = vsel %vm337, %v1933, %v1935
      %v1942 = vsel %vm337, %v1935, %v1937
      %v1943 = vsel %vm337, %v1937, %v1939
      %1949 = vrot.lane.b32.xlu0 %v1743, 125
      %v1950 = vpop.permute.xlu0 %1949
      %1951 = vrot.lane.b32.xlu0 %v1747, 125
      %v1952 = vpop.permute.xlu0 %1951
      %1953 = vrot.lane.b32.xlu0 %v1751, 125
      %v1954 = vpop.permute.xlu0 %1953
      %1955 = vrot.lane.b32.xlu0 %v1755, 125
      %v1956 = vpop.permute.xlu0 %1955
      %1957 = vrot.lane.b32.xlu0 %v1775, 125
      %v1958 = vpop.permute.xlu0 %1957
      %v1959 = vsel %vm356, %v1950, %v1952
      %v1960 = vsel %vm356, %v1952, %v1954
      %v1961 = vsel %vm356, %v1954, %v1956
      %v1962 = vsel %vm356, %v1956, %v1958
      %1968 = vrot.lane.b32.xlu0 %v1743, 124
      %v1969 = vpop.permute.xlu0 %1968
      %1970 = vrot.lane.b32.xlu0 %v1747, 124
      %v1971 = vpop.permute.xlu0 %1970
      %1972 = vrot.lane.b32.xlu0 %v1751, 124
      %v1973 = vpop.permute.xlu0 %1972
      %1974 = vrot.lane.b32.xlu0 %v1755, 124
      %v1975 = vpop.permute.xlu0 %1974
      %1976 = vrot.lane.b32.xlu0 %v1775, 124
      %v1977 = vpop.permute.xlu0 %1976
      %v1978 = vsel %vm375, %v1969, %v1971
      %v1979 = vsel %vm375, %v1971, %v1973
      %v1980 = vsel %vm375, %v1973, %v1975
      %v1981 = vsel %vm375, %v1975, %v1977
      %1987 = vrot.lane.b32.xlu0 %v1743, 116
      %v1988 = vpop.permute.xlu0 %1987
      %1989 = vrot.lane.b32.xlu0 %v1747, 116
      %v1990 = vpop.permute.xlu0 %1989
      %1991 = vrot.lane.b32.xlu0 %v1751, 116
      %v1992 = vpop.permute.xlu0 %1991
      %1993 = vrot.lane.b32.xlu0 %v1755, 116
      %v1994 = vpop.permute.xlu0 %1993
      %1995 = vrot.lane.b32.xlu0 %v1775, 116
      %v1996 = vpop.permute.xlu0 %1995
      %v1997 = vsel %vm394, %v1988, %v1990
      %v1998 = vsel %vm394, %v1990, %v1992
      %v1999 = vsel %vm394, %v1992, %v1994
      %v2000 = vsel %vm394, %v1994, %v1996
      %2006 = vrot.lane.b32.xlu0 %v1743, 115
      %v2007 = vpop.permute.xlu0 %2006
      %2008 = vrot.lane.b32.xlu0 %v1747, 115
      %v2009 = vpop.permute.xlu0 %2008
      %2010 = vrot.lane.b32.xlu0 %v1751, 115
      %v2011 = vpop.permute.xlu0 %2010
      %2012 = vrot.lane.b32.xlu0 %v1755, 115
      %v2013 = vpop.permute.xlu0 %2012
      %2014 = vrot.lane.b32.xlu0 %v1775, 115
      %v2015 = vpop.permute.xlu0 %2014
      %v2016 = vsel %vm413, %v2007, %v2009
      %v2017 = vsel %vm413, %v2009, %v2011
      %v2018 = vsel %vm413, %v2011, %v2013
      %v2019 = vsel %vm413, %v2013, %v2015
      %2025 = vrot.lane.b32.xlu0 %v1743, 114
      %v2026 = vpop.permute.xlu0 %2025
      %2027 = vrot.lane.b32.xlu0 %v1747, 114
      %v2028 = vpop.permute.xlu0 %2027
      %2029 = vrot.lane.b32.xlu0 %v1751, 114
      %v2030 = vpop.permute.xlu0 %2029
      %2031 = vrot.lane.b32.xlu0 %v1755, 114
      %v2032 = vpop.permute.xlu0 %2031
      %2033 = vrot.lane.b32.xlu0 %v1775, 114
      %v2034 = vpop.permute.xlu0 %2033
      %v2035 = vsel %vm432, %v2026, %v2028
      %v2036 = vsel %vm432, %v2028, %v2030
      %v2037 = vsel %vm432, %v2030, %v2032
      %v2038 = vsel %vm432, %v2032, %v2034
      %v2044 = vsel %vm441, %v1743, %v1921
      %v2045 = vsel %vm441, %v1747, %v1922
      %v2046 = vsel %vm441, %v1751, %v1923
      %v2047 = vsel %vm441, %v1755, %v1924
      %v2048 = vsel %vm441, %v1775, %v1920
      %v2049 = vsel %vm446, %v2044, %v1940
      %v2050 = vsel %vm446, %v2045, %v1941
      %v2051 = vsel %vm446, %v2046, %v1942
      %v2052 = vsel %vm446, %v2047, %v1943
      %v2053 = vsel %vm446, %v2048, %v1939
      %v2054 = vsel %vm451, %v2049, %v1959
      %v2055 = vsel %vm451, %v2050, %v1960
      %v2056 = vsel %vm451, %v2051, %v1961
      %v2057 = vsel %vm451, %v2052, %v1962
      %v2058 = vsel %vm451, %v2053, %v1958
      %v2059 = vsel %vm456, %v2054, %v1978
      %v2060 = vsel %vm456, %v2055, %v1979
      %v2061 = vsel %vm456, %v2056, %v1980
      %v2062 = vsel %vm456, %v2057, %v1981
      %v2063 = vsel %vm456, %v2058, %v1977
      %v2064 = vsel %vm461, %v2059, %v1997
      %v2065 = vsel %vm461, %v2060, %v1998
      %v2066 = vsel %vm461, %v2061, %v1999
      %v2067 = vsel %vm461, %v2062, %v2000
      %v2068 = vsel %vm461, %v2063, %v1996
      %v2069 = vsel %vm466, %v2064, %v2016
      %v2070 = vsel %vm466, %v2065, %v2017
      %v2071 = vsel %vm466, %v2066, %v2018
      %v2072 = vsel %vm466, %v2067, %v2019
      %v2073 = vsel %vm466, %v2068, %v2015
      %v2074 = vsel %vm471, %v2069, %v2035
      %v2075 = vsel %vm471, %v2070, %v2036
      %v2076 = vsel %vm471, %v2071, %v2037
      %v2077 = vsel %vm471, %v2072, %v2038
      %v2078 = vsel %vm471, %v2073, %v2034
      %2084 = vrot.lane.b32.xlu0 %v2074, 116
      %v2085 = vpop.permute.xlu0 %2084
      %2086 = vrot.lane.b32.xlu0 %v2075, 116
      %v2087 = vpop.permute.xlu0 %2086
      %2088 = vrot.lane.b32.xlu0 %v2076, 116
      %v2089 = vpop.permute.xlu0 %2088
      %2090 = vrot.lane.b32.xlu0 %v2077, 116
      %v2091 = vpop.permute.xlu0 %2090
      %2092 = vrot.lane.b32.xlu0 %v2078, 116
      %v2093 = vpop.permute.xlu0 %2092
      %v2094 = vsel %vm394, %v2085, %v2087
      %v2095 = vsel %vm394, %v2087, %v2089
      %v2096 = vsel %vm394, %v2089, %v2091
      %v2097 = vsel %vm394, %v2091, %v2093
      %2102 = vst [vmem:[#allocation2 + $0x140] sm:$0xff] %v2094
      %2103 = vst [vmem:[#allocation2 + $0x148] sm:$0xff] %v2095
      %2104 = vst [vmem:[#allocation2 + $0x150] sm:$0xff] %v2096
      %2105 = vst [vmem:[#allocation2 + $0x158] sm:$0xff] %v2097
      %2106 = vrot.lane.b32.xlu0 %v1743, 119
      %v2107 = vpop.permute.xlu0 %2106
      %2108 = vrot.lane.b32.xlu0 %v1747, 119
      %v2109 = vpop.permute.xlu0 %2108
      %2110 = vrot.lane.b32.xlu0 %v1751, 119
      %v2111 = vpop.permute.xlu0 %2110
      %2112 = vrot.lane.b32.xlu0 %v1755, 119
      %v2113 = vpop.permute.xlu0 %2112
      %2114 = vrot.lane.b32.xlu0 %v1775, 119
      %v2115 = vpop.permute.xlu0 %2114
      %v2116 = vsel %vm492, %v2107, %v2109
      %v2117 = vsel %vm492, %v2109, %v2111
      %v2118 = vsel %vm492, %v2111, %v2113
      %v2119 = vsel %vm492, %v2113, %v2115
      %2125 = vrot.lane.b32.xlu0 %v1743, 118
      %v2126 = vpop.permute.xlu0 %2125
      %2127 = vrot.lane.b32.xlu0 %v1747, 118
      %v2128 = vpop.permute.xlu0 %2127
      %2129 = vrot.lane.b32.xlu0 %v1751, 118
      %v2130 = vpop.permute.xlu0 %2129
      %2131 = vrot.lane.b32.xlu0 %v1755, 118
      %v2132 = vpop.permute.xlu0 %2131
      %2133 = vrot.lane.b32.xlu0 %v1775, 118
      %v2134 = vpop.permute.xlu0 %2133
      %v2135 = vsel %vm512, %v2126, %v2128
      %v2136 = vsel %vm512, %v2128, %v2130
      %v2137 = vsel %vm512, %v2130, %v2132
      %v2138 = vsel %vm512, %v2132, %v2134
      %2144 = vrot.lane.b32.xlu0 %v1743, 117
      %v2145 = vpop.permute.xlu0 %2144
      %2146 = vrot.lane.b32.xlu0 %v1747, 117
      %v2147 = vpop.permute.xlu0 %2146
      %2148 = vrot.lane.b32.xlu0 %v1751, 117
      %v2149 = vpop.permute.xlu0 %2148
      %2150 = vrot.lane.b32.xlu0 %v1755, 117
      %v2151 = vpop.permute.xlu0 %2150
      %2152 = vrot.lane.b32.xlu0 %v1775, 117
      %v2153 = vpop.permute.xlu0 %2152
      %v2154 = vsel %vm532, %v2145, %v2147
      %v2155 = vsel %vm532, %v2147, %v2149
      %v2156 = vsel %vm532, %v2149, %v2151
      %v2157 = vsel %vm532, %v2151, %v2153
      %2163 = vrot.lane.b32.xlu0 %v1743, 107
      %v2164 = vpop.permute.xlu0 %2163
      %2165 = vrot.lane.b32.xlu0 %v1747, 107
      %v2166 = vpop.permute.xlu0 %2165
      %2167 = vrot.lane.b32.xlu0 %v1751, 107
      %v2168 = vpop.permute.xlu0 %2167
      %2169 = vrot.lane.b32.xlu0 %v1755, 107
      %v2170 = vpop.permute.xlu0 %2169
      %2171 = vrot.lane.b32.xlu0 %v1775, 107
      %v2172 = vpop.permute.xlu0 %2171
      %v2173 = vsel %vm554, %v2164, %v2166
      %v2174 = vsel %vm554, %v2166, %v2168
      %v2175 = vsel %vm554, %v2168, %v2170
      %v2176 = vsel %vm554, %v2170, %v2172
      %v2182 = vsel %vm446, %v2044, %v2116
      %v2183 = vsel %vm446, %v2045, %v2117
      %v2184 = vsel %vm446, %v2046, %v2118
      %v2185 = vsel %vm446, %v2047, %v2119
      %v2186 = vsel %vm446, %v2048, %v2115
      %v2187 = vsel %vm451, %v2182, %v2135
      %v2188 = vsel %vm451, %v2183, %v2136
      %v2189 = vsel %vm451, %v2184, %v2137
      %v2190 = vsel %vm451, %v2185, %v2138
      %v2191 = vsel %vm451, %v2186, %v2134
      %v2192 = vsel %vm456, %v2187, %v2154
      %v2193 = vsel %vm456, %v2188, %v2155
      %v2194 = vsel %vm456, %v2189, %v2156
      %v2195 = vsel %vm456, %v2190, %v2157
      %v2196 = vsel %vm456, %v2191, %v2153
      %v2197 = vsel %vm461, %v2192, %v1997
      %v2198 = vsel %vm461, %v2193, %v1998
      %v2199 = vsel %vm461, %v2194, %v1999
      %v2200 = vsel %vm461, %v2195, %v2000
      %v2201 = vsel %vm461, %v2196, %v1996
      %v2202 = vsel %vm466, %v2197, %v2016
      %v2203 = vsel %vm466, %v2198, %v2017
      %v2204 = vsel %vm466, %v2199, %v2018
      %v2205 = vsel %vm466, %v2200, %v2019
      %v2206 = vsel %vm466, %v2201, %v2015
      %v2207 = vsel %vm471, %v2202, %v2173
      %v2208 = vsel %vm471, %v2203, %v2174
      %v2209 = vsel %vm471, %v2204, %v2175
      %v2210 = vsel %vm471, %v2205, %v2176
      %v2211 = vsel %vm471, %v2206, %v2172
      %2217 = vrot.lane.b32.xlu0 %v2207, 101
      %v2218 = vpop.permute.xlu0 %2217
      %2219 = vrot.lane.b32.xlu0 %v2208, 101
      %v2220 = vpop.permute.xlu0 %2219
      %2221 = vrot.lane.b32.xlu0 %v2209, 101
      %v2222 = vpop.permute.xlu0 %2221
      %2223 = vrot.lane.b32.xlu0 %v2210, 101
      %v2224 = vpop.permute.xlu0 %2223
      %2225 = vrot.lane.b32.xlu0 %v2211, 101
      %v2226 = vpop.permute.xlu0 %2225
      %vm2227 = vcmask 826368
      %v2228 = vsel %vm2227, %v2218, %v2220
      %v2229 = vsel %vm2227, %v2220, %v2222
      %v2230 = vsel %vm2227, %v2222, %v2224
      %v2231 = vsel %vm2227, %v2224, %v2226
      %2236 = vst [vmem:[#allocation2 + $0x160] sm:$0xff] %v2228
      %2237 = vst [vmem:[#allocation2 + $0x168] sm:$0xff] %v2229
      %2238 = vst [vmem:[#allocation2 + $0x170] sm:$0xff] %v2230
      %2239 = vst [vmem:[#allocation2 + $0x178] sm:$0xff] %v2231
      %v2241 = vlaneseq
      %v2242 = vshrl.u32 %v2241, 7
      %v2243 = vsub.s32 0, %v2242
      %v2244 = vrot.slane %v282, %v2243
      %v2245 = vlaneseq
      %v2246 = vshrl.u32 %v2245, 7
      %v2247 = vsub.s32 1, %v2246
      %v2248 = vrot.slane %v282, %v2247
      %v2249 = vlaneseq
      %v2250 = vshrl.u32 %v2249, 7
      %v2251 = vsub.s32 2, %v2250
      %v2252 = vrot.slane %v282, %v2251
      %v2253 = vlaneseq
      %v2254 = vshrl.u32 %v2253, 7
      %v2255 = vsub.s32 3, %v2254
      %v2256 = vrot.slane %v282, %v2255
      %2257 = vrot.lane.b32.xlu0 %v2244, 49
      %v2258 = vpop.permute.xlu0 %2257
      %2259 = vrot.lane.b32.xlu0 %v2248, 49
      %v2260 = vpop.permute.xlu0 %2259
      %2261 = vrot.lane.b32.xlu0 %v2252, 49
      %v2262 = vpop.permute.xlu0 %2261
      %2263 = vrot.lane.b32.xlu0 %v2256, 49
      %v2264 = vpop.permute.xlu0 %2263
      %v2265 = vsel %vm764, %v2258, %v2260
      %v2266 = vsel %vm764, %v2260, %v2262
      %v2267 = vsel %vm764, %v2262, %v2264
      %v2273 = vlaneseq
      %v2274 = vshrl.u32 %v2273, 7
      %v2275 = vsub.s32 4, %v2274
      %v2276 = vrot.slane %v282, %v2275
      %2277 = vrot.lane.b32.xlu0 %v2244, 48
      %v2278 = vpop.permute.xlu0 %2277
      %2279 = vrot.lane.b32.xlu0 %v2248, 48
      %v2280 = vpop.permute.xlu0 %2279
      %2281 = vrot.lane.b32.xlu0 %v2252, 48
      %v2282 = vpop.permute.xlu0 %2281
      %2283 = vrot.lane.b32.xlu0 %v2256, 48
      %v2284 = vpop.permute.xlu0 %2283
      %2285 = vrot.lane.b32.xlu0 %v2276, 48
      %v2286 = vpop.permute.xlu0 %2285
      %v2287 = vsel %vm784, %v2278, %v2280
      %v2288 = vsel %vm784, %v2280, %v2282
      %v2289 = vsel %vm784, %v2282, %v2284
      %v2290 = vsel %vm784, %v2284, %v2286
      %2296 = vrot.lane.b32.xlu0 %v2244, 47
      %v2297 = vpop.permute.xlu0 %2296
      %2298 = vrot.lane.b32.xlu0 %v2248, 47
      %v2299 = vpop.permute.xlu0 %2298
      %2300 = vrot.lane.b32.xlu0 %v2252, 47
      %v2301 = vpop.permute.xlu0 %2300
      %2302 = vrot.lane.b32.xlu0 %v2256, 47
      %v2303 = vpop.permute.xlu0 %2302
      %2304 = vrot.lane.b32.xlu0 %v2276, 47
      %v2305 = vpop.permute.xlu0 %2304
      %v2306 = vsel %vm1292, %v2297, %v2299
      %v2307 = vsel %vm1292, %v2299, %v2301
      %v2308 = vsel %vm1292, %v2301, %v2303
      %v2309 = vsel %vm1292, %v2303, %v2305
      %2315 = vrot.lane.b32.xlu0 %v2244, 46
      %v2316 = vpop.permute.xlu0 %2315
      %2317 = vrot.lane.b32.xlu0 %v2248, 46
      %v2318 = vpop.permute.xlu0 %2317
      %2319 = vrot.lane.b32.xlu0 %v2252, 46
      %v2320 = vpop.permute.xlu0 %2319
      %2321 = vrot.lane.b32.xlu0 %v2256, 46
      %v2322 = vpop.permute.xlu0 %2321
      %2323 = vrot.lane.b32.xlu0 %v2276, 46
      %v2324 = vpop.permute.xlu0 %2323
      %v2325 = vsel %vm1843, %v2316, %v2318
      %v2326 = vsel %vm1843, %v2318, %v2320
      %v2327 = vsel %vm1843, %v2320, %v2322
      %v2328 = vsel %vm1843, %v2322, %v2324
      %v2334 = vsel %vm456, %v2054, %v2258
      %v2335 = vsel %vm456, %v2055, %v2265
      %v2336 = vsel %vm456, %v2056, %v2266
      %v2337 = vsel %vm456, %v2057, %v2267
      %v2338 = vsel %vm456, %v2058, %v2264
      %v2339 = vsel %vm461, %v2334, %v2278
      %v2340 = vsel %vm461, %v2335, %v2287
      %v2341 = vsel %vm461, %v2336, %v2288
      %v2342 = vsel %vm461, %v2337, %v2289
      %v2343 = vsel %vm461, %v2338, %v2290
      %v2344 = vsel %vm466, %v2339, %v2297
      %v2345 = vsel %vm466, %v2340, %v2306
      %v2346 = vsel %vm466, %v2341, %v2307
      %v2347 = vsel %vm466, %v2342, %v2308
      %v2348 = vsel %vm466, %v2343, %v2309
      %v2349 = vsel %vm471, %v2344, %v2316
      %v2350 = vsel %vm471, %v2345, %v2325
      %v2351 = vsel %vm471, %v2346, %v2326
      %v2352 = vsel %vm471, %v2347, %v2327
      %v2353 = vsel %vm471, %v2348, %v2328
      %2359 = vrot.lane.b32.xlu0 %v2349, 79
      %v2360 = vpop.permute.xlu0 %2359
      %2361 = vrot.lane.b32.xlu0 %v2350, 79
      %v2362 = vpop.permute.xlu0 %2361
      %2363 = vrot.lane.b32.xlu0 %v2351, 79
      %v2364 = vpop.permute.xlu0 %2363
      %2365 = vrot.lane.b32.xlu0 %v2352, 79
      %v2366 = vpop.permute.xlu0 %2365
      %2367 = vrot.lane.b32.xlu0 %v2353, 79
      %v2368 = vpop.permute.xlu0 %2367
      %vm2369 = vcmask 646144
      %v2370 = vsel %vm2369, %v2360, %v2362
      %v2371 = vsel %vm2369, %v2362, %v2364
      %v2372 = vsel %vm2369, %v2364, %v2366
      %v2373 = vsel %vm2369, %v2366, %v2368
      %2378 = vst [vmem:[#allocation2 + $0x180] sm:$0xff] %v2370
      %2379 = vst [vmem:[#allocation2 + $0x188] sm:$0xff] %v2371
      %2380 = vst [vmem:[#allocation2 + $0x190] sm:$0xff] %v2372
      %2381 = vst [vmem:[#allocation2 + $0x198] sm:$0xff] %v2373
      %2387 = vrot.lane.b32.xlu0 %v2244, 120
      %v2388 = vpop.permute.xlu0 %2387
      %2389 = vrot.lane.b32.xlu0 %v2248, 120
      %v2390 = vpop.permute.xlu0 %2389
      %2391 = vrot.lane.b32.xlu0 %v2252, 120
      %v2392 = vpop.permute.xlu0 %2391
      %2393 = vrot.lane.b32.xlu0 %v2256, 120
      %v2394 = vpop.permute.xlu0 %2393
      %2395 = vrot.lane.b32.xlu0 %v2276, 120
      %v2396 = vpop.permute.xlu0 %2395
      %v2397 = vsel %vm1589, %v2388, %v2390
      %v2398 = vsel %vm1589, %v2390, %v2392
      %v2399 = vsel %vm1589, %v2392, %v2394
      %v2400 = vsel %vm1589, %v2394, %v2396
      %2406 = vrot.lane.b32.xlu0 %v2244, 119
      %v2407 = vpop.permute.xlu0 %2406
      %2408 = vrot.lane.b32.xlu0 %v2248, 119
      %v2409 = vpop.permute.xlu0 %2408
      %2410 = vrot.lane.b32.xlu0 %v2252, 119
      %v2411 = vpop.permute.xlu0 %2410
      %2412 = vrot.lane.b32.xlu0 %v2256, 119
      %v2413 = vpop.permute.xlu0 %2412
      %2414 = vrot.lane.b32.xlu0 %v2276, 119
      %v2415 = vpop.permute.xlu0 %2414
      %v2416 = vsel %vm492, %v2407, %v2409
      %v2417 = vsel %vm492, %v2409, %v2411
      %v2418 = vsel %vm492, %v2411, %v2413
      %v2419 = vsel %vm492, %v2413, %v2415
      %2425 = vrot.lane.b32.xlu0 %v2244, 118
      %v2426 = vpop.permute.xlu0 %2425
      %2427 = vrot.lane.b32.xlu0 %v2248, 118
      %v2428 = vpop.permute.xlu0 %2427
      %2429 = vrot.lane.b32.xlu0 %v2252, 118
      %v2430 = vpop.permute.xlu0 %2429
      %2431 = vrot.lane.b32.xlu0 %v2256, 118
      %v2432 = vpop.permute.xlu0 %2431
      %2433 = vrot.lane.b32.xlu0 %v2276, 118
      %v2434 = vpop.permute.xlu0 %2433
      %v2435 = vsel %vm512, %v2426, %v2428
      %v2436 = vsel %vm512, %v2428, %v2430
      %v2437 = vsel %vm512, %v2430, %v2432
      %v2438 = vsel %vm512, %v2432, %v2434
      %2444 = vrot.lane.b32.xlu0 %v2244, 117
      %v2445 = vpop.permute.xlu0 %2444
      %2446 = vrot.lane.b32.xlu0 %v2248, 117
      %v2447 = vpop.permute.xlu0 %2446
      %2448 = vrot.lane.b32.xlu0 %v2252, 117
      %v2449 = vpop.permute.xlu0 %2448
      %2450 = vrot.lane.b32.xlu0 %v2256, 117
      %v2451 = vpop.permute.xlu0 %2450
      %2452 = vrot.lane.b32.xlu0 %v2276, 117
      %v2453 = vpop.permute.xlu0 %2452
      %v2454 = vsel %vm532, %v2445, %v2447
      %v2455 = vsel %vm532, %v2447, %v2449
      %v2456 = vsel %vm532, %v2449, %v2451
      %v2457 = vsel %vm532, %v2451, %v2453
      %2463 = vrot.lane.b32.xlu0 %v2244, 116
      %v2464 = vpop.permute.xlu0 %2463
      %2465 = vrot.lane.b32.xlu0 %v2248, 116
      %v2466 = vpop.permute.xlu0 %2465
      %2467 = vrot.lane.b32.xlu0 %v2252, 116
      %v2468 = vpop.permute.xlu0 %2467
      %2469 = vrot.lane.b32.xlu0 %v2256, 116
      %v2470 = vpop.permute.xlu0 %2469
      %2471 = vrot.lane.b32.xlu0 %v2276, 116
      %v2472 = vpop.permute.xlu0 %2471
      %v2473 = vsel %vm394, %v2464, %v2466
      %v2474 = vsel %vm394, %v2466, %v2468
      %v2475 = vsel %vm394, %v2468, %v2470
      %v2476 = vsel %vm394, %v2470, %v2472
      %2482 = vrot.lane.b32.xlu0 %v2244, 108
      %v2483 = vpop.permute.xlu0 %2482
      %2484 = vrot.lane.b32.xlu0 %v2248, 108
      %v2485 = vpop.permute.xlu0 %2484
      %2486 = vrot.lane.b32.xlu0 %v2252, 108
      %v2487 = vpop.permute.xlu0 %2486
      %2488 = vrot.lane.b32.xlu0 %v2256, 108
      %v2489 = vpop.permute.xlu0 %2488
      %2490 = vrot.lane.b32.xlu0 %v2276, 108
      %v2491 = vpop.permute.xlu0 %2490
      %v2492 = vsel %vm1647, %v2483, %v2485
      %v2493 = vsel %vm1647, %v2485, %v2487
      %v2494 = vsel %vm1647, %v2487, %v2489
      %v2495 = vsel %vm1647, %v2489, %v2491
      %2501 = vrot.lane.b32.xlu0 %v2244, 107
      %v2502 = vpop.permute.xlu0 %2501
      %2503 = vrot.lane.b32.xlu0 %v2248, 107
      %v2504 = vpop.permute.xlu0 %2503
      %2505 = vrot.lane.b32.xlu0 %v2252, 107
      %v2506 = vpop.permute.xlu0 %2505
      %2507 = vrot.lane.b32.xlu0 %v2256, 107
      %v2508 = vpop.permute.xlu0 %2507
      %2509 = vrot.lane.b32.xlu0 %v2276, 107
      %v2510 = vpop.permute.xlu0 %2509
      %v2511 = vsel %vm554, %v2502, %v2504
      %v2512 = vsel %vm554, %v2504, %v2506
      %v2513 = vsel %vm554, %v2506, %v2508
      %v2514 = vsel %vm554, %v2508, %v2510
      %v2520 = vsel %vm441, %v2244, %v2397
      %v2521 = vsel %vm441, %v2248, %v2398
      %v2522 = vsel %vm441, %v2252, %v2399
      %v2523 = vsel %vm441, %v2256, %v2400
      %v2524 = vsel %vm441, %v2276, %v2396
      %v2525 = vsel %vm446, %v2520, %v2416
      %v2526 = vsel %vm446, %v2521, %v2417
      %v2527 = vsel %vm446, %v2522, %v2418
      %v2528 = vsel %vm446, %v2523, %v2419
      %v2529 = vsel %vm446, %v2524, %v2415
      %v2530 = vsel %vm451, %v2525, %v2435
      %v2531 = vsel %vm451, %v2526, %v2436
      %v2532 = vsel %vm451, %v2527, %v2437
      %v2533 = vsel %vm451, %v2528, %v2438
      %v2534 = vsel %vm451, %v2529, %v2434
      %v2535 = vsel %vm456, %v2530, %v2454
      %v2536 = vsel %vm456, %v2531, %v2455
      %v2537 = vsel %vm456, %v2532, %v2456
      %v2538 = vsel %vm456, %v2533, %v2457
      %v2539 = vsel %vm456, %v2534, %v2453
      %v2540 = vsel %vm461, %v2535, %v2473
      %v2541 = vsel %vm461, %v2536, %v2474
      %v2542 = vsel %vm461, %v2537, %v2475
      %v2543 = vsel %vm461, %v2538, %v2476
      %v2544 = vsel %vm461, %v2539, %v2472
      %v2545 = vsel %vm466, %v2540, %v2492
      %v2546 = vsel %vm466, %v2541, %v2493
      %v2547 = vsel %vm466, %v2542, %v2494
      %v2548 = vsel %vm466, %v2543, %v2495
      %v2549 = vsel %vm466, %v2544, %v2491
      %v2550 = vsel %vm471, %v2545, %v2511
      %v2551 = vsel %vm471, %v2546, %v2512
      %v2552 = vsel %vm471, %v2547, %v2513
      %v2553 = vsel %vm471, %v2548, %v2514
      %v2554 = vsel %vm471, %v2549, %v2510
      %2560 = vrot.lane.b32.xlu0 %v2550, 124
      %v2561 = vpop.permute.xlu0 %2560
      %2562 = vrot.lane.b32.xlu0 %v2551, 124
      %v2563 = vpop.permute.xlu0 %2562
      %2564 = vrot.lane.b32.xlu0 %v2552, 124
      %v2565 = vpop.permute.xlu0 %2564
      %2566 = vrot.lane.b32.xlu0 %v2553, 124
      %v2567 = vpop.permute.xlu0 %2566
      %2568 = vrot.lane.b32.xlu0 %v2554, 124
      %v2569 = vpop.permute.xlu0 %2568
      %v2570 = vsel %vm375, %v2561, %v2563
      %v2571 = vsel %vm375, %v2563, %v2565
      %v2572 = vsel %vm375, %v2565, %v2567
      %v2573 = vsel %vm375, %v2567, %v2569
      %2578 = vst [vmem:[#allocation2 + $0x1a0] sm:$0xff] %v2570
      %2579 = vst [vmem:[#allocation2 + $0x1a8] sm:$0xff] %v2571
      %2580 = vst [vmem:[#allocation2 + $0x1b0] sm:$0xff] %v2572
      %2581 = vst [vmem:[#allocation2 + $0x1b8] sm:$0xff] %v2573
      %2582 = vrot.lane.b32.xlu0 %v2244, 127
      %v2583 = vpop.permute.xlu0 %2582
      %2584 = vrot.lane.b32.xlu0 %v2248, 127
      %v2585 = vpop.permute.xlu0 %2584
      %2586 = vrot.lane.b32.xlu0 %v2252, 127
      %v2587 = vpop.permute.xlu0 %2586
      %2588 = vrot.lane.b32.xlu0 %v2256, 127
      %v2589 = vpop.permute.xlu0 %2588
      %2590 = vrot.lane.b32.xlu0 %v2276, 127
      %v2591 = vpop.permute.xlu0 %2590
      %v2592 = vsel %vm318, %v2583, %v2585
      %v2593 = vsel %vm318, %v2585, %v2587
      %v2594 = vsel %vm318, %v2587, %v2589
      %v2595 = vsel %vm318, %v2589, %v2591
      %2601 = vrot.lane.b32.xlu0 %v2244, 126
      %v2602 = vpop.permute.xlu0 %2601
      %2603 = vrot.lane.b32.xlu0 %v2248, 126
      %v2604 = vpop.permute.xlu0 %2603
      %2605 = vrot.lane.b32.xlu0 %v2252, 126
      %v2606 = vpop.permute.xlu0 %2605
      %2607 = vrot.lane.b32.xlu0 %v2256, 126
      %v2608 = vpop.permute.xlu0 %2607
      %2609 = vrot.lane.b32.xlu0 %v2276, 126
      %v2610 = vpop.permute.xlu0 %2609
      %v2611 = vsel %vm337, %v2602, %v2604
      %v2612 = vsel %vm337, %v2604, %v2606
      %v2613 = vsel %vm337, %v2606, %v2608
      %v2614 = vsel %vm337, %v2608, %v2610
      %2620 = vrot.lane.b32.xlu0 %v2244, 115
      %v2621 = vpop.permute.xlu0 %2620
      %2622 = vrot.lane.b32.xlu0 %v2248, 115
      %v2623 = vpop.permute.xlu0 %2622
      %2624 = vrot.lane.b32.xlu0 %v2252, 115
      %v2625 = vpop.permute.xlu0 %2624
      %2626 = vrot.lane.b32.xlu0 %v2256, 115
      %v2627 = vpop.permute.xlu0 %2626
      %2628 = vrot.lane.b32.xlu0 %v2276, 115
      %v2629 = vpop.permute.xlu0 %2628
      %v2630 = vsel %vm413, %v2621, %v2623
      %v2631 = vsel %vm413, %v2623, %v2625
      %v2632 = vsel %vm413, %v2625, %v2627
      %v2633 = vsel %vm413, %v2627, %v2629
      %2639 = vrot.lane.b32.xlu0 %v2244, 114
      %v2640 = vpop.permute.xlu0 %2639
      %2641 = vrot.lane.b32.xlu0 %v2248, 114
      %v2642 = vpop.permute.xlu0 %2641
      %2643 = vrot.lane.b32.xlu0 %v2252, 114
      %v2644 = vpop.permute.xlu0 %2643
      %2645 = vrot.lane.b32.xlu0 %v2256, 114
      %v2646 = vpop.permute.xlu0 %2645
      %2647 = vrot.lane.b32.xlu0 %v2276, 114
      %v2648 = vpop.permute.xlu0 %2647
      %v2649 = vsel %vm432, %v2640, %v2642
      %v2650 = vsel %vm432, %v2642, %v2644
      %v2651 = vsel %vm432, %v2644, %v2646
      %v2652 = vsel %vm432, %v2646, %v2648
      %v2658 = vsel %vm441, %v2244, %v2592
      %v2659 = vsel %vm441, %v2248, %v2593
      %v2660 = vsel %vm441, %v2252, %v2594
      %v2661 = vsel %vm441, %v2256, %v2595
      %v2662 = vsel %vm441, %v2276, %v2591
      %v2663 = vsel %vm446, %v2658, %v2611
      %v2664 = vsel %vm446, %v2659, %v2612
      %v2665 = vsel %vm446, %v2660, %v2613
      %v2666 = vsel %vm446, %v2661, %v2614
      %v2667 = vsel %vm446, %v2662, %v2610
      %v2668 = vsel %vm451, %v2663, %v2435
      %v2669 = vsel %vm451, %v2664, %v2436
      %v2670 = vsel %vm451, %v2665, %v2437
      %v2671 = vsel %vm451, %v2666, %v2438
      %v2672 = vsel %vm451, %v2667, %v2434
      %v2673 = vsel %vm456, %v2668, %v2454
      %v2674 = vsel %vm456, %v2669, %v2455
      %v2675 = vsel %vm456, %v2670, %v2456
      %v2676 = vsel %vm456, %v2671, %v2457
      %v2677 = vsel %vm456, %v2672, %v2453
      %v2678 = vsel %vm461, %v2673, %v2473
      %v2679 = vsel %vm461, %v2674, %v2474
      %v2680 = vsel %vm461, %v2675, %v2475
      %v2681 = vsel %vm461, %v2676, %v2476
      %v2682 = vsel %vm461, %v2677, %v2472
      %v2683 = vsel %vm466, %v2678, %v2630
      %v2684 = vsel %vm466, %v2679, %v2631
      %v2685 = vsel %vm466, %v2680, %v2632
      %v2686 = vsel %vm466, %v2681, %v2633
      %v2687 = vsel %vm466, %v2682, %v2629
      %v2688 = vsel %vm471, %v2683, %v2649
      %v2689 = vsel %vm471, %v2684, %v2650
      %v2690 = vsel %vm471, %v2685, %v2651
      %v2691 = vsel %vm471, %v2686, %v2652
      %v2692 = vsel %vm471, %v2687, %v2648
      %2698 = vrot.lane.b32.xlu0 %v2688, 102
      %v2699 = vpop.permute.xlu0 %2698
      %2700 = vrot.lane.b32.xlu0 %v2689, 102
      %v2701 = vpop.permute.xlu0 %2700
      %2702 = vrot.lane.b32.xlu0 %v2690, 102
      %v2703 = vpop.permute.xlu0 %2702
      %2704 = vrot.lane.b32.xlu0 %v2691, 102
      %v2705 = vpop.permute.xlu0 %2704
      %2706 = vrot.lane.b32.xlu0 %v2692, 102
      %v2707 = vpop.permute.xlu0 %2706
      %vm2708 = vcmask 834560
      %v2709 = vsel %vm2708, %v2699, %v2701
      %v2710 = vsel %vm2708, %v2701, %v2703
      %v2711 = vsel %vm2708, %v2703, %v2705
      %v2712 = vsel %vm2708, %v2705, %v2707
      %2717 = vst [vmem:[#allocation2 + $0x1c0] sm:$0xff] %v2709
      %2718 = vst [vmem:[#allocation2 + $0x1c8] sm:$0xff] %v2710
      %2719 = vst [vmem:[#allocation2 + $0x1d0] sm:$0xff] %v2711
      %2720 = vst [vmem:[#allocation2 + $0x1d8] sm:$0xff] %v2712
      %2721 = vrot.lane.b32.xlu0 %v2244, 125
      %v2722 = vpop.permute.xlu0 %2721
      %2723 = vrot.lane.b32.xlu0 %v2248, 125
      %v2724 = vpop.permute.xlu0 %2723
      %2725 = vrot.lane.b32.xlu0 %v2252, 125
      %v2726 = vpop.permute.xlu0 %2725
      %2727 = vrot.lane.b32.xlu0 %v2256, 125
      %v2728 = vpop.permute.xlu0 %2727
      %2729 = vrot.lane.b32.xlu0 %v2276, 125
      %v2730 = vpop.permute.xlu0 %2729
      %v2731 = vsel %vm356, %v2722, %v2724
      %v2732 = vsel %vm356, %v2724, %v2726
      %v2733 = vsel %vm356, %v2726, %v2728
      %v2734 = vsel %vm356, %v2728, %v2730
      %2740 = vrot.lane.b32.xlu0 %v2244, 124
      %v2741 = vpop.permute.xlu0 %2740
      %2742 = vrot.lane.b32.xlu0 %v2248, 124
      %v2743 = vpop.permute.xlu0 %2742
      %2744 = vrot.lane.b32.xlu0 %v2252, 124
      %v2745 = vpop.permute.xlu0 %2744
      %2746 = vrot.lane.b32.xlu0 %v2256, 124
      %v2747 = vpop.permute.xlu0 %2746
      %2748 = vrot.lane.b32.xlu0 %v2276, 124
      %v2749 = vpop.permute.xlu0 %2748
      %v2750 = vsel %vm375, %v2741, %v2743
      %v2751 = vsel %vm375, %v2743, %v2745
      %v2752 = vsel %vm375, %v2745, %v2747
      %v2753 = vsel %vm375, %v2747, %v2749
      %v2759 = vsel %vm451, %v2663, %v2731
      %v2760 = vsel %vm451, %v2664, %v2732
      %v2761 = vsel %vm451, %v2665, %v2733
      %v2762 = vsel %vm451, %v2666, %v2734
      %v2763 = vsel %vm451, %v2667, %v2730
      %v2764 = vsel %vm456, %v2759, %v2750
      %v2765 = vsel %vm456, %v2760, %v2751
      %v2766 = vsel %vm456, %v2761, %v2752
      %v2767 = vsel %vm456, %v2762, %v2753
      %v2768 = vsel %vm456, %v2763, %v2749
      %v2769 = vsel %vm461, %v2764, 0.0
      %v2770 = vsel %vm461, %v2765, 0.0
      %v2771 = vsel %vm461, %v2766, 0.0
      %v2772 = vsel %vm461, %v2767, 0.0
      %v2773 = vsel %vm461, %v2768, 0.0
      %v2774 = vsel %vm466, %v2769, 0.0
      %v2775 = vsel %vm466, %v2770, 0.0
      %v2776 = vsel %vm466, %v2771, 0.0
      %v2777 = vsel %vm466, %v2772, 0.0
      %v2778 = vsel %vm466, %v2773, 0.0
      %v2779 = vsel %vm471, %v2774, 0.0
      %v2780 = vsel %vm471, %v2775, 0.0
      %v2781 = vsel %vm471, %v2776, 0.0
      %v2782 = vsel %vm471, %v2777, 0.0
      %v2783 = vsel %vm471, %v2778, 0.0
      %2789 = vrot.lane.b32.xlu0 %v2779, 80
      %v2790 = vpop.permute.xlu0 %2789
      %2791 = vrot.lane.b32.xlu0 %v2780, 80
      %v2792 = vpop.permute.xlu0 %2791
      %2793 = vrot.lane.b32.xlu0 %v2781, 80
      %v2794 = vpop.permute.xlu0 %2793
      %2795 = vrot.lane.b32.xlu0 %v2782, 80
      %v2796 = vpop.permute.xlu0 %2795
      %2797 = vrot.lane.b32.xlu0 %v2783, 80
      %v2798 = vpop.permute.xlu0 %2797
      %vm2799 = vcmask 654336
      %v2800 = vsel %vm2799, %v2790, %v2792
      %v2801 = vsel %vm2799, %v2792, %v2794
      %v2802 = vsel %vm2799, %v2794, %v2796
      %v2803 = vsel %vm2799, %v2796, %v2798
      %2808 = vst [vmem:[#allocation2 + $0x1e0] sm:$0xff] %v2800
      %2809 = vst [vmem:[#allocation2 + $0x1e8] sm:$0xff] %v2801
      %2810 = vst [vmem:[#allocation2 + $0x1f0] sm:$0xff] %v2802
      %2811 = vst [vmem:[#allocation2 + $0x1f8] sm:$0xff] %v2803
      %v2812 = vld [vmem:[%s1] sm:$0xff]
      %v2813 = vld [vmem:[#allocation2] sm:$0xff]
      %v2814 = vld [vmem:[#allocation2 + $0x8] sm:$0xff]
      %v2815 = vld [vmem:[#allocation2 + $0x10] sm:$0xff]
      %v2816 = vld [vmem:[#allocation2 + $0x18] sm:$0xff]
      %v2817 = vld [vmem:[#allocation2 + $0x20] sm:$0xff]
      %v2818 = vld [vmem:[#allocation2 + $0x28] sm:$0xff]
      %v2819 = vld [vmem:[#allocation2 + $0x30] sm:$0xff]
      %v2820 = vld [vmem:[#allocation2 + $0x38] sm:$0xff]
      %v2821 = vld [vmem:[#allocation2 + $0x40] sm:$0xff]
      %v2822 = vld [vmem:[#allocation2 + $0x48] sm:$0xff]
      %v2823 = vld [vmem:[#allocation2 + $0x50] sm:$0xff]
      %v2824 = vld [vmem:[#allocation2 + $0x58] sm:$0xff]
      %v2825 = vld [vmem:[#allocation2 + $0x60] sm:$0xff]
      %v2826 = vld [vmem:[#allocation2 + $0x68] sm:$0xff]
      %v2827 = vld [vmem:[#allocation2 + $0x70] sm:$0xff]
      %v2828 = vld [vmem:[#allocation2 + $0x78] sm:$0xff]
      %v2829 = vld [vmem:[#allocation2 + $0x80] sm:$0xff]
      %v2830 = vld [vmem:[#allocation2 + $0x88] sm:$0xff]
      %v2831 = vld [vmem:[#allocation2 + $0x90] sm:$0xff]
      %v2832 = vld [vmem:[#allocation2 + $0x98] sm:$0xff]
      %v2833 = vld [vmem:[#allocation2 + $0xa0] sm:$0xff]
      %v2834 = vld [vmem:[#allocation2 + $0xa8] sm:$0xff]
      %v2835 = vld [vmem:[#allocation2 + $0xb0] sm:$0xff]
      %v2836 = vld [vmem:[#allocation2 + $0xb8] sm:$0xff]
      %v2837 = vld [vmem:[#allocation2 + $0xc0] sm:$0xff]
      %v2838 = vld [vmem:[#allocation2 + $0xc8] sm:$0xff]
      %v2839 = vld [vmem:[#allocation2 + $0xd0] sm:$0xff]
      %v2840 = vld [vmem:[#allocation2 + $0xd8] sm:$0xff]
      %v2841 = vld [vmem:[#allocation2 + $0xe0] sm:$0xff]
      %v2842 = vld [vmem:[#allocation2 + $0xe8] sm:$0xff]
      %v2843 = vld [vmem:[#allocation2 + $0xf0] sm:$0xff]
      %v2844 = vld [vmem:[#allocation2 + $0xf8] sm:$0xff]
      %v2845 = vld [vmem:[#allocation2 + $0x100] sm:$0xff]
      %v2846 = vld [vmem:[#allocation2 + $0x108] sm:$0xff]
      %v2847 = vld [vmem:[#allocation2 + $0x110] sm:$0xff]
      %v2848 = vld [vmem:[#allocation2 + $0x118] sm:$0xff]
      %v2849 = vld [vmem:[#allocation2 + $0x120] sm:$0xff]
      %v2850 = vld [vmem:[#allocation2 + $0x128] sm:$0xff]
      %v2851 = vld [vmem:[#allocation2 + $0x130] sm:$0xff]
      %v2852 = vld [vmem:[#allocation2 + $0x138] sm:$0xff]
      %v2853 = vld [vmem:[#allocation2 + $0x140] sm:$0xff]
      %v2854 = vld [vmem:[#allocation2 + $0x148] sm:$0xff]
      %v2855 = vld [vmem:[#allocation2 + $0x150] sm:$0xff]
      %v2856 = vld [vmem:[#allocation2 + $0x158] sm:$0xff]
      %v2857 = vld [vmem:[#allocation2 + $0x160] sm:$0xff]
      %v2858 = vld [vmem:[#allocation2 + $0x168] sm:$0xff]
      %v2859 = vld [vmem:[#allocation2 + $0x170] sm:$0xff]
      %v2860 = vld [vmem:[#allocation2 + $0x178] sm:$0xff]
      %v2861 = vld [vmem:[#allocation2 + $0x180] sm:$0xff]
      %v2862 = vld [vmem:[#allocation2 + $0x188] sm:$0xff]
      %v2863 = vld [vmem:[#allocation2 + $0x190] sm:$0xff]
      %v2864 = vld [vmem:[#allocation2 + $0x198] sm:$0xff]
      %v2865 = vld [vmem:[#allocation2 + $0x1a0] sm:$0xff]
      %v2866 = vld [vmem:[#allocation2 + $0x1a8] sm:$0xff]
      %v2867 = vld [vmem:[#allocation2 + $0x1b0] sm:$0xff]
      %v2868 = vld [vmem:[#allocation2 + $0x1b8] sm:$0xff]
      %v2869 = vld [vmem:[#allocation2 + $0x1c0] sm:$0xff]
      %v2870 = vld [vmem:[#allocation2 + $0x1c8] sm:$0xff]
      %v2871 = vld [vmem:[#allocation2 + $0x1d0] sm:$0xff]
      %v2872 = vld [vmem:[#allocation2 + $0x1d8] sm:$0xff]
      %v2873 = vld [vmem:[#allocation2 + $0x1e0] sm:$0xff]
      %v2874 = vld [vmem:[#allocation2 + $0x1e8] sm:$0xff]
      %v2875 = vld [vmem:[#allocation2 + $0x1f0] sm:$0xff]
      %v2876 = vld [vmem:[#allocation2 + $0x1f8] sm:$0xff]
      %2877 = vmatprep.subr.mxu0 %v2874
      %2878 = vmatpush1.msra.mxu0 %v2873
      %2879 = vmatprep.subr.mxu0 %v2870
      %2880 = vmatpush1.msra.mxu0 %v2869
      %2881 = vmatprep.subr.mxu0 %v2866
      %2882 = vmatpush1.msra.mxu0 %v2865
      %2883 = vmatprep.subr.mxu0 %v2862
      %2884 = vmatpush1.msra.mxu0 %v2861
      %2885 = vmatprep.subr.mxu0 %v2858
      %2886 = vmatpush1.msra.mxu0 %v2857
      %2887 = vmatprep.subr.mxu0 %v2854
      %2888 = vmatpush1.msra.mxu0 %v2853
      %2889 = vmatprep.subr.mxu0 %v2850
      %2890 = vmatpush1.msra.mxu0 %v2849
      %2891 = vmatprep.subr.mxu0 %v2846
      %2892 = vmatpush1.msra.mxu0 %v2845
      %2893 = vmatprep.subr.mxu0 %v2842
      %2894 = vmatpush1.msra.mxu0 %v2841
      %2895 = vmatprep.subr.mxu0 %v2838
      %2896 = vmatpush1.msra.mxu0 %v2837
      %2897 = vmatprep.subr.mxu0 %v2834
      %2898 = vmatpush1.msra.mxu0 %v2833
      %2899 = vmatprep.subr.mxu0 %v2830
      %2900 = vmatpush1.msra.mxu0 %v2829
      %2901 = vmatprep.subr.mxu0 %v2826
      %2902 = vmatpush1.msra.mxu0 %v2825
      %2903 = vmatprep.subr.mxu0 %v2822
      %2904 = vmatpush1.msra.mxu0 %v2821
      %2905 = vmatprep.subr.mxu0 %v2818
      %2906 = vmatpush1.msra.mxu0 %v2817
      %2907 = vmatprep.subr.mxu0 %v2814
      %2908 = vmatpush1.msra.mxu0 %v2813
      %2909 = vmatprep.subr.mxu0 0.0
      %2910 = vmatpush2.msra.mxu0 0.0
      %2911 = vmatprep.subr.mxu0 0.0
      %2912 = vmatpush2.msra.mxu0 0.0
      %2913 = vmatprep.subr.mxu0 0.0
      %2914 = vmatpush2.msra.mxu0 0.0
      %2915 = vmatprep.subr.mxu0 0.0
      %2916 = vmatpush2.msra.mxu0 0.0
      %2917 = vmatprep.subr.mxu0 0.0
      %2918 = vmatpush2.msra.mxu0 0.0
      %2919 = vmatprep.subr.mxu0 0.0
      %2920 = vmatpush2.msra.mxu0 0.0
      %2921 = vmatprep.subr.mxu0 0.0
      %2922 = vmatpush2.msra.mxu0 0.0
      %2923 = vmatprep.subr.mxu0 0.0
      %2924 = vmatpush2.msra.mxu0 0.0
      %2925 = vmatprep.subr.mxu0 0.0
      %2926 = vmatpush2.msra.mxu0 0.0
      %2927 = vmatprep.subr.mxu0 0.0
      %2928 = vmatpush2.msra.mxu0 0.0
      %2929 = vmatprep.subr.mxu0 0.0
      %2930 = vmatpush2.msra.mxu0 0.0
      %2931 = vmatprep.subr.mxu0 0.0
      %2932 = vmatpush2.msra.mxu0 0.0
      %2933 = vmatprep.subr.mxu0 0.0
      %2934 = vmatpush2.msra.mxu0 0.0
      %2935 = vmatprep.subr.mxu0 0.0
      %2936 = vmatpush2.msra.mxu0 0.0
      %2937 = vmatprep.subr.mxu0 0.0
      %2938 = vmatpush2.msra.mxu0 0.0
      %2939 = vmatprep.subr.mxu0 0.0
      %2940 = vmatpush2.msra.mxu0 0.0
      %2941 = vmatprep.mubr.f32.mxu0 0.0
      %2942 = vmatmul.mubr.f32.gmra.mxu0 %v2812
      %v2943 = vpop.f32.mrf.mxu0
      %v2944 = vadd.f32 0.0, %v2943
      %v2945 = vpop.f32.mrf.mxu0
      %v2946 = vadd.f32 0.0, %v2945
      %2947 = vdwg.mxu0
      %2948 = vmatprep.subr.mxu0 %v2876
      %2949 = vmatpush1.msra.mxu0 %v2875
      %2950 = vmatprep.subr.mxu0 %v2872
      %2951 = vmatpush1.msra.mxu0 %v2871
      %2952 = vmatprep.subr.mxu0 %v2868
      %2953 = vmatpush1.msra.mxu0 %v2867
      %2954 = vmatprep.subr.mxu0 %v2864
      %2955 = vmatpush1.msra.mxu0 %v2863
      %2956 = vmatprep.subr.mxu0 %v2860
      %2957 = vmatpush1.msra.mxu0 %v2859
      %2958 = vmatprep.subr.mxu0 %v2856
      %2959 = vmatpush1.msra.mxu0 %v2855
      %2960 = vmatprep.subr.mxu0 %v2852
      %2961 = vmatpush1.msra.mxu0 %v2851
      %2962 = vmatprep.subr.mxu0 %v2848
      %2963 = vmatpush1.msra.mxu0 %v2847
      %2964 = vmatprep.subr.mxu0 %v2844
      %2965 = vmatpush1.msra.mxu0 %v2843
      %2966 = vmatprep.subr.mxu0 %v2840
      %2967 = vmatpush1.msra.mxu0 %v2839
      %2968 = vmatprep.subr.mxu0 %v2836
      %2969 = vmatpush1.msra.mxu0 %v2835
      %2970 = vmatprep.subr.mxu0 %v2832
      %2971 = vmatpush1.msra.mxu0 %v2831
      %2972 = vmatprep.subr.mxu0 %v2828
      %2973 = vmatpush1.msra.mxu0 %v2827
      %2974 = vmatprep.subr.mxu0 %v2824
      %2975 = vmatpush1.msra.mxu0 %v2823
      %2976 = vmatprep.subr.mxu0 %v2820
      %2977 = vmatpush1.msra.mxu0 %v2819
      %2978 = vmatprep.subr.mxu0 %v2816
      %2979 = vmatpush1.msra.mxu0 %v2815
      %2980 = vmatprep.subr.mxu0 0.0
      %2981 = vmatpush2.msra.mxu0 0.0
      %2982 = vmatprep.subr.mxu0 0.0
      %2983 = vmatpush2.msra.mxu0 0.0
      %2984 = vmatprep.subr.mxu0 0.0
      %2985 = vmatpush2.msra.mxu0 0.0
      %2986 = vmatprep.subr.mxu0 0.0
      %2987 = vmatpush2.msra.mxu0 0.0
      %2988 = vmatprep.subr.mxu0 0.0
      %2989 = vmatpush2.msra.mxu0 0.0
      %2990 = vmatprep.subr.mxu0 0.0
      %2991 = vmatpush2.msra.mxu0 0.0
      %2992 = vmatprep.subr.mxu0 0.0
      %2993 = vmatpush2.msra.mxu0 0.0
      %2994 = vmatprep.subr.mxu0 0.0
      %2995 = vmatpush2.msra.mxu0 0.0
      %2996 = vmatprep.subr.mxu0 0.0
      %2997 = vmatpush2.msra.mxu0 0.0
      %2998 = vmatprep.subr.mxu0 0.0
      %2999 = vmatpush2.msra.mxu0 0.0
      %3000 = vmatprep.subr.mxu0 0.0
      %3001 = vmatpush2.msra.mxu0 0.0
      %3002 = vmatprep.subr.mxu0 0.0
      %3003 = vmatpush2.msra.mxu0 0.0
      %3004 = vmatprep.subr.mxu0 0.0
      %3005 = vmatpush2.msra.mxu0 0.0
      %3006 = vmatprep.subr.mxu0 0.0
      %3007 = vmatpush2.msra.mxu0 0.0
      %3008 = vmatprep.subr.mxu0 0.0
      %3009 = vmatpush2.msra.mxu0 0.0
      %3010 = vmatprep.subr.mxu0 0.0
      %3011 = vmatpush2.msra.mxu0 0.0
      %3012 = vmatprep.mubr.f32.mxu0 0.0
      %3013 = vmatmul.mubr.f32.gmra.mxu0 %v2812
      %v3014 = vpop.f32.mrf.mxu0
      %v3015 = vadd.f32 0.0, %v3014
      %v3016 = vpop.f32.mrf.mxu0
      %v3017 = vadd.f32 0.0, %v3016
      %3018 = vdwg.mxu0
      %3019 = vst [vmem:[%s248] sm:$0xff] %v2944
      %3020 = vst [vmem:[%s248 + $0x8] sm:$0xff] %v2946
      %3021 = vst [vmem:[%s248 + $0x10] sm:$0xff] %v3015
      %3022 = vst [vmem:[%s248 + $0x18] sm:$0xff] %v3017
      %v3023 = vld [vmem:[%s238] sm:$0xf]
      %v3025 = vlaneseq
      %v3026 = vshrl.u32 %v3025, 7
      %v3027 = vsub.s32 0, %v3026
      %v3028 = vrot.slane %v3023, %v3027
      %v3029 = vlaneseq
      %v3030 = vshrl.u32 %v3029, 7
      %v3031 = vsub.s32 1, %v3030
      %v3032 = vrot.slane %v3023, %v3031
      %v3033 = vlaneseq
      %v3034 = vshrl.u32 %v3033, 7
      %v3035 = vsub.s32 2, %v3034
      %v3036 = vrot.slane %v3023, %v3035
      %v3037 = vlaneseq
      %v3038 = vshrl.u32 %v3037, 7
      %v3039 = vsub.s32 3, %v3038
      %v3040 = vrot.slane %v3023, %v3039
      %v3045 = vmul.f32 %v2944, %v3028
      %v3046 = vmul.f32 %v2946, %v3032
      %v3047 = vmul.f32 %v3015, %v3036
      %v3048 = vmul.f32 %v3017, %v3040
      %v3049 = vadd.f32 %v3045, %v3046
      %v3050 = vadd.f32 %v3049, %v3047
      %v3051 = vadd.f32 %v3050, %v3048
      %3052 = vadd.xlane.f32.xlu0 %v3051
      %v3053 = vpop.xlane.xlu0 %3052
      %v3054 = vmul.f32 %v3045, %v2944
      %v3055 = vmul.f32 %v3046, %v2946
      %v3056 = vmul.f32 %v3047, %v3015
      %v3057 = vmul.f32 %v3048, %v3017
      %v3058 = vadd.f32 %v3054, %v3055
      %v3059 = vadd.f32 %v3058, %v3056
      %v3060 = vadd.f32 %v3059, %v3057
      %3061 = vadd.xlane.f32.xlu0 %v3060
      %v3062 = vpop.xlane.xlu0 %3061
      %v3064 = vlaneseq
      %v3065 = vand.u32 %v3064, 127
      %v3066 = vlaneseq
      %v3067 = vshrl.u32 %v3066, 7
      %v3068 = vsub.s32 %v3065, %v3067
      %v3069 = vrot.slane %v3053, %v3068
      %v3072 = vlaneseq
      %v3073 = vshrl.u32 %v3072, 7
      %v3074 = vsub.s32 %v3065, %v3073
      %v3075 = vrot.slane %v3062, %v3074
      %v3077 = vsel %vm441, %v3069, %v3075
      %vm3078 = vcmask 58368
      %3079 = vst.msk [vmem:[%s257] sm:$0x3] %vm3078, %v3077
      %s3080 = smul.u32 4, %s21
      %p3081 = scmp.lt.s32.totalorder %s20, 1
      %s3082 = scalar_select %p3081, %s20, 1
      %p3083 = scmp.lt.s32.totalorder %s3080, 15
      %s3084 = scalar_select %p3083, %s3080, 15
      %s3085 = smul.addr %s3082, 16
      %s3086 = sadd.s32 %s3084, %s3085
      %s3087 = smul.addr %s3086, 8
      %s3088 = scalar_lea.vmem %s3, %s3087
      %p3089 = scmp.lt.s32.totalorder %s20, 1
      %s3090 = scalar_select %p3089, %s20, 1
      %p3091 = scmp.lt.s32.totalorder %s21, 3
      %s3092 = scalar_select %p3091, %s21, 3
      %s3093 = smul.addr %s3090, 4
      %s3094 = sadd.s32 %s3092, %s3093
      %s3095 = smul.addr %s3094, 2
      %s3096 = scalar_lea.vmem %s4, %s3095
      // Predicated region
      $region33: #{input_module_forward.2} parent=31 // pred_check
        %p3097 = pneg %p121
      $region34: #{input_module_forward.2} parent=31 // pred_check_branch
        %3099 = sbr.rel (%p3097) target = $region36
      $region35: #{input_module_forward.2} parent=31 // pred_region
        %s3100 = smul.u32 4, %s21
      $region36: #{input_module_forward.2} parent=31 // pred_fallthru
        _
      // Predicated region
      $region37: #{input_module_forward.2} parent=31 // pred_check
        %p3101 = pneg %p149
      $region38: #{input_module_forward.2} parent=31 // pred_check_branch
        %3103 = sbr.rel (%p3101) target = $region40
      $region39: #{input_module_forward.2} parent=31 // pred_region
        _
      $region40: #{input_module_forward.2} parent=31 // pred_fallthru
        _
    $region32: #{input_module_forward.2} parent=5 // pred_fallthru
      _
    %p3104 = scmp.le.s32.totalorder 2, %s11
    // Predicated region
    $region41: #{input_module_forward.2} parent=5 // pred_check
      %p3105 = pneg %p3104
    $region42: #{input_module_forward.2} parent=5 // pred_check_branch
      %3107 = sbr.rel (%p3105) target = $region44
    $region43: #{input_module_forward.2} parent=5 // pred_region
      %s3108 = ssub.s32 %s11, 2
      // Predicated region
      $region45: #{input_module_forward.2} parent=43 // pred_check
        %p3109 = pneg %p127
      $region46: #{input_module_forward.2} parent=43 // pred_check_branch
        %3111 = sbr.rel (%p3109) target = $region48
      $region47: #{input_module_forward.2} parent=43 // pred_region
        %s3112 = smul.u32 4, %s23
        %p3113 = scmp.lt.s32.totalorder %s22, 1
        %s3114 = scalar_select %p3113, %s22, 1
        %p3115 = scmp.lt.s32.totalorder %s3112, 15
        %s3116 = scalar_select %p3115, %s3112, 15
        %s3117 = smul.addr %s3114, 16
        %s3118 = sadd.s32 %s3116, %s3117
        %s3119 = smul.addr %s3118, 8
        %s3120 = scalar_lea.vmem %s3, %s3119
      $region48: #{input_module_forward.2} parent=43 // pred_fallthru
        _
      // Predicated region
      $region49: #{input_module_forward.2} parent=43 // pred_check
        %p3121 = pneg %p155
      $region50: #{input_module_forward.2} parent=43 // pred_check_branch
        %3123 = sbr.rel (%p3121) target = $region52
      $region51: #{input_module_forward.2} parent=43 // pred_region
        %p3124 = scmp.lt.s32.totalorder %s22, 1
        %s3125 = scalar_select %p3124, %s22, 1
        %p3126 = scmp.lt.s32.totalorder %s23, 3
        %s3127 = scalar_select %p3126, %s23, 3
        %s3128 = smul.addr %s3125, 4
        %s3129 = sadd.s32 %s3127, %s3128
        %s3130 = smul.addr %s3129, 2
        %s3131 = scalar_lea.vmem %s4, %s3130
      $region52: #{input_module_forward.2} parent=43 // pred_fallthru
        _
    $region44: #{input_module_forward.2} parent=5 // pred_fallthru
      _
  $region6: #{input_module_forward.2} parent=0 // loop_footer
    %s15 = sadd.s32 1, %s11
  $region7: #{input_module_forward.2} parent=0 // loop_footer_branch
    %10 = sbr.rel target = $region3
  $region8: #{input_module_forward.2} parent=0 // loop_exit
    _

</llo_original>
